<compile_context>
chip_gen: v7x
topology: tpu7x:2x2x1
jax: 0.10.0
libtpu: 0.0.40
codegen_flags: <defaults>
</compile_context>

<pallas_src>
import functools
import math

import jax
import jax.numpy as jnp
from jax.experimental import pallas as pl
from jax.experimental.pallas import tpu as pltpu


# ----------------------------------------------------------------------------
# Fused rollout kernel: the whole L-step greedy decode for a tile of batch
# elements inside one pallas_call invocation.
# ----------------------------------------------------------------------------

def _rollout_kernel(user_ref, wl_ref, sstat_ref, scap_ref, mask_ref,
                    wstat_ref, wcap_ref, wact_ref, bbig_ref,
                    wuq_ref, buq_ref, w2p_ref, vtc_ref,
                    probs_ref, idx_ref, ualloc_ref, sused_ref, cap_ref,
                    *, steps, servers, neg_fill, batch_tile):
    f32 = jnp.float32
    L, S = steps, servers

    iota_s_col = jax.lax.broadcasted_iota(jnp.int32, (S, 1), 0).astype(f32)
    iota_s_row = jax.lax.broadcasted_iota(jnp.int32, (1, S), 1).astype(f32)
    iota_l_row = jax.lax.broadcasted_iota(jnp.int32, (1, L), 1).astype(f32)

    for bb in range(batch_tile):
        # ---- once-per-rollout work (static server features never change,
        #      user features never change) ----
        static_kv = jnp.dot(sstat_ref[bb], wstat_ref[...],
                            preferred_element_type=f32) + bbig_ref[...]     # (S,3H)
        q_all = jnp.dot(user_ref[bb], wuq_ref[...],
                        preferred_element_type=f32) + buq_ref[...]          # (L,3H)
        wl_all = wl_ref[bb]                                                 # (L,4)
        mask_all = mask_ref[bb]                                             # (S,L)

        cap = scap_ref[bb]                                                  # (S,4)
        active_col = jnp.zeros((S, 1), f32)
        active_row = jnp.zeros((1, S), f32)
        probs_row = jnp.zeros((1, L), f32)
        idx_row = jnp.zeros((1, L), f32)
        ualloc_row = jnp.zeros((1, L), f32)

        # L is small & static -> unrolled rollout; every step is a handful of
        # tiny MXU/VPU/XLU ops, all state stays resident.
        # TODO(synk): for large L switch to lax.fori_loop with VMEM scratch state.
        for i in range(L):
            # -- server encode (folded): only capacity & active parts re-multiplied
            kv1 = (static_kv
                   + jnp.dot(cap, wcap_ref[...], preferred_element_type=f32)
                   + active_col * wact_ref[...])                            # (S,3H)

            # -- Glimpse: q zero-padded over V/W1E lanes -> plain lane reduce
            qi = q_all[i:i + 1, :]                                          # (1,3H)
            gs = jnp.sum(kv1 * qi, axis=1, keepdims=True)                   # (S,1)
            gs = gs - jnp.max(gs, axis=0, keepdims=True)
            ge = jnp.exp(gs)
            attn = ge / jnp.sum(ge, axis=0, keepdims=True)                  # (S,1)
            g_full = jnp.sum(attn * kv1, axis=0, keepdims=True)             # (1,3H)

            # -- pointer: alpha folded into w2p (V rows -> W1E cols), c into vtc
            dec = jnp.dot(g_full, w2p_ref[...], preferred_element_type=f32) # (1,3H)
            u = jnp.sum(jnp.tanh(kv1 + dec) * vtc_ref[...],
                        axis=1, keepdims=True)                              # (S,1)
            mask_i = mask_all[:, i:i + 1]                                   # (S,1)
            score = jnp.where(mask_i > 0.5, u, neg_fill)
            score = score - jnp.max(score, axis=0, keepdims=True)
            es = jnp.exp(score)
            probs = es / jnp.sum(es, axis=0, keepdims=True)                 # (S,1)

            # -- greedy pick (top-1) -----------------------------------------
            prob = jnp.max(probs, axis=0, keepdims=True)                    # (1,1)
            idx = jnp.min(jnp.where(probs >= prob, iota_s_col, float(S)),
                          axis=0, keepdims=True)                            # (1,1)
            onehot = (iota_s_col == idx).astype(f32)                        # (S,1)

            # -- capacity check + scatter updates (one-hot gather/scatter) ----
            wl_i = wl_all[i:i + 1, :]                                       # (1,4)
            cap_j = jnp.sum(onehot * cap, axis=0, keepdims=True)            # (1,4)
            can = jnp.min((cap_j >= wl_i).astype(f32), axis=1,
                          keepdims=True)                                    # (1,1)
            cap = cap - onehot * (wl_i * can)                               # (S,4)

            idx_ok = jnp.where(can > 0.5, idx, -1.0)                        # (1,1)
            active_col = jnp.maximum(active_col, onehot * can)
            active_row = jnp.maximum(active_row,
                                     (iota_s_row == idx).astype(f32) * can)

            sel = iota_l_row == float(i)
            probs_row = jnp.where(sel, prob, probs_row)
            idx_row = jnp.where(sel, idx, idx_row)
            ualloc_row = jnp.where(sel, idx_ok, ualloc_row)

        # lane-dense row stores, once per rollout
        probs_ref[bb] = probs_row
        idx_ref[bb] = idx_row.astype(jnp.int32)
        ualloc_ref[bb] = ualloc_row.astype(jnp.int32)
        sused_ref[bb] = active_row.astype(jnp.int32)
        cap_ref[bb] = cap


def fuse_params(p, alpha, c, norm):
    """Exact affine folds, computed once per forward call (outside the kernel)."""
    H = p["wq"].shape[0]
    Du = p["wu"].shape[0]
    G = 3 * H
    f32 = jnp.float32
    # ServerEncoder Linear composed with [Glimpse.k | Glimpse.v | Attention.W1]
    wkv1 = jnp.concatenate([p["wk"], p["wv"], p["w1"]], axis=1)            # (H, 3H)
    bkv1 = jnp.concatenate([p["bk"], p["bv"], jnp.zeros_like(p["bk"])],
                           axis=1)                                         # (1, 3H)
    w_big = p["wse"] @ wkv1                                                # (Dse,3H)
    b_big = p["bse"] @ wkv1 + bkv1                                         # (1, 3H)
    # UserEncoder(linear) ∘ Glimpse.q with 1/sqrt(H), zero-padded to the slab
    wuq = jnp.concatenate([(p["wu"] @ p["wq"]) * norm,
                           jnp.zeros((Du, 2 * H), f32)], axis=1)           # (Du,3H)
    buq = jnp.concatenate([(p["bu"] @ p["wq"] + p["bq"]) * norm,
                           jnp.zeros((1, 2 * H), f32)], axis=1)            # (1, 3H)
    # W2 (alpha folded): V rows of the slab -> W1E lanes of the slab
    w2p = jnp.zeros((G, G), f32).at[H:2 * H, 2 * H:].set(p["w2"] * alpha)
    # vt (exploration_c folded): zero over K/V lanes
    vtc = jnp.concatenate([jnp.zeros((1, 2 * H), f32), p["vt"].T * c], axis=1)
    return dict(wstat=w_big[:3], wcap=w_big[3:7], wact=w_big[7:8], bbig=b_big,
                wuq=wuq, buq=buq, w2p=w2p, vtc=vtc)


def fused_rollout_pallas(user_seq, server_seq, masks, params, *,
                         alpha, c, norm, neg_fill):
    B, L, Du = user_seq.shape
    _, S, _ = server_seq.shape
    H = params["wq"].shape[0]
    G = 3 * H
    f = fuse_params(params, alpha, c, norm)

    # <=2 parallel batch shards (v7x has 2 TensorCores); each shard runs the
    # full rollout for its batch tile.  Everything stays far below the v7x
    # 32 MiB scoped-VMEM budget.
    shards = 2 if (B % 2 == 0 and B >= 2) else 1
    bt = B // shards

    workload = user_seq[:, :, 2:]                              # (B, L, 4)
    sstat = server_seq[:, :, :3]                               # (B, S, 3)
    scap = server_seq[:, :, 3:]                                # (B, S, 4)
    maskf = masks.astype(jnp.float32).transpose(0, 2, 1)       # (B, S, L)

    kernel = functools.partial(_rollout_kernel, steps=L, servers=S,
                               neg_fill=neg_fill, batch_tile=bt)

    def bmap3(g):
        return (g, 0, 0)

    def wmap2(g):
        return (0, 0)

    out_shape = (
        jax.ShapeDtypeStruct((B, 1, L), jnp.float32),   # chosen prob / step
        jax.ShapeDtypeStruct((B, 1, L), jnp.int32),     # chosen idx / step
        jax.ShapeDtypeStruct((B, 1, L), jnp.int32),     # user_alloc
        jax.ShapeDtypeStruct((B, 1, S), jnp.int32),     # servers used
        jax.ShapeDtypeStruct((B, S, 4), jnp.float32),   # final tmp capacity
    )
    grid_spec = pltpu.PrefetchScalarGridSpec(
        num_scalar_prefetch=0,
        grid=(shards,),
        in_specs=[
            pl.BlockSpec((bt, L, Du), bmap3),           # user features
            pl.BlockSpec((bt, L, 4), bmap3),            # workloads
            pl.BlockSpec((bt, S, 3), bmap3),            # static server features
            pl.BlockSpec((bt, S, 4), bmap3),            # initial capacities
            pl.BlockSpec((bt, S, L), bmap3),            # masks (per-step columns)
            # fused weights: resident in VMEM across the whole grid
            pl.BlockSpec((3, G), wmap2),
            pl.BlockSpec((4, G), wmap2),
            pl.BlockSpec((1, G), wmap2),
            pl.BlockSpec((1, G), wmap2),
            pl.BlockSpec((Du, G), wmap2),
            pl.BlockSpec((1, G), wmap2),
            pl.BlockSpec((G, G), wmap2),
            pl.BlockSpec((1, G), wmap2),
        ],
        out_specs=[
            pl.BlockSpec((bt, 1, L), bmap3),
            pl.BlockSpec((bt, 1, L), bmap3),
            pl.BlockSpec((bt, 1, L), bmap3),
            pl.BlockSpec((bt, 1, S), bmap3),
            pl.BlockSpec((bt, S, 4), bmap3),
        ],
    )
    probs, idx, ualloc, sused, cap = pl.pallas_call(
        kernel,
        out_shape=out_shape,
        grid_spec=grid_spec,
        compiler_params=pltpu.CompilerParams(
            dimension_semantics=("parallel",)),
    )(user_seq, workload, sstat, scap, maskf,
      f["wstat"], f["wcap"], f["wact"], f["bbig"],
      f["wuq"], f["buq"], f["w2p"], f["vtc"])
    return (probs[:, 0, :], idx[:, 0, :], ualloc[:, 0, :],
            sused[:, 0, :], cap)


# ----------------------------------------------------------------------------
# Pure-JAX reference (mirrors the PyTorch modules op-for-op)
# ----------------------------------------------------------------------------

def pointer_step_ref(server_seq, user_code, mask, p, alpha, c, norm):
    e = server_seq @ p["wse"] + p["bse"]                      # ServerEncoder
    q = user_code @ p["wq"] + p["bq"]                         # Glimpse.q
    k = e @ p["wk"] + p["bk"]
    v = e @ p["wv"] + p["bv"]
    attn_score = jnp.einsum("bqh,bsh->bqs", q, k) * norm
    attn = jax.nn.softmax(attn_score, axis=-1)
    g = jnp.einsum("bqs,bsh->bqh", attn, v)                   # glimpse output
    enc_t = e @ p["w1"]                                       # Attention.W1
    dec_t = (g * alpha) @ p["w2"]                             # Attention.W2
    u_i = (jnp.tanh(enc_t + dec_t) @ p["vt"])[:, :, 0]        # Attention.vt
    score = jnp.where(mask, u_i, math.log(1e-45)) * c
    return jax.nn.softmax(score, axis=-1)


# ----------------------------------------------------------------------------
# Rewards + forward (bookkeeping around the fused kernel)
# ----------------------------------------------------------------------------

def calc_rewards(user_alloc, user_len, used, server_len,
                 original_capacity, tmp_capacity):
    user_allocated_props = (jnp.sum(user_alloc != -1, axis=1)
                            .astype(jnp.float32) / user_len)
    server_used_props = jnp.sum(used, axis=1).astype(jnp.float32) / server_len
    flag = used[:, :, None].astype(bool)
    sum_all = jnp.sum(jnp.where(flag, original_capacity, 0.0), axis=1)
    sum_remain = jnp.sum(jnp.where(flag, tmp_capacity, 0.0), axis=1)
    capacity_used_props = 1.0 - jnp.mean(sum_remain / sum_all, axis=1)
    return user_allocated_props, server_used_props, capacity_used_props


def attention_net_forward(user_seq, server_seq_in, masks, params, *,
                          capacity_reward_rate, exploration_c,
                          user_scale_alpha, use_pallas):
    B, L, _ = user_seq.shape
    _, S, _ = server_seq_in.shape
    H = params["wq"].shape[0]
    norm = 1.0 / math.sqrt(H)
    neg_fill = math.log(1e-45) * exploration_c

    if use_pallas:
        probs, idx, user_alloc, used, tmp_cap = fused_rollout_pallas(
            user_seq, server_seq_in, masks, params,
            alpha=user_scale_alpha, c=exploration_c, norm=norm,
            neg_fill=neg_fill)
        action_probs = probs.T                                  # (L, B)
        action_idx = idx                                        # (B, L)
    else:
        user_enc = user_seq @ params["wu"] + params["bu"]
        static_server = server_seq_in[:, :, :3]
        tmp_cap = server_seq_in[:, :, 3:]
        user_alloc = -jnp.ones((B, L), dtype=jnp.int32)
        server_alloc = jnp.zeros((B, S + 1), dtype=jnp.int32)
        batch_range = jnp.arange(B)
        ap_list, ai_list = [], []
        for i in range(L):
            mask_i = masks[:, i]
            ucode = user_enc[:, i:i + 1, :]
            server_active = server_alloc[:, :-1, None].astype(jnp.float32)
            sseq = jnp.concatenate([static_server, tmp_cap, server_active],
                                   axis=-1)
            probs = pointer_step_ref(sseq, ucode, mask_i, params,
                                     user_scale_alpha, exploration_c, norm)
            # TODO(synk): policy='sample' (torch.multinomial) is stochastic;
            # the module's deterministic 'greedy' (top-1) policy is used here.
            pick = jnp.argmax(probs, axis=-1)
            ap_list.append(probs[batch_range, pick])
            ai_list.append(pick)
            workload = user_seq[:, i, 2:]
            cap_j = tmp_cap[batch_range, pick]
            can = jnp.all(cap_j >= workload, axis=1)
            tmp_cap = tmp_cap.at[batch_range, pick].add(
                -(workload * can[:, None]))
            idx_masked = jnp.where(can, pick, -1).astype(jnp.int32)
            user_alloc = user_alloc.at[:, i].set(idx_masked)
            col = jnp.where(idx_masked < 0, S, idx_masked)
            server_alloc = server_alloc.at[batch_range, col].set(1)
        action_probs = jnp.stack(ap_list)                       # (L, B)
        action_idx = jnp.stack(ai_list, axis=-1)                # (B, L)
        used = server_alloc[:, :-1]

    ua, su, cu = calc_rewards(user_alloc, L, used, S,
                              server_seq_in[:, :, 3:], tmp_cap)
    reward = (1.0 - capacity_reward_rate) * ua + capacity_reward_rate * cu
    return (-reward, action_probs, action_idx, ua, su, cu, user_alloc)

# TODO(synk): beam_forward (beam_num > 1) is not implemented (beam_num == 1 path only).
# TODO(synk): 'transformer'/'lstm' user embeddings are not in the spec; 'linear' is used.


# ----------------------------------------------------------------------------
# Parameter init (mimics nn.Linear U(-1/sqrt(fan_in), 1/sqrt(fan_in)))
# ----------------------------------------------------------------------------

def init_params(key, user_dim, server_dim, hidden_dim):
    def linear(k, fin, fout, bias=True):
        kw, kb = jax.random.split(k)
        bound = 1.0 / math.sqrt(fin)
        w = jax.random.uniform(kw, (fin, fout), jnp.float32, -bound, bound)
        if not bias:
            return w
        b = jax.random.uniform(kb, (1, fout), jnp.float32, -bound, bound)
        return w, b

    ks = jax.random.split(key, 8)
    wu, bu = linear(ks[0], user_dim, hidden_dim)               # UserEncoder (linear)
    wse, bse = linear(ks[1], server_dim + 1, hidden_dim)       # ServerEncoder
    wq, bq = linear(ks[2], hidden_dim, hidden_dim)             # Glimpse.q
    wk, bk = linear(ks[3], hidden_dim, hidden_dim)             # Glimpse.k
    wv, bv = linear(ks[4], hidden_dim, hidden_dim)             # Glimpse.v
    w1 = linear(ks[5], hidden_dim, hidden_dim, bias=False)     # Attention.W1
    w2 = linear(ks[6], hidden_dim, hidden_dim, bias=False)     # Attention.W2
    vt = linear(ks[7], hidden_dim, 1, bias=False)              # Attention.vt
    return dict(wu=wu, bu=bu, wse=wse, bse=bse, wq=wq, bq=bq,
                wk=wk, bk=bk, wv=wv, bv=bv, w1=w1, w2=w2, vt=vt)


# ----------------------------------------------------------------------------
# Main
# ----------------------------------------------------------------------------

if __name__ == "__main__":
    B, user_len, server_len = 2, 8, 6
    user_dim, server_dim, hidden_dim = 6, 7, 32          # workload = user[:, :, 2:]

    key = jax.random.PRNGKey(0)
    k1, k2, k3, k4, kp = jax.random.split(key, 5)
    user_feat = jax.random.normal(k1, (B, user_len, 2), jnp.float32)
    user_workload = jax.random.uniform(k2, (B, user_len, 4), jnp.float32, 0.05, 0.2)
    user_seq = jnp.concatenate([user_feat, user_workload], axis=-1)
    server_static = jax.random.normal(k3, (B, server_len, 3), jnp.float32)
    server_capacity = jax.random.uniform(k4, (B, server_len, 4), jnp.float32, 0.5, 1.0)
    server_seq = jnp.concatenate([server_static, server_capacity], axis=-1)
    masks = jnp.ones((B, user_len, server_len), dtype=bool)
    params = init_params(kp, user_dim, server_dim, hidden_dim)

    common = dict(capacity_reward_rate=0.5, exploration_c=10.0,
                  user_scale_alpha=0.05)
    forward_pallas = jax.jit(functools.partial(
        attention_net_forward, use_pallas=True, **common))
    forward_ref = jax.jit(functools.partial(
        attention_net_forward, use_pallas=False, **common))

    out_p = forward_pallas(user_seq, server_seq, masks, params)
    jax.block_until_ready(out_p)
    out_r = forward_ref(user_seq, server_seq, masks, params)
    jax.block_until_ready(out_r)

    neg_r_p, ap_p, ai_p, ua_p, su_p, cu_p, ual_p = out_p
    neg_r_r, ap_r, ai_r, ua_r, su_r, cu_r, ual_r = out_r

    assert neg_r_p.shape == (B,), neg_r_p.shape
    assert ap_p.shape == (user_len, B), ap_p.shape
    assert ai_p.shape == (B, user_len), ai_p.shape
    assert jnp.array_equal(ai_p, ai_r), (ai_p, ai_r)
    assert jnp.array_equal(ual_p, ual_r), (ual_p, ual_r)
    assert jnp.allclose(ap_p, ap_r, atol=1e-4, rtol=1e-3), (ap_p, ap_r)
    assert jnp.allclose(neg_r_p, neg_r_r, atol=1e-5, rtol=1e-5), (neg_r_p, neg_r_r)
    assert jnp.allclose(ua_p, ua_r) and jnp.allclose(su_p, su_r)
    assert jnp.allclose(cu_p, cu_r, atol=1e-5, rtol=1e-5)

    print("KERNEL_OK")
</pallas_src>

<mosaic_0001>
module attributes {stable_mosaic.version = 11 : i64} {
  func.func @_rollout_kernel(%arg0: i32, %arg1: memref<1x8x6xf32, #tpu.memory_space<vmem>>, %arg2: memref<1x8x4xf32, #tpu.memory_space<vmem>>, %arg3: memref<1x6x3xf32, #tpu.memory_space<vmem>>, %arg4: memref<1x6x4xf32, #tpu.memory_space<vmem>>, %arg5: memref<1x6x8xf32, #tpu.memory_space<vmem>>, %arg6: memref<3x96xf32, #tpu.memory_space<vmem>>, %arg7: memref<4x96xf32, #tpu.memory_space<vmem>>, %arg8: memref<1x96xf32, #tpu.memory_space<vmem>>, %arg9: memref<1x96xf32, #tpu.memory_space<vmem>>, %arg10: memref<6x96xf32, #tpu.memory_space<vmem>>, %arg11: memref<1x96xf32, #tpu.memory_space<vmem>>, %arg12: memref<96x96xf32, #tpu.memory_space<vmem>>, %arg13: memref<1x96xf32, #tpu.memory_space<vmem>>, %arg14: memref<1x1x8xf32, #tpu.memory_space<vmem>>, %arg15: memref<1x1x8xi32, #tpu.memory_space<vmem>>, %arg16: memref<1x1x8xi32, #tpu.memory_space<vmem>>, %arg17: memref<1x1x6xi32, #tpu.memory_space<vmem>>, %arg18: memref<1x6x4xf32, #tpu.memory_space<vmem>>) attributes {dimension_semantics = [#tpu.dimension_semantics<parallel>], iteration_bounds = array<i64: 2>, scalar_prefetch = 0 : i64, scratch_operands = 0 : i64, tpu.core_type = #tpu.core_type<tc>, window_params = [{transform_indices = @transform_0, window_bounds = array<i64: 1, 8, 6>}, {transform_indices = @transform_1, window_bounds = array<i64: 1, 8, 4>}, {transform_indices = @transform_2, window_bounds = array<i64: 1, 6, 3>}, {transform_indices = @transform_3, window_bounds = array<i64: 1, 6, 4>}, {transform_indices = @transform_4, window_bounds = array<i64: 1, 6, 8>}, {pipeline_mode = #tpu.pipeline_mode<synchronous>, transform_indices = @transform_5, window_bounds = array<i64: 3, 96>}, {pipeline_mode = #tpu.pipeline_mode<synchronous>, transform_indices = @transform_6, window_bounds = array<i64: 4, 96>}, {pipeline_mode = #tpu.pipeline_mode<synchronous>, transform_indices = @transform_7, window_bounds = array<i64: 1, 96>}, {pipeline_mode = #tpu.pipeline_mode<synchronous>, transform_indices = @transform_8, window_bounds = array<i64: 1, 96>}, {pipeline_mode = #tpu.pipeline_mode<synchronous>, transform_indices = @transform_9, window_bounds = array<i64: 6, 96>}, {pipeline_mode = #tpu.pipeline_mode<synchronous>, transform_indices = @transform_10, window_bounds = array<i64: 1, 96>}, {pipeline_mode = #tpu.pipeline_mode<synchronous>, transform_indices = @transform_11, window_bounds = array<i64: 96, 96>}, {pipeline_mode = #tpu.pipeline_mode<synchronous>, transform_indices = @transform_12, window_bounds = array<i64: 1, 96>}, {transform_indices = @transform_13, window_bounds = array<i64: 1, 1, 8>}, {transform_indices = @transform_14, window_bounds = array<i64: 1, 1, 8>}, {transform_indices = @transform_15, window_bounds = array<i64: 1, 1, 8>}, {transform_indices = @transform_16, window_bounds = array<i64: 1, 1, 6>}, {transform_indices = @transform_17, window_bounds = array<i64: 1, 6, 4>}]} {
    %0 = tpu.iota {dimensions = array<i32: 0>} : vector<6x1xi32>
    %1 = arith.sitofp %0 : vector<6x1xi32> to vector<6x1xf32>
    %2 = tpu.iota {dimensions = array<i32: 1>} : vector<1x6xi32>
    %3 = arith.sitofp %2 : vector<1x6xi32> to vector<1x6xf32>
    %4 = tpu.iota {dimensions = array<i32: 1>} : vector<1x8xi32>
    %5 = arith.sitofp %4 : vector<1x8xi32> to vector<1x8xf32>
    %c0 = arith.constant 0 : index
    %c0_0 = arith.constant 0 : index
    %c0_1 = arith.constant 0 : index
    %6 = vector.load %arg3[%c0, %c0_0, %c0_1] : memref<1x6x3xf32, #tpu.memory_space<vmem>>, vector<1x6x3xf32>
    %7 = vector.shape_cast %6 : vector<1x6x3xf32> to vector<6x3xf32>
    %c0_2 = arith.constant 0 : index
    %c0_3 = arith.constant 0 : index
    %8 = vector.load %arg6[%c0_2, %c0_3] : memref<3x96xf32, #tpu.memory_space<vmem>>, vector<3x96xf32>
    %cst = arith.constant dense<0.000000e+00> : vector<6x96xf32>
    %9 = tpu.matmul %7, %8, %cst {dimension_numbers = #tpu.dot_dimension_numbers<[1], [0], [0], [1], [0, 0, 1, 1], [], []>} : vector<6x3xf32>, vector<3x96xf32>, vector<6x96xf32> -> vector<6x96xf32>
    %c0_4 = arith.constant 0 : index
    %c0_5 = arith.constant 0 : index
    %10 = vector.load %arg9[%c0_4, %c0_5] : memref<1x96xf32, #tpu.memory_space<vmem>>, vector<1x96xf32>
    %11 = vector.broadcast %10 : vector<1x96xf32> to vector<6x96xf32>
    %12 = arith.addf %9, %11 : vector<6x96xf32>
    %c0_6 = arith.constant 0 : index
    %c0_7 = arith.constant 0 : index
    %c0_8 = arith.constant 0 : index
    %13 = vector.load %arg1[%c0_6, %c0_7, %c0_8] : memref<1x8x6xf32, #tpu.memory_space<vmem>>, vector<1x8x6xf32>
    %14 = vector.shape_cast %13 : vector<1x8x6xf32> to vector<8x6xf32>
    %c0_9 = arith.constant 0 : index
    %c0_10 = arith.constant 0 : index
    %15 = vector.load %arg10[%c0_9, %c0_10] : memref<6x96xf32, #tpu.memory_space<vmem>>, vector<6x96xf32>
    %cst_11 = arith.constant dense<0.000000e+00> : vector<8x96xf32>
    %16 = tpu.matmul %14, %15, %cst_11 {dimension_numbers = #tpu.dot_dimension_numbers<[1], [0], [0], [1], [0, 0, 1, 1], [], []>} : vector<8x6xf32>, vector<6x96xf32>, vector<8x96xf32> -> vector<8x96xf32>
    %c0_12 = arith.constant 0 : index
    %c0_13 = arith.constant 0 : index
    %17 = vector.load %arg11[%c0_12, %c0_13] : memref<1x96xf32, #tpu.memory_space<vmem>>, vector<1x96xf32>
    %18 = vector.broadcast %17 : vector<1x96xf32> to vector<8x96xf32>
    %19 = arith.addf %16, %18 : vector<8x96xf32>
    %c0_14 = arith.constant 0 : index
    %c0_15 = arith.constant 0 : index
    %c0_16 = arith.constant 0 : index
    %20 = vector.load %arg2[%c0_14, %c0_15, %c0_16] : memref<1x8x4xf32, #tpu.memory_space<vmem>>, vector<1x8x4xf32>
    %21 = vector.shape_cast %20 : vector<1x8x4xf32> to vector<8x4xf32>
    %c0_17 = arith.constant 0 : index
    %c0_18 = arith.constant 0 : index
    %c0_19 = arith.constant 0 : index
    %22 = vector.load %arg5[%c0_17, %c0_18, %c0_19] : memref<1x6x8xf32, #tpu.memory_space<vmem>>, vector<1x6x8xf32>
    %23 = vector.shape_cast %22 : vector<1x6x8xf32> to vector<6x8xf32>
    %c0_20 = arith.constant 0 : index
    %c0_21 = arith.constant 0 : index
    %c0_22 = arith.constant 0 : index
    %24 = vector.load %arg4[%c0_20, %c0_21, %c0_22] : memref<1x6x4xf32, #tpu.memory_space<vmem>>, vector<1x6x4xf32>
    %25 = vector.shape_cast %24 : vector<1x6x4xf32> to vector<6x4xf32>
    %cst_23 = arith.constant 0.000000e+00 : f32
    %26 = vector.broadcast %cst_23 : f32 to vector<6x1xf32>
    %cst_24 = arith.constant 0.000000e+00 : f32
    %27 = vector.broadcast %cst_24 : f32 to vector<1x6xf32>
    %cst_25 = arith.constant 0.000000e+00 : f32
    %28 = vector.broadcast %cst_25 : f32 to vector<1x8xf32>
    %cst_26 = arith.constant 0.000000e+00 : f32
    %29 = vector.broadcast %cst_26 : f32 to vector<1x8xf32>
    %cst_27 = arith.constant 0.000000e+00 : f32
    %30 = vector.broadcast %cst_27 : f32 to vector<1x8xf32>
    %c0_28 = arith.constant 0 : index
    %c0_29 = arith.constant 0 : index
    %31 = vector.load %arg7[%c0_28, %c0_29] : memref<4x96xf32, #tpu.memory_space<vmem>>, vector<4x96xf32>
    %cst_30 = arith.constant dense<0.000000e+00> : vector<6x96xf32>
    %32 = tpu.matmul %25, %31, %cst_30 {dimension_numbers = #tpu.dot_dimension_numbers<[1], [0], [0], [1], [0, 0, 1, 1], [], []>} : vector<6x4xf32>, vector<4x96xf32>, vector<6x96xf32> -> vector<6x96xf32>
    %33 = arith.addf %12, %32 : vector<6x96xf32>
    %c0_31 = arith.constant 0 : index
    %c0_32 = arith.constant 0 : index
    %34 = vector.load %arg8[%c0_31, %c0_32] : memref<1x96xf32, #tpu.memory_space<vmem>>, vector<1x96xf32>
    %35 = vector.broadcast %26 : vector<6x1xf32> to vector<6x96xf32>
    %36 = vector.broadcast %34 : vector<1x96xf32> to vector<6x96xf32>
    %37 = arith.mulf %35, %36 : vector<6x96xf32>
    %38 = arith.addf %33, %37 : vector<6x96xf32>
    %39 = vector.extract_strided_slice %19 {offsets = [0, 0], sizes = [1, 96], strides = [1, 1]} : vector<8x96xf32> to vector<1x96xf32>
    %40 = vector.broadcast %39 : vector<1x96xf32> to vector<6x96xf32>
    %41 = arith.mulf %38, %40 : vector<6x96xf32>
    %cst_33 = arith.constant dense<0.000000e+00> : vector<6xf32>
    %42 = vector.multi_reduction <add>, %41, %cst_33 [1] : vector<6x96xf32> to vector<6xf32>
    %43 = vector.shape_cast %42 : vector<6xf32> to vector<6x1xf32>
    %cst_34 = arith.constant dense<0xFF800000> : vector<1xf32>
    %44 = vector.multi_reduction <maximumf>, %43, %cst_34 [0] : vector<6x1xf32> to vector<1xf32>
    %45 = vector.shape_cast %44 : vector<1xf32> to vector<1x1xf32>
    %46 = vector.broadcast %45 : vector<1x1xf32> to vector<6x1xf32>
    %47 = arith.subf %43, %46 : vector<6x1xf32>
    %48 = math.exp %47 : vector<6x1xf32>
    %cst_35 = arith.constant dense<0.000000e+00> : vector<1xf32>
    %49 = vector.multi_reduction <add>, %48, %cst_35 [0] : vector<6x1xf32> to vector<1xf32>
    %50 = vector.shape_cast %49 : vector<1xf32> to vector<1x1xf32>
    %51 = vector.broadcast %50 : vector<1x1xf32> to vector<6x1xf32>
    %52 = arith.divf %48, %51 : vector<6x1xf32>
    %53 = vector.broadcast %52 : vector<6x1xf32> to vector<6x96xf32>
    %54 = arith.mulf %53, %38 : vector<6x96xf32>
    %cst_36 = arith.constant dense<0.000000e+00> : vector<96xf32>
    %55 = vector.multi_reduction <add>, %54, %cst_36 [0] : vector<6x96xf32> to vector<96xf32>
    %56 = vector.shape_cast %55 : vector<96xf32> to vector<1x96xf32>
    %c0_37 = arith.constant 0 : index
    %c0_38 = arith.constant 0 : index
    %57 = vector.load %arg12[%c0_37, %c0_38] : memref<96x96xf32, #tpu.memory_space<vmem>>, vector<96x96xf32>
    %cst_39 = arith.constant dense<0.000000e+00> : vector<1x96xf32>
    %58 = tpu.matmul %56, %57, %cst_39 {dimension_numbers = #tpu.dot_dimension_numbers<[1], [0], [0], [1], [0, 0, 1, 1], [], []>} : vector<1x96xf32>, vector<96x96xf32>, vector<1x96xf32> -> vector<1x96xf32>
    %59 = vector.broadcast %58 : vector<1x96xf32> to vector<6x96xf32>
    %60 = arith.addf %38, %59 : vector<6x96xf32>
    %61 = math.tanh %60 : vector<6x96xf32>
    %c0_40 = arith.constant 0 : index
    %c0_41 = arith.constant 0 : index
    %62 = vector.load %arg13[%c0_40, %c0_41] : memref<1x96xf32, #tpu.memory_space<vmem>>, vector<1x96xf32>
    %63 = vector.broadcast %62 : vector<1x96xf32> to vector<6x96xf32>
    %64 = arith.mulf %61, %63 : vector<6x96xf32>
    %cst_42 = arith.constant dense<0.000000e+00> : vector<6xf32>
    %65 = vector.multi_reduction <add>, %64, %cst_42 [1] : vector<6x96xf32> to vector<6xf32>
    %66 = vector.shape_cast %65 : vector<6xf32> to vector<6x1xf32>
    %67 = vector.extract_strided_slice %23 {offsets = [0, 0], sizes = [6, 1], strides = [1, 1]} : vector<6x8xf32> to vector<6x1xf32>
    %cst_43 = arith.constant 5.000000e-01 : f32
    %68 = vector.broadcast %cst_43 : f32 to vector<6x1xf32>
    %69 = arith.cmpf ogt, %67, %68 : vector<6x1xf32>
    %cst_44 = arith.constant -1036.16333 : f32
    %70 = vector.broadcast %cst_44 : f32 to vector<6x1xf32>
    %71 = arith.select %69, %66, %70 : vector<6x1xi1>, vector<6x1xf32>
    %cst_45 = arith.constant dense<0xFF800000> : vector<1xf32>
    %72 = vector.multi_reduction <maximumf>, %71, %cst_45 [0] : vector<6x1xf32> to vector<1xf32>
    %73 = vector.shape_cast %72 : vector<1xf32> to vector<1x1xf32>
    %74 = vector.broadcast %73 : vector<1x1xf32> to vector<6x1xf32>
    %75 = arith.subf %71, %74 : vector<6x1xf32>
    %76 = math.exp %75 : vector<6x1xf32>
    %cst_46 = arith.constant dense<0.000000e+00> : vector<1xf32>
    %77 = vector.multi_reduction <add>, %76, %cst_46 [0] : vector<6x1xf32> to vector<1xf32>
    %78 = vector.shape_cast %77 : vector<1xf32> to vector<1x1xf32>
    %79 = vector.broadcast %78 : vector<1x1xf32> to vector<6x1xf32>
    %80 = arith.divf %76, %79 : vector<6x1xf32>
    %cst_47 = arith.constant dense<0xFF800000> : vector<1xf32>
    %81 = vector.multi_reduction <maximumf>, %80, %cst_47 [0] : vector<6x1xf32> to vector<1xf32>
    %82 = vector.shape_cast %81 : vector<1xf32> to vector<1x1xf32>
    %83 = vector.broadcast %82 : vector<1x1xf32> to vector<6x1xf32>
    %84 = arith.cmpf oge, %80, %83 : vector<6x1xf32>
    %cst_48 = arith.constant 6.000000e+00 : f32
    %85 = vector.broadcast %cst_48 : f32 to vector<6x1xf32>
    %86 = arith.select %84, %1, %85 : vector<6x1xi1>, vector<6x1xf32>
    %cst_49 = arith.constant dense<0x7F800000> : vector<1xf32>
    %87 = vector.multi_reduction <minimumf>, %86, %cst_49 [0] : vector<6x1xf32> to vector<1xf32>
    %88 = vector.shape_cast %87 : vector<1xf32> to vector<1x1xf32>
    %89 = vector.broadcast %88 : vector<1x1xf32> to vector<6x1xf32>
    %90 = arith.cmpf oeq, %1, %89 : vector<6x1xf32>
    %91 = arith.extui %90 : vector<6x1xi1> to vector<6x1xi32>
    %92 = arith.sitofp %91 : vector<6x1xi32> to vector<6x1xf32>
    %93 = vector.extract_strided_slice %21 {offsets = [0, 0], sizes = [1, 4], strides = [1, 1]} : vector<8x4xf32> to vector<1x4xf32>
    %94 = vector.broadcast %92 : vector<6x1xf32> to vector<6x4xf32>
    %95 = arith.mulf %94, %25 : vector<6x4xf32>
    %cst_50 = arith.constant dense<0.000000e+00> : vector<4xf32>
    %96 = vector.multi_reduction <add>, %95, %cst_50 [0] : vector<6x4xf32> to vector<4xf32>
    %97 = vector.shape_cast %96 : vector<4xf32> to vector<1x4xf32>
    %98 = arith.cmpf oge, %97, %93 : vector<1x4xf32>
    %99 = arith.extui %98 : vector<1x4xi1> to vector<1x4xi32>
    %100 = arith.sitofp %99 : vector<1x4xi32> to vector<1x4xf32>
    %cst_51 = arith.constant dense<0x7F800000> : vector<1xf32>
    %101 = vector.multi_reduction <minimumf>, %100, %cst_51 [1] : vector<1x4xf32> to vector<1xf32>
    %102 = vector.shape_cast %101 : vector<1xf32> to vector<1x1xf32>
    %103 = vector.broadcast %102 : vector<1x1xf32> to vector<1x4xf32>
    %104 = arith.mulf %93, %103 : vector<1x4xf32>
    %105 = vector.broadcast %92 : vector<6x1xf32> to vector<6x4xf32>
    %106 = vector.broadcast %104 : vector<1x4xf32> to vector<6x4xf32>
    %107 = arith.mulf %105, %106 : vector<6x4xf32>
    %108 = arith.subf %25, %107 : vector<6x4xf32>
    %cst_52 = arith.constant 5.000000e-01 : f32
    %109 = vector.broadcast %cst_52 : f32 to vector<1x1xf32>
    %110 = arith.cmpf ogt, %102, %109 : vector<1x1xf32>
    %cst_53 = arith.constant -1.000000e+00 : f32
    %111 = vector.broadcast %cst_53 : f32 to vector<1x1xf32>
    %112 = arith.select %110, %88, %111 : vector<1x1xi1>, vector<1x1xf32>
    %113 = vector.broadcast %102 : vector<1x1xf32> to vector<6x1xf32>
    %114 = arith.mulf %92, %113 : vector<6x1xf32>
    %115 = arith.maximumf %26, %114 : vector<6x1xf32>
    %116 = vector.broadcast %88 : vector<1x1xf32> to vector<1x6xf32>
    %117 = arith.cmpf oeq, %3, %116 : vector<1x6xf32>
    %118 = arith.extui %117 : vector<1x6xi1> to vector<1x6xi32>
    %119 = arith.sitofp %118 : vector<1x6xi32> to vector<1x6xf32>
    %120 = vector.broadcast %102 : vector<1x1xf32> to vector<1x6xf32>
    %121 = arith.mulf %119, %120 : vector<1x6xf32>
    %122 = arith.maximumf %27, %121 : vector<1x6xf32>
    %cst_54 = arith.constant 0.000000e+00 : f32
    %123 = vector.broadcast %cst_54 : f32 to vector<1x8xf32>
    %124 = arith.cmpf oeq, %5, %123 : vector<1x8xf32>
    %125 = vector.shape_cast %82 : vector<1x1xf32> to vector<1x1xf32>
    %126 = vector.broadcast %125 : vector<1x1xf32> to vector<1x8xf32>
    %127 = arith.select %124, %126, %28 : vector<1x8xi1>, vector<1x8xf32>
    %128 = vector.shape_cast %88 : vector<1x1xf32> to vector<1x1xf32>
    %129 = vector.broadcast %128 : vector<1x1xf32> to vector<1x8xf32>
    %130 = arith.select %124, %129, %29 : vector<1x8xi1>, vector<1x8xf32>
    %131 = vector.shape_cast %112 : vector<1x1xf32> to vector<1x1xf32>
    %132 = vector.broadcast %131 : vector<1x1xf32> to vector<1x8xf32>
    %133 = arith.select %124, %132, %30 : vector<1x8xi1>, vector<1x8xf32>
    %c0_55 = arith.constant 0 : index
    %c0_56 = arith.constant 0 : index
    %134 = vector.load %arg7[%c0_55, %c0_56] : memref<4x96xf32, #tpu.memory_space<vmem>>, vector<4x96xf32>
    %cst_57 = arith.constant dense<0.000000e+00> : vector<6x96xf32>
    %135 = tpu.matmul %108, %134, %cst_57 {dimension_numbers = #tpu.dot_dimension_numbers<[1], [0], [0], [1], [0, 0, 1, 1], [], []>} : vector<6x4xf32>, vector<4x96xf32>, vector<6x96xf32> -> vector<6x96xf32>
    %136 = arith.addf %12, %135 : vector<6x96xf32>
    %c0_58 = arith.constant 0 : index
    %c0_59 = arith.constant 0 : index
    %137 = vector.load %arg8[%c0_58, %c0_59] : memref<1x96xf32, #tpu.memory_space<vmem>>, vector<1x96xf32>
    %138 = vector.broadcast %115 : vector<6x1xf32> to vector<6x96xf32>
    %139 = vector.broadcast %137 : vector<1x96xf32> to vector<6x96xf32>
    %140 = arith.mulf %138, %139 : vector<6x96xf32>
    %141 = arith.addf %136, %140 : vector<6x96xf32>
    %142 = vector.extract_strided_slice %19 {offsets = [1, 0], sizes = [1, 96], strides = [1, 1]} : vector<8x96xf32> to vector<1x96xf32>
    %143 = vector.broadcast %142 : vector<1x96xf32> to vector<6x96xf32>
    %144 = arith.mulf %141, %143 : vector<6x96xf32>
    %cst_60 = arith.constant dense<0.000000e+00> : vector<6xf32>
    %145 = vector.multi_reduction <add>, %144, %cst_60 [1] : vector<6x96xf32> to vector<6xf32>
    %146 = vector.shape_cast %145 : vector<6xf32> to vector<6x1xf32>
    %cst_61 = arith.constant dense<0xFF800000> : vector<1xf32>
    %147 = vector.multi_reduction <maximumf>, %146, %cst_61 [0] : vector<6x1xf32> to vector<1xf32>
    %148 = vector.shape_cast %147 : vector<1xf32> to vector<1x1xf32>
    %149 = vector.broadcast %148 : vector<1x1xf32> to vector<6x1xf32>
    %150 = arith.subf %146, %149 : vector<6x1xf32>
    %151 = math.exp %150 : vector<6x1xf32>
    %cst_62 = arith.constant dense<0.000000e+00> : vector<1xf32>
    %152 = vector.multi_reduction <add>, %151, %cst_62 [0] : vector<6x1xf32> to vector<1xf32>
    %153 = vector.shape_cast %152 : vector<1xf32> to vector<1x1xf32>
    %154 = vector.broadcast %153 : vector<1x1xf32> to vector<6x1xf32>
    %155 = arith.divf %151, %154 : vector<6x1xf32>
    %156 = vector.broadcast %155 : vector<6x1xf32> to vector<6x96xf32>
    %157 = arith.mulf %156, %141 : vector<6x96xf32>
    %cst_63 = arith.constant dense<0.000000e+00> : vector<96xf32>
    %158 = vector.multi_reduction <add>, %157, %cst_63 [0] : vector<6x96xf32> to vector<96xf32>
    %159 = vector.shape_cast %158 : vector<96xf32> to vector<1x96xf32>
    %c0_64 = arith.constant 0 : index
    %c0_65 = arith.constant 0 : index
    %160 = vector.load %arg12[%c0_64, %c0_65] : memref<96x96xf32, #tpu.memory_space<vmem>>, vector<96x96xf32>
    %cst_66 = arith.constant dense<0.000000e+00> : vector<1x96xf32>
    %161 = tpu.matmul %159, %160, %cst_66 {dimension_numbers = #tpu.dot_dimension_numbers<[1], [0], [0], [1], [0, 0, 1, 1], [], []>} : vector<1x96xf32>, vector<96x96xf32>, vector<1x96xf32> -> vector<1x96xf32>
    %162 = vector.broadcast %161 : vector<1x96xf32> to vector<6x96xf32>
    %163 = arith.addf %141, %162 : vector<6x96xf32>
    %164 = math.tanh %163 : vector<6x96xf32>
    %c0_67 = arith.constant 0 : index
    %c0_68 = arith.constant 0 : index
    %165 = vector.load %arg13[%c0_67, %c0_68] : memref<1x96xf32, #tpu.memory_space<vmem>>, vector<1x96xf32>
    %166 = vector.broadcast %165 : vector<1x96xf32> to vector<6x96xf32>
    %167 = arith.mulf %164, %166 : vector<6x96xf32>
    %cst_69 = arith.constant dense<0.000000e+00> : vector<6xf32>
    %168 = vector.multi_reduction <add>, %167, %cst_69 [1] : vector<6x96xf32> to vector<6xf32>
    %169 = vector.shape_cast %168 : vector<6xf32> to vector<6x1xf32>
    %170 = vector.extract_strided_slice %23 {offsets = [0, 1], sizes = [6, 1], strides = [1, 1]} : vector<6x8xf32> to vector<6x1xf32>
    %cst_70 = arith.constant 5.000000e-01 : f32
    %171 = vector.broadcast %cst_70 : f32 to vector<6x1xf32>
    %172 = arith.cmpf ogt, %170, %171 : vector<6x1xf32>
    %cst_71 = arith.constant -1036.16333 : f32
    %173 = vector.broadcast %cst_71 : f32 to vector<6x1xf32>
    %174 = arith.select %172, %169, %173 : vector<6x1xi1>, vector<6x1xf32>
    %cst_72 = arith.constant dense<0xFF800000> : vector<1xf32>
    %175 = vector.multi_reduction <maximumf>, %174, %cst_72 [0] : vector<6x1xf32> to vector<1xf32>
    %176 = vector.shape_cast %175 : vector<1xf32> to vector<1x1xf32>
    %177 = vector.broadcast %176 : vector<1x1xf32> to vector<6x1xf32>
    %178 = arith.subf %174, %177 : vector<6x1xf32>
    %179 = math.exp %178 : vector<6x1xf32>
    %cst_73 = arith.constant dense<0.000000e+00> : vector<1xf32>
    %180 = vector.multi_reduction <add>, %179, %cst_73 [0] : vector<6x1xf32> to vector<1xf32>
    %181 = vector.shape_cast %180 : vector<1xf32> to vector<1x1xf32>
    %182 = vector.broadcast %181 : vector<1x1xf32> to vector<6x1xf32>
    %183 = arith.divf %179, %182 : vector<6x1xf32>
    %cst_74 = arith.constant dense<0xFF800000> : vector<1xf32>
    %184 = vector.multi_reduction <maximumf>, %183, %cst_74 [0] : vector<6x1xf32> to vector<1xf32>
    %185 = vector.shape_cast %184 : vector<1xf32> to vector<1x1xf32>
    %186 = vector.broadcast %185 : vector<1x1xf32> to vector<6x1xf32>
    %187 = arith.cmpf oge, %183, %186 : vector<6x1xf32>
    %cst_75 = arith.constant 6.000000e+00 : f32
    %188 = vector.broadcast %cst_75 : f32 to vector<6x1xf32>
    %189 = arith.select %187, %1, %188 : vector<6x1xi1>, vector<6x1xf32>
    %cst_76 = arith.constant dense<0x7F800000> : vector<1xf32>
    %190 = vector.multi_reduction <minimumf>, %189, %cst_76 [0] : vector<6x1xf32> to vector<1xf32>
    %191 = vector.shape_cast %190 : vector<1xf32> to vector<1x1xf32>
    %192 = vector.broadcast %191 : vector<1x1xf32> to vector<6x1xf32>
    %193 = arith.cmpf oeq, %1, %192 : vector<6x1xf32>
    %194 = arith.extui %193 : vector<6x1xi1> to vector<6x1xi32>
    %195 = arith.sitofp %194 : vector<6x1xi32> to vector<6x1xf32>
    %196 = vector.extract_strided_slice %21 {offsets = [1, 0], sizes = [1, 4], strides = [1, 1]} : vector<8x4xf32> to vector<1x4xf32>
    %197 = vector.broadcast %195 : vector<6x1xf32> to vector<6x4xf32>
    %198 = arith.mulf %197, %108 : vector<6x4xf32>
    %cst_77 = arith.constant dense<0.000000e+00> : vector<4xf32>
    %199 = vector.multi_reduction <add>, %198, %cst_77 [0] : vector<6x4xf32> to vector<4xf32>
    %200 = vector.shape_cast %199 : vector<4xf32> to vector<1x4xf32>
    %201 = arith.cmpf oge, %200, %196 : vector<1x4xf32>
    %202 = arith.extui %201 : vector<1x4xi1> to vector<1x4xi32>
    %203 = arith.sitofp %202 : vector<1x4xi32> to vector<1x4xf32>
    %cst_78 = arith.constant dense<0x7F800000> : vector<1xf32>
    %204 = vector.multi_reduction <minimumf>, %203, %cst_78 [1] : vector<1x4xf32> to vector<1xf32>
    %205 = vector.shape_cast %204 : vector<1xf32> to vector<1x1xf32>
    %206 = vector.broadcast %205 : vector<1x1xf32> to vector<1x4xf32>
    %207 = arith.mulf %196, %206 : vector<1x4xf32>
    %208 = vector.broadcast %195 : vector<6x1xf32> to vector<6x4xf32>
    %209 = vector.broadcast %207 : vector<1x4xf32> to vector<6x4xf32>
    %210 = arith.mulf %208, %209 : vector<6x4xf32>
    %211 = arith.subf %108, %210 : vector<6x4xf32>
    %cst_79 = arith.constant 5.000000e-01 : f32
    %212 = vector.broadcast %cst_79 : f32 to vector<1x1xf32>
    %213 = arith.cmpf ogt, %205, %212 : vector<1x1xf32>
    %cst_80 = arith.constant -1.000000e+00 : f32
    %214 = vector.broadcast %cst_80 : f32 to vector<1x1xf32>
    %215 = arith.select %213, %191, %214 : vector<1x1xi1>, vector<1x1xf32>
    %216 = vector.broadcast %205 : vector<1x1xf32> to vector<6x1xf32>
    %217 = arith.mulf %195, %216 : vector<6x1xf32>
    %218 = arith.maximumf %115, %217 : vector<6x1xf32>
    %219 = vector.broadcast %191 : vector<1x1xf32> to vector<1x6xf32>
    %220 = arith.cmpf oeq, %3, %219 : vector<1x6xf32>
    %221 = arith.extui %220 : vector<1x6xi1> to vector<1x6xi32>
    %222 = arith.sitofp %221 : vector<1x6xi32> to vector<1x6xf32>
    %223 = vector.broadcast %205 : vector<1x1xf32> to vector<1x6xf32>
    %224 = arith.mulf %222, %223 : vector<1x6xf32>
    %225 = arith.maximumf %122, %224 : vector<1x6xf32>
    %cst_81 = arith.constant 1.000000e+00 : f32
    %226 = vector.broadcast %cst_81 : f32 to vector<1x8xf32>
    %227 = arith.cmpf oeq, %5, %226 : vector<1x8xf32>
    %228 = vector.shape_cast %185 : vector<1x1xf32> to vector<1x1xf32>
    %229 = vector.broadcast %228 : vector<1x1xf32> to vector<1x8xf32>
    %230 = arith.select %227, %229, %127 : vector<1x8xi1>, vector<1x8xf32>
    %231 = vector.shape_cast %191 : vector<1x1xf32> to vector<1x1xf32>
    %232 = vector.broadcast %231 : vector<1x1xf32> to vector<1x8xf32>
    %233 = arith.select %227, %232, %130 : vector<1x8xi1>, vector<1x8xf32>
    %234 = vector.shape_cast %215 : vector<1x1xf32> to vector<1x1xf32>
    %235 = vector.broadcast %234 : vector<1x1xf32> to vector<1x8xf32>
    %236 = arith.select %227, %235, %133 : vector<1x8xi1>, vector<1x8xf32>
    %c0_82 = arith.constant 0 : index
    %c0_83 = arith.constant 0 : index
    %237 = vector.load %arg7[%c0_82, %c0_83] : memref<4x96xf32, #tpu.memory_space<vmem>>, vector<4x96xf32>
    %cst_84 = arith.constant dense<0.000000e+00> : vector<6x96xf32>
    %238 = tpu.matmul %211, %237, %cst_84 {dimension_numbers = #tpu.dot_dimension_numbers<[1], [0], [0], [1], [0, 0, 1, 1], [], []>} : vector<6x4xf32>, vector<4x96xf32>, vector<6x96xf32> -> vector<6x96xf32>
    %239 = arith.addf %12, %238 : vector<6x96xf32>
    %c0_85 = arith.constant 0 : index
    %c0_86 = arith.constant 0 : index
    %240 = vector.load %arg8[%c0_85, %c0_86] : memref<1x96xf32, #tpu.memory_space<vmem>>, vector<1x96xf32>
    %241 = vector.broadcast %218 : vector<6x1xf32> to vector<6x96xf32>
    %242 = vector.broadcast %240 : vector<1x96xf32> to vector<6x96xf32>
    %243 = arith.mulf %241, %242 : vector<6x96xf32>
    %244 = arith.addf %239, %243 : vector<6x96xf32>
    %245 = vector.extract_strided_slice %19 {offsets = [2, 0], sizes = [1, 96], strides = [1, 1]} : vector<8x96xf32> to vector<1x96xf32>
    %246 = vector.broadcast %245 : vector<1x96xf32> to vector<6x96xf32>
    %247 = arith.mulf %244, %246 : vector<6x96xf32>
    %cst_87 = arith.constant dense<0.000000e+00> : vector<6xf32>
    %248 = vector.multi_reduction <add>, %247, %cst_87 [1] : vector<6x96xf32> to vector<6xf32>
    %249 = vector.shape_cast %248 : vector<6xf32> to vector<6x1xf32>
    %cst_88 = arith.constant dense<0xFF800000> : vector<1xf32>
    %250 = vector.multi_reduction <maximumf>, %249, %cst_88 [0] : vector<6x1xf32> to vector<1xf32>
    %251 = vector.shape_cast %250 : vector<1xf32> to vector<1x1xf32>
    %252 = vector.broadcast %251 : vector<1x1xf32> to vector<6x1xf32>
    %253 = arith.subf %249, %252 : vector<6x1xf32>
    %254 = math.exp %253 : vector<6x1xf32>
    %cst_89 = arith.constant dense<0.000000e+00> : vector<1xf32>
    %255 = vector.multi_reduction <add>, %254, %cst_89 [0] : vector<6x1xf32> to vector<1xf32>
    %256 = vector.shape_cast %255 : vector<1xf32> to vector<1x1xf32>
    %257 = vector.broadcast %256 : vector<1x1xf32> to vector<6x1xf32>
    %258 = arith.divf %254, %257 : vector<6x1xf32>
    %259 = vector.broadcast %258 : vector<6x1xf32> to vector<6x96xf32>
    %260 = arith.mulf %259, %244 : vector<6x96xf32>
    %cst_90 = arith.constant dense<0.000000e+00> : vector<96xf32>
    %261 = vector.multi_reduction <add>, %260, %cst_90 [0] : vector<6x96xf32> to vector<96xf32>
    %262 = vector.shape_cast %261 : vector<96xf32> to vector<1x96xf32>
    %c0_91 = arith.constant 0 : index
    %c0_92 = arith.constant 0 : index
    %263 = vector.load %arg12[%c0_91, %c0_92] : memref<96x96xf32, #tpu.memory_space<vmem>>, vector<96x96xf32>
    %cst_93 = arith.constant dense<0.000000e+00> : vector<1x96xf32>
    %264 = tpu.matmul %262, %263, %cst_93 {dimension_numbers = #tpu.dot_dimension_numbers<[1], [0], [0], [1], [0, 0, 1, 1], [], []>} : vector<1x96xf32>, vector<96x96xf32>, vector<1x96xf32> -> vector<1x96xf32>
    %265 = vector.broadcast %264 : vector<1x96xf32> to vector<6x96xf32>
    %266 = arith.addf %244, %265 : vector<6x96xf32>
    %267 = math.tanh %266 : vector<6x96xf32>
    %c0_94 = arith.constant 0 : index
    %c0_95 = arith.constant 0 : index
    %268 = vector.load %arg13[%c0_94, %c0_95] : memref<1x96xf32, #tpu.memory_space<vmem>>, vector<1x96xf32>
    %269 = vector.broadcast %268 : vector<1x96xf32> to vector<6x96xf32>
    %270 = arith.mulf %267, %269 : vector<6x96xf32>
    %cst_96 = arith.constant dense<0.000000e+00> : vector<6xf32>
    %271 = vector.multi_reduction <add>, %270, %cst_96 [1] : vector<6x96xf32> to vector<6xf32>
    %272 = vector.shape_cast %271 : vector<6xf32> to vector<6x1xf32>
    %273 = vector.extract_strided_slice %23 {offsets = [0, 2], sizes = [6, 1], strides = [1, 1]} : vector<6x8xf32> to vector<6x1xf32>
    %cst_97 = arith.constant 5.000000e-01 : f32
    %274 = vector.broadcast %cst_97 : f32 to vector<6x1xf32>
    %275 = arith.cmpf ogt, %273, %274 : vector<6x1xf32>
    %cst_98 = arith.constant -1036.16333 : f32
    %276 = vector.broadcast %cst_98 : f32 to vector<6x1xf32>
    %277 = arith.select %275, %272, %276 : vector<6x1xi1>, vector<6x1xf32>
    %cst_99 = arith.constant dense<0xFF800000> : vector<1xf32>
    %278 = vector.multi_reduction <maximumf>, %277, %cst_99 [0] : vector<6x1xf32> to vector<1xf32>
    %279 = vector.shape_cast %278 : vector<1xf32> to vector<1x1xf32>
    %280 = vector.broadcast %279 : vector<1x1xf32> to vector<6x1xf32>
    %281 = arith.subf %277, %280 : vector<6x1xf32>
    %282 = math.exp %281 : vector<6x1xf32>
    %cst_100 = arith.constant dense<0.000000e+00> : vector<1xf32>
    %283 = vector.multi_reduction <add>, %282, %cst_100 [0] : vector<6x1xf32> to vector<1xf32>
    %284 = vector.shape_cast %283 : vector<1xf32> to vector<1x1xf32>
    %285 = vector.broadcast %284 : vector<1x1xf32> to vector<6x1xf32>
    %286 = arith.divf %282, %285 : vector<6x1xf32>
    %cst_101 = arith.constant dense<0xFF800000> : vector<1xf32>
    %287 = vector.multi_reduction <maximumf>, %286, %cst_101 [0] : vector<6x1xf32> to vector<1xf32>
    %288 = vector.shape_cast %287 : vector<1xf32> to vector<1x1xf32>
    %289 = vector.broadcast %288 : vector<1x1xf32> to vector<6x1xf32>
    %290 = arith.cmpf oge, %286, %289 : vector<6x1xf32>
    %cst_102 = arith.constant 6.000000e+00 : f32
    %291 = vector.broadcast %cst_102 : f32 to vector<6x1xf32>
    %292 = arith.select %290, %1, %291 : vector<6x1xi1>, vector<6x1xf32>
    %cst_103 = arith.constant dense<0x7F800000> : vector<1xf32>
    %293 = vector.multi_reduction <minimumf>, %292, %cst_103 [0] : vector<6x1xf32> to vector<1xf32>
    %294 = vector.shape_cast %293 : vector<1xf32> to vector<1x1xf32>
    %295 = vector.broadcast %294 : vector<1x1xf32> to vector<6x1xf32>
    %296 = arith.cmpf oeq, %1, %295 : vector<6x1xf32>
    %297 = arith.extui %296 : vector<6x1xi1> to vector<6x1xi32>
    %298 = arith.sitofp %297 : vector<6x1xi32> to vector<6x1xf32>
    %299 = vector.extract_strided_slice %21 {offsets = [2, 0], sizes = [1, 4], strides = [1, 1]} : vector<8x4xf32> to vector<1x4xf32>
    %300 = vector.broadcast %298 : vector<6x1xf32> to vector<6x4xf32>
    %301 = arith.mulf %300, %211 : vector<6x4xf32>
    %cst_104 = arith.constant dense<0.000000e+00> : vector<4xf32>
    %302 = vector.multi_reduction <add>, %301, %cst_104 [0] : vector<6x4xf32> to vector<4xf32>
    %303 = vector.shape_cast %302 : vector<4xf32> to vector<1x4xf32>
    %304 = arith.cmpf oge, %303, %299 : vector<1x4xf32>
    %305 = arith.extui %304 : vector<1x4xi1> to vector<1x4xi32>
    %306 = arith.sitofp %305 : vector<1x4xi32> to vector<1x4xf32>
    %cst_105 = arith.constant dense<0x7F800000> : vector<1xf32>
    %307 = vector.multi_reduction <minimumf>, %306, %cst_105 [1] : vector<1x4xf32> to vector<1xf32>
    %308 = vector.shape_cast %307 : vector<1xf32> to vector<1x1xf32>
    %309 = vector.broadcast %308 : vector<1x1xf32> to vector<1x4xf32>
    %310 = arith.mulf %299, %309 : vector<1x4xf32>
    %311 = vector.broadcast %298 : vector<6x1xf32> to vector<6x4xf32>
    %312 = vector.broadcast %310 : vector<1x4xf32> to vector<6x4xf32>
    %313 = arith.mulf %311, %312 : vector<6x4xf32>
    %314 = arith.subf %211, %313 : vector<6x4xf32>
    %cst_106 = arith.constant 5.000000e-01 : f32
    %315 = vector.broadcast %cst_106 : f32 to vector<1x1xf32>
    %316 = arith.cmpf ogt, %308, %315 : vector<1x1xf32>
    %cst_107 = arith.constant -1.000000e+00 : f32
    %317 = vector.broadcast %cst_107 : f32 to vector<1x1xf32>
    %318 = arith.select %316, %294, %317 : vector<1x1xi1>, vector<1x1xf32>
    %319 = vector.broadcast %308 : vector<1x1xf32> to vector<6x1xf32>
    %320 = arith.mulf %298, %319 : vector<6x1xf32>
    %321 = arith.maximumf %218, %320 : vector<6x1xf32>
    %322 = vector.broadcast %294 : vector<1x1xf32> to vector<1x6xf32>
    %323 = arith.cmpf oeq, %3, %322 : vector<1x6xf32>
    %324 = arith.extui %323 : vector<1x6xi1> to vector<1x6xi32>
    %325 = arith.sitofp %324 : vector<1x6xi32> to vector<1x6xf32>
    %326 = vector.broadcast %308 : vector<1x1xf32> to vector<1x6xf32>
    %327 = arith.mulf %325, %326 : vector<1x6xf32>
    %328 = arith.maximumf %225, %327 : vector<1x6xf32>
    %cst_108 = arith.constant 2.000000e+00 : f32
    %329 = vector.broadcast %cst_108 : f32 to vector<1x8xf32>
    %330 = arith.cmpf oeq, %5, %329 : vector<1x8xf32>
    %331 = vector.shape_cast %288 : vector<1x1xf32> to vector<1x1xf32>
    %332 = vector.broadcast %331 : vector<1x1xf32> to vector<1x8xf32>
    %333 = arith.select %330, %332, %230 : vector<1x8xi1>, vector<1x8xf32>
    %334 = vector.shape_cast %294 : vector<1x1xf32> to vector<1x1xf32>
    %335 = vector.broadcast %334 : vector<1x1xf32> to vector<1x8xf32>
    %336 = arith.select %330, %335, %233 : vector<1x8xi1>, vector<1x8xf32>
    %337 = vector.shape_cast %318 : vector<1x1xf32> to vector<1x1xf32>
    %338 = vector.broadcast %337 : vector<1x1xf32> to vector<1x8xf32>
    %339 = arith.select %330, %338, %236 : vector<1x8xi1>, vector<1x8xf32>
    %c0_109 = arith.constant 0 : index
    %c0_110 = arith.constant 0 : index
    %340 = vector.load %arg7[%c0_109, %c0_110] : memref<4x96xf32, #tpu.memory_space<vmem>>, vector<4x96xf32>
    %cst_111 = arith.constant dense<0.000000e+00> : vector<6x96xf32>
    %341 = tpu.matmul %314, %340, %cst_111 {dimension_numbers = #tpu.dot_dimension_numbers<[1], [0], [0], [1], [0, 0, 1, 1], [], []>} : vector<6x4xf32>, vector<4x96xf32>, vector<6x96xf32> -> vector<6x96xf32>
    %342 = arith.addf %12, %341 : vector<6x96xf32>
    %c0_112 = arith.constant 0 : index
    %c0_113 = arith.constant 0 : index
    %343 = vector.load %arg8[%c0_112, %c0_113] : memref<1x96xf32, #tpu.memory_space<vmem>>, vector<1x96xf32>
    %344 = vector.broadcast %321 : vector<6x1xf32> to vector<6x96xf32>
    %345 = vector.broadcast %343 : vector<1x96xf32> to vector<6x96xf32>
    %346 = arith.mulf %344, %345 : vector<6x96xf32>
    %347 = arith.addf %342, %346 : vector<6x96xf32>
    %348 = vector.extract_strided_slice %19 {offsets = [3, 0], sizes = [1, 96], strides = [1, 1]} : vector<8x96xf32> to vector<1x96xf32>
    %349 = vector.broadcast %348 : vector<1x96xf32> to vector<6x96xf32>
    %350 = arith.mulf %347, %349 : vector<6x96xf32>
    %cst_114 = arith.constant dense<0.000000e+00> : vector<6xf32>
    %351 = vector.multi_reduction <add>, %350, %cst_114 [1] : vector<6x96xf32> to vector<6xf32>
    %352 = vector.shape_cast %351 : vector<6xf32> to vector<6x1xf32>
    %cst_115 = arith.constant dense<0xFF800000> : vector<1xf32>
    %353 = vector.multi_reduction <maximumf>, %352, %cst_115 [0] : vector<6x1xf32> to vector<1xf32>
    %354 = vector.shape_cast %353 : vector<1xf32> to vector<1x1xf32>
    %355 = vector.broadcast %354 : vector<1x1xf32> to vector<6x1xf32>
    %356 = arith.subf %352, %355 : vector<6x1xf32>
    %357 = math.exp %356 : vector<6x1xf32>
    %cst_116 = arith.constant dense<0.000000e+00> : vector<1xf32>
    %358 = vector.multi_reduction <add>, %357, %cst_116 [0] : vector<6x1xf32> to vector<1xf32>
    %359 = vector.shape_cast %358 : vector<1xf32> to vector<1x1xf32>
    %360 = vector.broadcast %359 : vector<1x1xf32> to vector<6x1xf32>
    %361 = arith.divf %357, %360 : vector<6x1xf32>
    %362 = vector.broadcast %361 : vector<6x1xf32> to vector<6x96xf32>
    %363 = arith.mulf %362, %347 : vector<6x96xf32>
    %cst_117 = arith.constant dense<0.000000e+00> : vector<96xf32>
    %364 = vector.multi_reduction <add>, %363, %cst_117 [0] : vector<6x96xf32> to vector<96xf32>
    %365 = vector.shape_cast %364 : vector<96xf32> to vector<1x96xf32>
    %c0_118 = arith.constant 0 : index
    %c0_119 = arith.constant 0 : index
    %366 = vector.load %arg12[%c0_118, %c0_119] : memref<96x96xf32, #tpu.memory_space<vmem>>, vector<96x96xf32>
    %cst_120 = arith.constant dense<0.000000e+00> : vector<1x96xf32>
    %367 = tpu.matmul %365, %366, %cst_120 {dimension_numbers = #tpu.dot_dimension_numbers<[1], [0], [0], [1], [0, 0, 1, 1], [], []>} : vector<1x96xf32>, vector<96x96xf32>, vector<1x96xf32> -> vector<1x96xf32>
    %368 = vector.broadcast %367 : vector<1x96xf32> to vector<6x96xf32>
    %369 = arith.addf %347, %368 : vector<6x96xf32>
    %370 = math.tanh %369 : vector<6x96xf32>
    %c0_121 = arith.constant 0 : index
    %c0_122 = arith.constant 0 : index
    %371 = vector.load %arg13[%c0_121, %c0_122] : memref<1x96xf32, #tpu.memory_space<vmem>>, vector<1x96xf32>
    %372 = vector.broadcast %371 : vector<1x96xf32> to vector<6x96xf32>
    %373 = arith.mulf %370, %372 : vector<6x96xf32>
    %cst_123 = arith.constant dense<0.000000e+00> : vector<6xf32>
    %374 = vector.multi_reduction <add>, %373, %cst_123 [1] : vector<6x96xf32> to vector<6xf32>
    %375 = vector.shape_cast %374 : vector<6xf32> to vector<6x1xf32>
    %376 = vector.extract_strided_slice %23 {offsets = [0, 3], sizes = [6, 1], strides = [1, 1]} : vector<6x8xf32> to vector<6x1xf32>
    %cst_124 = arith.constant 5.000000e-01 : f32
    %377 = vector.broadcast %cst_124 : f32 to vector<6x1xf32>
    %378 = arith.cmpf ogt, %376, %377 : vector<6x1xf32>
    %cst_125 = arith.constant -1036.16333 : f32
    %379 = vector.broadcast %cst_125 : f32 to vector<6x1xf32>
    %380 = arith.select %378, %375, %379 : vector<6x1xi1>, vector<6x1xf32>
    %cst_126 = arith.constant dense<0xFF800000> : vector<1xf32>
    %381 = vector.multi_reduction <maximumf>, %380, %cst_126 [0] : vector<6x1xf32> to vector<1xf32>
    %382 = vector.shape_cast %381 : vector<1xf32> to vector<1x1xf32>
    %383 = vector.broadcast %382 : vector<1x1xf32> to vector<6x1xf32>
    %384 = arith.subf %380, %383 : vector<6x1xf32>
    %385 = math.exp %384 : vector<6x1xf32>
    %cst_127 = arith.constant dense<0.000000e+00> : vector<1xf32>
    %386 = vector.multi_reduction <add>, %385, %cst_127 [0] : vector<6x1xf32> to vector<1xf32>
    %387 = vector.shape_cast %386 : vector<1xf32> to vector<1x1xf32>
    %388 = vector.broadcast %387 : vector<1x1xf32> to vector<6x1xf32>
    %389 = arith.divf %385, %388 : vector<6x1xf32>
    %cst_128 = arith.constant dense<0xFF800000> : vector<1xf32>
    %390 = vector.multi_reduction <maximumf>, %389, %cst_128 [0] : vector<6x1xf32> to vector<1xf32>
    %391 = vector.shape_cast %390 : vector<1xf32> to vector<1x1xf32>
    %392 = vector.broadcast %391 : vector<1x1xf32> to vector<6x1xf32>
    %393 = arith.cmpf oge, %389, %392 : vector<6x1xf32>
    %cst_129 = arith.constant 6.000000e+00 : f32
    %394 = vector.broadcast %cst_129 : f32 to vector<6x1xf32>
    %395 = arith.select %393, %1, %394 : vector<6x1xi1>, vector<6x1xf32>
    %cst_130 = arith.constant dense<0x7F800000> : vector<1xf32>
    %396 = vector.multi_reduction <minimumf>, %395, %cst_130 [0] : vector<6x1xf32> to vector<1xf32>
    %397 = vector.shape_cast %396 : vector<1xf32> to vector<1x1xf32>
    %398 = vector.broadcast %397 : vector<1x1xf32> to vector<6x1xf32>
    %399 = arith.cmpf oeq, %1, %398 : vector<6x1xf32>
    %400 = arith.extui %399 : vector<6x1xi1> to vector<6x1xi32>
    %401 = arith.sitofp %400 : vector<6x1xi32> to vector<6x1xf32>
    %402 = vector.extract_strided_slice %21 {offsets = [3, 0], sizes = [1, 4], strides = [1, 1]} : vector<8x4xf32> to vector<1x4xf32>
    %403 = vector.broadcast %401 : vector<6x1xf32> to vector<6x4xf32>
    %404 = arith.mulf %403, %314 : vector<6x4xf32>
    %cst_131 = arith.constant dense<0.000000e+00> : vector<4xf32>
    %405 = vector.multi_reduction <add>, %404, %cst_131 [0] : vector<6x4xf32> to vector<4xf32>
    %406 = vector.shape_cast %405 : vector<4xf32> to vector<1x4xf32>
    %407 = arith.cmpf oge, %406, %402 : vector<1x4xf32>
    %408 = arith.extui %407 : vector<1x4xi1> to vector<1x4xi32>
    %409 = arith.sitofp %408 : vector<1x4xi32> to vector<1x4xf32>
    %cst_132 = arith.constant dense<0x7F800000> : vector<1xf32>
    %410 = vector.multi_reduction <minimumf>, %409, %cst_132 [1] : vector<1x4xf32> to vector<1xf32>
    %411 = vector.shape_cast %410 : vector<1xf32> to vector<1x1xf32>
    %412 = vector.broadcast %411 : vector<1x1xf32> to vector<1x4xf32>
    %413 = arith.mulf %402, %412 : vector<1x4xf32>
    %414 = vector.broadcast %401 : vector<6x1xf32> to vector<6x4xf32>
    %415 = vector.broadcast %413 : vector<1x4xf32> to vector<6x4xf32>
    %416 = arith.mulf %414, %415 : vector<6x4xf32>
    %417 = arith.subf %314, %416 : vector<6x4xf32>
    %cst_133 = arith.constant 5.000000e-01 : f32
    %418 = vector.broadcast %cst_133 : f32 to vector<1x1xf32>
    %419 = arith.cmpf ogt, %411, %418 : vector<1x1xf32>
    %cst_134 = arith.constant -1.000000e+00 : f32
    %420 = vector.broadcast %cst_134 : f32 to vector<1x1xf32>
    %421 = arith.select %419, %397, %420 : vector<1x1xi1>, vector<1x1xf32>
    %422 = vector.broadcast %411 : vector<1x1xf32> to vector<6x1xf32>
    %423 = arith.mulf %401, %422 : vector<6x1xf32>
    %424 = arith.maximumf %321, %423 : vector<6x1xf32>
    %425 = vector.broadcast %397 : vector<1x1xf32> to vector<1x6xf32>
    %426 = arith.cmpf oeq, %3, %425 : vector<1x6xf32>
    %427 = arith.extui %426 : vector<1x6xi1> to vector<1x6xi32>
    %428 = arith.sitofp %427 : vector<1x6xi32> to vector<1x6xf32>
    %429 = vector.broadcast %411 : vector<1x1xf32> to vector<1x6xf32>
    %430 = arith.mulf %428, %429 : vector<1x6xf32>
    %431 = arith.maximumf %328, %430 : vector<1x6xf32>
    %cst_135 = arith.constant 3.000000e+00 : f32
    %432 = vector.broadcast %cst_135 : f32 to vector<1x8xf32>
    %433 = arith.cmpf oeq, %5, %432 : vector<1x8xf32>
    %434 = vector.shape_cast %391 : vector<1x1xf32> to vector<1x1xf32>
    %435 = vector.broadcast %434 : vector<1x1xf32> to vector<1x8xf32>
    %436 = arith.select %433, %435, %333 : vector<1x8xi1>, vector<1x8xf32>
    %437 = vector.shape_cast %397 : vector<1x1xf32> to vector<1x1xf32>
    %438 = vector.broadcast %437 : vector<1x1xf32> to vector<1x8xf32>
    %439 = arith.select %433, %438, %336 : vector<1x8xi1>, vector<1x8xf32>
    %440 = vector.shape_cast %421 : vector<1x1xf32> to vector<1x1xf32>
    %441 = vector.broadcast %440 : vector<1x1xf32> to vector<1x8xf32>
    %442 = arith.select %433, %441, %339 : vector<1x8xi1>, vector<1x8xf32>
    %c0_136 = arith.constant 0 : index
    %c0_137 = arith.constant 0 : index
    %443 = vector.load %arg7[%c0_136, %c0_137] : memref<4x96xf32, #tpu.memory_space<vmem>>, vector<4x96xf32>
    %cst_138 = arith.constant dense<0.000000e+00> : vector<6x96xf32>
    %444 = tpu.matmul %417, %443, %cst_138 {dimension_numbers = #tpu.dot_dimension_numbers<[1], [0], [0], [1], [0, 0, 1, 1], [], []>} : vector<6x4xf32>, vector<4x96xf32>, vector<6x96xf32> -> vector<6x96xf32>
    %445 = arith.addf %12, %444 : vector<6x96xf32>
    %c0_139 = arith.constant 0 : index
    %c0_140 = arith.constant 0 : index
    %446 = vector.load %arg8[%c0_139, %c0_140] : memref<1x96xf32, #tpu.memory_space<vmem>>, vector<1x96xf32>
    %447 = vector.broadcast %424 : vector<6x1xf32> to vector<6x96xf32>
    %448 = vector.broadcast %446 : vector<1x96xf32> to vector<6x96xf32>
    %449 = arith.mulf %447, %448 : vector<6x96xf32>
    %450 = arith.addf %445, %449 : vector<6x96xf32>
    %451 = vector.extract_strided_slice %19 {offsets = [4, 0], sizes = [1, 96], strides = [1, 1]} : vector<8x96xf32> to vector<1x96xf32>
    %452 = vector.broadcast %451 : vector<1x96xf32> to vector<6x96xf32>
    %453 = arith.mulf %450, %452 : vector<6x96xf32>
    %cst_141 = arith.constant dense<0.000000e+00> : vector<6xf32>
    %454 = vector.multi_reduction <add>, %453, %cst_141 [1] : vector<6x96xf32> to vector<6xf32>
    %455 = vector.shape_cast %454 : vector<6xf32> to vector<6x1xf32>
    %cst_142 = arith.constant dense<0xFF800000> : vector<1xf32>
    %456 = vector.multi_reduction <maximumf>, %455, %cst_142 [0] : vector<6x1xf32> to vector<1xf32>
    %457 = vector.shape_cast %456 : vector<1xf32> to vector<1x1xf32>
    %458 = vector.broadcast %457 : vector<1x1xf32> to vector<6x1xf32>
    %459 = arith.subf %455, %458 : vector<6x1xf32>
    %460 = math.exp %459 : vector<6x1xf32>
    %cst_143 = arith.constant dense<0.000000e+00> : vector<1xf32>
    %461 = vector.multi_reduction <add>, %460, %cst_143 [0] : vector<6x1xf32> to vector<1xf32>
    %462 = vector.shape_cast %461 : vector<1xf32> to vector<1x1xf32>
    %463 = vector.broadcast %462 : vector<1x1xf32> to vector<6x1xf32>
    %464 = arith.divf %460, %463 : vector<6x1xf32>
    %465 = vector.broadcast %464 : vector<6x1xf32> to vector<6x96xf32>
    %466 = arith.mulf %465, %450 : vector<6x96xf32>
    %cst_144 = arith.constant dense<0.000000e+00> : vector<96xf32>
    %467 = vector.multi_reduction <add>, %466, %cst_144 [0] : vector<6x96xf32> to vector<96xf32>
    %468 = vector.shape_cast %467 : vector<96xf32> to vector<1x96xf32>
    %c0_145 = arith.constant 0 : index
    %c0_146 = arith.constant 0 : index
    %469 = vector.load %arg12[%c0_145, %c0_146] : memref<96x96xf32, #tpu.memory_space<vmem>>, vector<96x96xf32>
    %cst_147 = arith.constant dense<0.000000e+00> : vector<1x96xf32>
    %470 = tpu.matmul %468, %469, %cst_147 {dimension_numbers = #tpu.dot_dimension_numbers<[1], [0], [0], [1], [0, 0, 1, 1], [], []>} : vector<1x96xf32>, vector<96x96xf32>, vector<1x96xf32> -> vector<1x96xf32>
    %471 = vector.broadcast %470 : vector<1x96xf32> to vector<6x96xf32>
    %472 = arith.addf %450, %471 : vector<6x96xf32>
    %473 = math.tanh %472 : vector<6x96xf32>
    %c0_148 = arith.constant 0 : index
    %c0_149 = arith.constant 0 : index
    %474 = vector.load %arg13[%c0_148, %c0_149] : memref<1x96xf32, #tpu.memory_space<vmem>>, vector<1x96xf32>
    %475 = vector.broadcast %474 : vector<1x96xf32> to vector<6x96xf32>
    %476 = arith.mulf %473, %475 : vector<6x96xf32>
    %cst_150 = arith.constant dense<0.000000e+00> : vector<6xf32>
    %477 = vector.multi_reduction <add>, %476, %cst_150 [1] : vector<6x96xf32> to vector<6xf32>
    %478 = vector.shape_cast %477 : vector<6xf32> to vector<6x1xf32>
    %479 = vector.extract_strided_slice %23 {offsets = [0, 4], sizes = [6, 1], strides = [1, 1]} : vector<6x8xf32> to vector<6x1xf32>
    %cst_151 = arith.constant 5.000000e-01 : f32
    %480 = vector.broadcast %cst_151 : f32 to vector<6x1xf32>
    %481 = arith.cmpf ogt, %479, %480 : vector<6x1xf32>
    %cst_152 = arith.constant -1036.16333 : f32
    %482 = vector.broadcast %cst_152 : f32 to vector<6x1xf32>
    %483 = arith.select %481, %478, %482 : vector<6x1xi1>, vector<6x1xf32>
    %cst_153 = arith.constant dense<0xFF800000> : vector<1xf32>
    %484 = vector.multi_reduction <maximumf>, %483, %cst_153 [0] : vector<6x1xf32> to vector<1xf32>
    %485 = vector.shape_cast %484 : vector<1xf32> to vector<1x1xf32>
    %486 = vector.broadcast %485 : vector<1x1xf32> to vector<6x1xf32>
    %487 = arith.subf %483, %486 : vector<6x1xf32>
    %488 = math.exp %487 : vector<6x1xf32>
    %cst_154 = arith.constant dense<0.000000e+00> : vector<1xf32>
    %489 = vector.multi_reduction <add>, %488, %cst_154 [0] : vector<6x1xf32> to vector<1xf32>
    %490 = vector.shape_cast %489 : vector<1xf32> to vector<1x1xf32>
    %491 = vector.broadcast %490 : vector<1x1xf32> to vector<6x1xf32>
    %492 = arith.divf %488, %491 : vector<6x1xf32>
    %cst_155 = arith.constant dense<0xFF800000> : vector<1xf32>
    %493 = vector.multi_reduction <maximumf>, %492, %cst_155 [0] : vector<6x1xf32> to vector<1xf32>
    %494 = vector.shape_cast %493 : vector<1xf32> to vector<1x1xf32>
    %495 = vector.broadcast %494 : vector<1x1xf32> to vector<6x1xf32>
    %496 = arith.cmpf oge, %492, %495 : vector<6x1xf32>
    %cst_156 = arith.constant 6.000000e+00 : f32
    %497 = vector.broadcast %cst_156 : f32 to vector<6x1xf32>
    %498 = arith.select %496, %1, %497 : vector<6x1xi1>, vector<6x1xf32>
    %cst_157 = arith.constant dense<0x7F800000> : vector<1xf32>
    %499 = vector.multi_reduction <minimumf>, %498, %cst_157 [0] : vector<6x1xf32> to vector<1xf32>
    %500 = vector.shape_cast %499 : vector<1xf32> to vector<1x1xf32>
    %501 = vector.broadcast %500 : vector<1x1xf32> to vector<6x1xf32>
    %502 = arith.cmpf oeq, %1, %501 : vector<6x1xf32>
    %503 = arith.extui %502 : vector<6x1xi1> to vector<6x1xi32>
    %504 = arith.sitofp %503 : vector<6x1xi32> to vector<6x1xf32>
    %505 = vector.extract_strided_slice %21 {offsets = [4, 0], sizes = [1, 4], strides = [1, 1]} : vector<8x4xf32> to vector<1x4xf32>
    %506 = vector.broadcast %504 : vector<6x1xf32> to vector<6x4xf32>
    %507 = arith.mulf %506, %417 : vector<6x4xf32>
    %cst_158 = arith.constant dense<0.000000e+00> : vector<4xf32>
    %508 = vector.multi_reduction <add>, %507, %cst_158 [0] : vector<6x4xf32> to vector<4xf32>
    %509 = vector.shape_cast %508 : vector<4xf32> to vector<1x4xf32>
    %510 = arith.cmpf oge, %509, %505 : vector<1x4xf32>
    %511 = arith.extui %510 : vector<1x4xi1> to vector<1x4xi32>
    %512 = arith.sitofp %511 : vector<1x4xi32> to vector<1x4xf32>
    %cst_159 = arith.constant dense<0x7F800000> : vector<1xf32>
    %513 = vector.multi_reduction <minimumf>, %512, %cst_159 [1] : vector<1x4xf32> to vector<1xf32>
    %514 = vector.shape_cast %513 : vector<1xf32> to vector<1x1xf32>
    %515 = vector.broadcast %514 : vector<1x1xf32> to vector<1x4xf32>
    %516 = arith.mulf %505, %515 : vector<1x4xf32>
    %517 = vector.broadcast %504 : vector<6x1xf32> to vector<6x4xf32>
    %518 = vector.broadcast %516 : vector<1x4xf32> to vector<6x4xf32>
    %519 = arith.mulf %517, %518 : vector<6x4xf32>
    %520 = arith.subf %417, %519 : vector<6x4xf32>
    %cst_160 = arith.constant 5.000000e-01 : f32
    %521 = vector.broadcast %cst_160 : f32 to vector<1x1xf32>
    %522 = arith.cmpf ogt, %514, %521 : vector<1x1xf32>
    %cst_161 = arith.constant -1.000000e+00 : f32
    %523 = vector.broadcast %cst_161 : f32 to vector<1x1xf32>
    %524 = arith.select %522, %500, %523 : vector<1x1xi1>, vector<1x1xf32>
    %525 = vector.broadcast %514 : vector<1x1xf32> to vector<6x1xf32>
    %526 = arith.mulf %504, %525 : vector<6x1xf32>
    %527 = arith.maximumf %424, %526 : vector<6x1xf32>
    %528 = vector.broadcast %500 : vector<1x1xf32> to vector<1x6xf32>
    %529 = arith.cmpf oeq, %3, %528 : vector<1x6xf32>
    %530 = arith.extui %529 : vector<1x6xi1> to vector<1x6xi32>
    %531 = arith.sitofp %530 : vector<1x6xi32> to vector<1x6xf32>
    %532 = vector.broadcast %514 : vector<1x1xf32> to vector<1x6xf32>
    %533 = arith.mulf %531, %532 : vector<1x6xf32>
    %534 = arith.maximumf %431, %533 : vector<1x6xf32>
    %cst_162 = arith.constant 4.000000e+00 : f32
    %535 = vector.broadcast %cst_162 : f32 to vector<1x8xf32>
    %536 = arith.cmpf oeq, %5, %535 : vector<1x8xf32>
    %537 = vector.shape_cast %494 : vector<1x1xf32> to vector<1x1xf32>
    %538 = vector.broadcast %537 : vector<1x1xf32> to vector<1x8xf32>
    %539 = arith.select %536, %538, %436 : vector<1x8xi1>, vector<1x8xf32>
    %540 = vector.shape_cast %500 : vector<1x1xf32> to vector<1x1xf32>
    %541 = vector.broadcast %540 : vector<1x1xf32> to vector<1x8xf32>
    %542 = arith.select %536, %541, %439 : vector<1x8xi1>, vector<1x8xf32>
    %543 = vector.shape_cast %524 : vector<1x1xf32> to vector<1x1xf32>
    %544 = vector.broadcast %543 : vector<1x1xf32> to vector<1x8xf32>
    %545 = arith.select %536, %544, %442 : vector<1x8xi1>, vector<1x8xf32>
    %c0_163 = arith.constant 0 : index
    %c0_164 = arith.constant 0 : index
    %546 = vector.load %arg7[%c0_163, %c0_164] : memref<4x96xf32, #tpu.memory_space<vmem>>, vector<4x96xf32>
    %cst_165 = arith.constant dense<0.000000e+00> : vector<6x96xf32>
    %547 = tpu.matmul %520, %546, %cst_165 {dimension_numbers = #tpu.dot_dimension_numbers<[1], [0], [0], [1], [0, 0, 1, 1], [], []>} : vector<6x4xf32>, vector<4x96xf32>, vector<6x96xf32> -> vector<6x96xf32>
    %548 = arith.addf %12, %547 : vector<6x96xf32>
    %c0_166 = arith.constant 0 : index
    %c0_167 = arith.constant 0 : index
    %549 = vector.load %arg8[%c0_166, %c0_167] : memref<1x96xf32, #tpu.memory_space<vmem>>, vector<1x96xf32>
    %550 = vector.broadcast %527 : vector<6x1xf32> to vector<6x96xf32>
    %551 = vector.broadcast %549 : vector<1x96xf32> to vector<6x96xf32>
    %552 = arith.mulf %550, %551 : vector<6x96xf32>
    %553 = arith.addf %548, %552 : vector<6x96xf32>
    %554 = vector.extract_strided_slice %19 {offsets = [5, 0], sizes = [1, 96], strides = [1, 1]} : vector<8x96xf32> to vector<1x96xf32>
    %555 = vector.broadcast %554 : vector<1x96xf32> to vector<6x96xf32>
    %556 = arith.mulf %553, %555 : vector<6x96xf32>
    %cst_168 = arith.constant dense<0.000000e+00> : vector<6xf32>
    %557 = vector.multi_reduction <add>, %556, %cst_168 [1] : vector<6x96xf32> to vector<6xf32>
    %558 = vector.shape_cast %557 : vector<6xf32> to vector<6x1xf32>
    %cst_169 = arith.constant dense<0xFF800000> : vector<1xf32>
    %559 = vector.multi_reduction <maximumf>, %558, %cst_169 [0] : vector<6x1xf32> to vector<1xf32>
    %560 = vector.shape_cast %559 : vector<1xf32> to vector<1x1xf32>
    %561 = vector.broadcast %560 : vector<1x1xf32> to vector<6x1xf32>
    %562 = arith.subf %558, %561 : vector<6x1xf32>
    %563 = math.exp %562 : vector<6x1xf32>
    %cst_170 = arith.constant dense<0.000000e+00> : vector<1xf32>
    %564 = vector.multi_reduction <add>, %563, %cst_170 [0] : vector<6x1xf32> to vector<1xf32>
    %565 = vector.shape_cast %564 : vector<1xf32> to vector<1x1xf32>
    %566 = vector.broadcast %565 : vector<1x1xf32> to vector<6x1xf32>
    %567 = arith.divf %563, %566 : vector<6x1xf32>
    %568 = vector.broadcast %567 : vector<6x1xf32> to vector<6x96xf32>
    %569 = arith.mulf %568, %553 : vector<6x96xf32>
    %cst_171 = arith.constant dense<0.000000e+00> : vector<96xf32>
    %570 = vector.multi_reduction <add>, %569, %cst_171 [0] : vector<6x96xf32> to vector<96xf32>
    %571 = vector.shape_cast %570 : vector<96xf32> to vector<1x96xf32>
    %c0_172 = arith.constant 0 : index
    %c0_173 = arith.constant 0 : index
    %572 = vector.load %arg12[%c0_172, %c0_173] : memref<96x96xf32, #tpu.memory_space<vmem>>, vector<96x96xf32>
    %cst_174 = arith.constant dense<0.000000e+00> : vector<1x96xf32>
    %573 = tpu.matmul %571, %572, %cst_174 {dimension_numbers = #tpu.dot_dimension_numbers<[1], [0], [0], [1], [0, 0, 1, 1], [], []>} : vector<1x96xf32>, vector<96x96xf32>, vector<1x96xf32> -> vector<1x96xf32>
    %574 = vector.broadcast %573 : vector<1x96xf32> to vector<6x96xf32>
    %575 = arith.addf %553, %574 : vector<6x96xf32>
    %576 = math.tanh %575 : vector<6x96xf32>
    %c0_175 = arith.constant 0 : index
    %c0_176 = arith.constant 0 : index
    %577 = vector.load %arg13[%c0_175, %c0_176] : memref<1x96xf32, #tpu.memory_space<vmem>>, vector<1x96xf32>
    %578 = vector.broadcast %577 : vector<1x96xf32> to vector<6x96xf32>
    %579 = arith.mulf %576, %578 : vector<6x96xf32>
    %cst_177 = arith.constant dense<0.000000e+00> : vector<6xf32>
    %580 = vector.multi_reduction <add>, %579, %cst_177 [1] : vector<6x96xf32> to vector<6xf32>
    %581 = vector.shape_cast %580 : vector<6xf32> to vector<6x1xf32>
    %582 = vector.extract_strided_slice %23 {offsets = [0, 5], sizes = [6, 1], strides = [1, 1]} : vector<6x8xf32> to vector<6x1xf32>
    %cst_178 = arith.constant 5.000000e-01 : f32
    %583 = vector.broadcast %cst_178 : f32 to vector<6x1xf32>
    %584 = arith.cmpf ogt, %582, %583 : vector<6x1xf32>
    %cst_179 = arith.constant -1036.16333 : f32
    %585 = vector.broadcast %cst_179 : f32 to vector<6x1xf32>
    %586 = arith.select %584, %581, %585 : vector<6x1xi1>, vector<6x1xf32>
    %cst_180 = arith.constant dense<0xFF800000> : vector<1xf32>
    %587 = vector.multi_reduction <maximumf>, %586, %cst_180 [0] : vector<6x1xf32> to vector<1xf32>
    %588 = vector.shape_cast %587 : vector<1xf32> to vector<1x1xf32>
    %589 = vector.broadcast %588 : vector<1x1xf32> to vector<6x1xf32>
    %590 = arith.subf %586, %589 : vector<6x1xf32>
    %591 = math.exp %590 : vector<6x1xf32>
    %cst_181 = arith.constant dense<0.000000e+00> : vector<1xf32>
    %592 = vector.multi_reduction <add>, %591, %cst_181 [0] : vector<6x1xf32> to vector<1xf32>
    %593 = vector.shape_cast %592 : vector<1xf32> to vector<1x1xf32>
    %594 = vector.broadcast %593 : vector<1x1xf32> to vector<6x1xf32>
    %595 = arith.divf %591, %594 : vector<6x1xf32>
    %cst_182 = arith.constant dense<0xFF800000> : vector<1xf32>
    %596 = vector.multi_reduction <maximumf>, %595, %cst_182 [0] : vector<6x1xf32> to vector<1xf32>
    %597 = vector.shape_cast %596 : vector<1xf32> to vector<1x1xf32>
    %598 = vector.broadcast %597 : vector<1x1xf32> to vector<6x1xf32>
    %599 = arith.cmpf oge, %595, %598 : vector<6x1xf32>
    %cst_183 = arith.constant 6.000000e+00 : f32
    %600 = vector.broadcast %cst_183 : f32 to vector<6x1xf32>
    %601 = arith.select %599, %1, %600 : vector<6x1xi1>, vector<6x1xf32>
    %cst_184 = arith.constant dense<0x7F800000> : vector<1xf32>
    %602 = vector.multi_reduction <minimumf>, %601, %cst_184 [0] : vector<6x1xf32> to vector<1xf32>
    %603 = vector.shape_cast %602 : vector<1xf32> to vector<1x1xf32>
    %604 = vector.broadcast %603 : vector<1x1xf32> to vector<6x1xf32>
    %605 = arith.cmpf oeq, %1, %604 : vector<6x1xf32>
    %606 = arith.extui %605 : vector<6x1xi1> to vector<6x1xi32>
    %607 = arith.sitofp %606 : vector<6x1xi32> to vector<6x1xf32>
    %608 = vector.extract_strided_slice %21 {offsets = [5, 0], sizes = [1, 4], strides = [1, 1]} : vector<8x4xf32> to vector<1x4xf32>
    %609 = vector.broadcast %607 : vector<6x1xf32> to vector<6x4xf32>
    %610 = arith.mulf %609, %520 : vector<6x4xf32>
    %cst_185 = arith.constant dense<0.000000e+00> : vector<4xf32>
    %611 = vector.multi_reduction <add>, %610, %cst_185 [0] : vector<6x4xf32> to vector<4xf32>
    %612 = vector.shape_cast %611 : vector<4xf32> to vector<1x4xf32>
    %613 = arith.cmpf oge, %612, %608 : vector<1x4xf32>
    %614 = arith.extui %613 : vector<1x4xi1> to vector<1x4xi32>
    %615 = arith.sitofp %614 : vector<1x4xi32> to vector<1x4xf32>
    %cst_186 = arith.constant dense<0x7F800000> : vector<1xf32>
    %616 = vector.multi_reduction <minimumf>, %615, %cst_186 [1] : vector<1x4xf32> to vector<1xf32>
    %617 = vector.shape_cast %616 : vector<1xf32> to vector<1x1xf32>
    %618 = vector.broadcast %617 : vector<1x1xf32> to vector<1x4xf32>
    %619 = arith.mulf %608, %618 : vector<1x4xf32>
    %620 = vector.broadcast %607 : vector<6x1xf32> to vector<6x4xf32>
    %621 = vector.broadcast %619 : vector<1x4xf32> to vector<6x4xf32>
    %622 = arith.mulf %620, %621 : vector<6x4xf32>
    %623 = arith.subf %520, %622 : vector<6x4xf32>
    %cst_187 = arith.constant 5.000000e-01 : f32
    %624 = vector.broadcast %cst_187 : f32 to vector<1x1xf32>
    %625 = arith.cmpf ogt, %617, %624 : vector<1x1xf32>
    %cst_188 = arith.constant -1.000000e+00 : f32
    %626 = vector.broadcast %cst_188 : f32 to vector<1x1xf32>
    %627 = arith.select %625, %603, %626 : vector<1x1xi1>, vector<1x1xf32>
    %628 = vector.broadcast %617 : vector<1x1xf32> to vector<6x1xf32>
    %629 = arith.mulf %607, %628 : vector<6x1xf32>
    %630 = arith.maximumf %527, %629 : vector<6x1xf32>
    %631 = vector.broadcast %603 : vector<1x1xf32> to vector<1x6xf32>
    %632 = arith.cmpf oeq, %3, %631 : vector<1x6xf32>
    %633 = arith.extui %632 : vector<1x6xi1> to vector<1x6xi32>
    %634 = arith.sitofp %633 : vector<1x6xi32> to vector<1x6xf32>
    %635 = vector.broadcast %617 : vector<1x1xf32> to vector<1x6xf32>
    %636 = arith.mulf %634, %635 : vector<1x6xf32>
    %637 = arith.maximumf %534, %636 : vector<1x6xf32>
    %cst_189 = arith.constant 5.000000e+00 : f32
    %638 = vector.broadcast %cst_189 : f32 to vector<1x8xf32>
    %639 = arith.cmpf oeq, %5, %638 : vector<1x8xf32>
    %640 = vector.shape_cast %597 : vector<1x1xf32> to vector<1x1xf32>
    %641 = vector.broadcast %640 : vector<1x1xf32> to vector<1x8xf32>
    %642 = arith.select %639, %641, %539 : vector<1x8xi1>, vector<1x8xf32>
    %643 = vector.shape_cast %603 : vector<1x1xf32> to vector<1x1xf32>
    %644 = vector.broadcast %643 : vector<1x1xf32> to vector<1x8xf32>
    %645 = arith.select %639, %644, %542 : vector<1x8xi1>, vector<1x8xf32>
    %646 = vector.shape_cast %627 : vector<1x1xf32> to vector<1x1xf32>
    %647 = vector.broadcast %646 : vector<1x1xf32> to vector<1x8xf32>
    %648 = arith.select %639, %647, %545 : vector<1x8xi1>, vector<1x8xf32>
    %c0_190 = arith.constant 0 : index
    %c0_191 = arith.constant 0 : index
    %649 = vector.load %arg7[%c0_190, %c0_191] : memref<4x96xf32, #tpu.memory_space<vmem>>, vector<4x96xf32>
    %cst_192 = arith.constant dense<0.000000e+00> : vector<6x96xf32>
    %650 = tpu.matmul %623, %649, %cst_192 {dimension_numbers = #tpu.dot_dimension_numbers<[1], [0], [0], [1], [0, 0, 1, 1], [], []>} : vector<6x4xf32>, vector<4x96xf32>, vector<6x96xf32> -> vector<6x96xf32>
    %651 = arith.addf %12, %650 : vector<6x96xf32>
    %c0_193 = arith.constant 0 : index
    %c0_194 = arith.constant 0 : index
    %652 = vector.load %arg8[%c0_193, %c0_194] : memref<1x96xf32, #tpu.memory_space<vmem>>, vector<1x96xf32>
    %653 = vector.broadcast %630 : vector<6x1xf32> to vector<6x96xf32>
    %654 = vector.broadcast %652 : vector<1x96xf32> to vector<6x96xf32>
    %655 = arith.mulf %653, %654 : vector<6x96xf32>
    %656 = arith.addf %651, %655 : vector<6x96xf32>
    %657 = vector.extract_strided_slice %19 {offsets = [6, 0], sizes = [1, 96], strides = [1, 1]} : vector<8x96xf32> to vector<1x96xf32>
    %658 = vector.broadcast %657 : vector<1x96xf32> to vector<6x96xf32>
    %659 = arith.mulf %656, %658 : vector<6x96xf32>
    %cst_195 = arith.constant dense<0.000000e+00> : vector<6xf32>
    %660 = vector.multi_reduction <add>, %659, %cst_195 [1] : vector<6x96xf32> to vector<6xf32>
    %661 = vector.shape_cast %660 : vector<6xf32> to vector<6x1xf32>
    %cst_196 = arith.constant dense<0xFF800000> : vector<1xf32>
    %662 = vector.multi_reduction <maximumf>, %661, %cst_196 [0] : vector<6x1xf32> to vector<1xf32>
    %663 = vector.shape_cast %662 : vector<1xf32> to vector<1x1xf32>
    %664 = vector.broadcast %663 : vector<1x1xf32> to vector<6x1xf32>
    %665 = arith.subf %661, %664 : vector<6x1xf32>
    %666 = math.exp %665 : vector<6x1xf32>
    %cst_197 = arith.constant dense<0.000000e+00> : vector<1xf32>
    %667 = vector.multi_reduction <add>, %666, %cst_197 [0] : vector<6x1xf32> to vector<1xf32>
    %668 = vector.shape_cast %667 : vector<1xf32> to vector<1x1xf32>
    %669 = vector.broadcast %668 : vector<1x1xf32> to vector<6x1xf32>
    %670 = arith.divf %666, %669 : vector<6x1xf32>
    %671 = vector.broadcast %670 : vector<6x1xf32> to vector<6x96xf32>
    %672 = arith.mulf %671, %656 : vector<6x96xf32>
    %cst_198 = arith.constant dense<0.000000e+00> : vector<96xf32>
    %673 = vector.multi_reduction <add>, %672, %cst_198 [0] : vector<6x96xf32> to vector<96xf32>
    %674 = vector.shape_cast %673 : vector<96xf32> to vector<1x96xf32>
    %c0_199 = arith.constant 0 : index
    %c0_200 = arith.constant 0 : index
    %675 = vector.load %arg12[%c0_199, %c0_200] : memref<96x96xf32, #tpu.memory_space<vmem>>, vector<96x96xf32>
    %cst_201 = arith.constant dense<0.000000e+00> : vector<1x96xf32>
    %676 = tpu.matmul %674, %675, %cst_201 {dimension_numbers = #tpu.dot_dimension_numbers<[1], [0], [0], [1], [0, 0, 1, 1], [], []>} : vector<1x96xf32>, vector<96x96xf32>, vector<1x96xf32> -> vector<1x96xf32>
    %677 = vector.broadcast %676 : vector<1x96xf32> to vector<6x96xf32>
    %678 = arith.addf %656, %677 : vector<6x96xf32>
    %679 = math.tanh %678 : vector<6x96xf32>
    %c0_202 = arith.constant 0 : index
    %c0_203 = arith.constant 0 : index
    %680 = vector.load %arg13[%c0_202, %c0_203] : memref<1x96xf32, #tpu.memory_space<vmem>>, vector<1x96xf32>
    %681 = vector.broadcast %680 : vector<1x96xf32> to vector<6x96xf32>
    %682 = arith.mulf %679, %681 : vector<6x96xf32>
    %cst_204 = arith.constant dense<0.000000e+00> : vector<6xf32>
    %683 = vector.multi_reduction <add>, %682, %cst_204 [1] : vector<6x96xf32> to vector<6xf32>
    %684 = vector.shape_cast %683 : vector<6xf32> to vector<6x1xf32>
    %685 = vector.extract_strided_slice %23 {offsets = [0, 6], sizes = [6, 1], strides = [1, 1]} : vector<6x8xf32> to vector<6x1xf32>
    %cst_205 = arith.constant 5.000000e-01 : f32
    %686 = vector.broadcast %cst_205 : f32 to vector<6x1xf32>
    %687 = arith.cmpf ogt, %685, %686 : vector<6x1xf32>
    %cst_206 = arith.constant -1036.16333 : f32
    %688 = vector.broadcast %cst_206 : f32 to vector<6x1xf32>
    %689 = arith.select %687, %684, %688 : vector<6x1xi1>, vector<6x1xf32>
    %cst_207 = arith.constant dense<0xFF800000> : vector<1xf32>
    %690 = vector.multi_reduction <maximumf>, %689, %cst_207 [0] : vector<6x1xf32> to vector<1xf32>
    %691 = vector.shape_cast %690 : vector<1xf32> to vector<1x1xf32>
    %692 = vector.broadcast %691 : vector<1x1xf32> to vector<6x1xf32>
    %693 = arith.subf %689, %692 : vector<6x1xf32>
    %694 = math.exp %693 : vector<6x1xf32>
    %cst_208 = arith.constant dense<0.000000e+00> : vector<1xf32>
    %695 = vector.multi_reduction <add>, %694, %cst_208 [0] : vector<6x1xf32> to vector<1xf32>
    %696 = vector.shape_cast %695 : vector<1xf32> to vector<1x1xf32>
    %697 = vector.broadcast %696 : vector<1x1xf32> to vector<6x1xf32>
    %698 = arith.divf %694, %697 : vector<6x1xf32>
    %cst_209 = arith.constant dense<0xFF800000> : vector<1xf32>
    %699 = vector.multi_reduction <maximumf>, %698, %cst_209 [0] : vector<6x1xf32> to vector<1xf32>
    %700 = vector.shape_cast %699 : vector<1xf32> to vector<1x1xf32>
    %701 = vector.broadcast %700 : vector<1x1xf32> to vector<6x1xf32>
    %702 = arith.cmpf oge, %698, %701 : vector<6x1xf32>
    %cst_210 = arith.constant 6.000000e+00 : f32
    %703 = vector.broadcast %cst_210 : f32 to vector<6x1xf32>
    %704 = arith.select %702, %1, %703 : vector<6x1xi1>, vector<6x1xf32>
    %cst_211 = arith.constant dense<0x7F800000> : vector<1xf32>
    %705 = vector.multi_reduction <minimumf>, %704, %cst_211 [0] : vector<6x1xf32> to vector<1xf32>
    %706 = vector.shape_cast %705 : vector<1xf32> to vector<1x1xf32>
    %707 = vector.broadcast %706 : vector<1x1xf32> to vector<6x1xf32>
    %708 = arith.cmpf oeq, %1, %707 : vector<6x1xf32>
    %709 = arith.extui %708 : vector<6x1xi1> to vector<6x1xi32>
    %710 = arith.sitofp %709 : vector<6x1xi32> to vector<6x1xf32>
    %711 = vector.extract_strided_slice %21 {offsets = [6, 0], sizes = [1, 4], strides = [1, 1]} : vector<8x4xf32> to vector<1x4xf32>
    %712 = vector.broadcast %710 : vector<6x1xf32> to vector<6x4xf32>
    %713 = arith.mulf %712, %623 : vector<6x4xf32>
    %cst_212 = arith.constant dense<0.000000e+00> : vector<4xf32>
    %714 = vector.multi_reduction <add>, %713, %cst_212 [0] : vector<6x4xf32> to vector<4xf32>
    %715 = vector.shape_cast %714 : vector<4xf32> to vector<1x4xf32>
    %716 = arith.cmpf oge, %715, %711 : vector<1x4xf32>
    %717 = arith.extui %716 : vector<1x4xi1> to vector<1x4xi32>
    %718 = arith.sitofp %717 : vector<1x4xi32> to vector<1x4xf32>
    %cst_213 = arith.constant dense<0x7F800000> : vector<1xf32>
    %719 = vector.multi_reduction <minimumf>, %718, %cst_213 [1] : vector<1x4xf32> to vector<1xf32>
    %720 = vector.shape_cast %719 : vector<1xf32> to vector<1x1xf32>
    %721 = vector.broadcast %720 : vector<1x1xf32> to vector<1x4xf32>
    %722 = arith.mulf %711, %721 : vector<1x4xf32>
    %723 = vector.broadcast %710 : vector<6x1xf32> to vector<6x4xf32>
    %724 = vector.broadcast %722 : vector<1x4xf32> to vector<6x4xf32>
    %725 = arith.mulf %723, %724 : vector<6x4xf32>
    %726 = arith.subf %623, %725 : vector<6x4xf32>
    %cst_214 = arith.constant 5.000000e-01 : f32
    %727 = vector.broadcast %cst_214 : f32 to vector<1x1xf32>
    %728 = arith.cmpf ogt, %720, %727 : vector<1x1xf32>
    %cst_215 = arith.constant -1.000000e+00 : f32
    %729 = vector.broadcast %cst_215 : f32 to vector<1x1xf32>
    %730 = arith.select %728, %706, %729 : vector<1x1xi1>, vector<1x1xf32>
    %731 = vector.broadcast %720 : vector<1x1xf32> to vector<6x1xf32>
    %732 = arith.mulf %710, %731 : vector<6x1xf32>
    %733 = arith.maximumf %630, %732 : vector<6x1xf32>
    %734 = vector.broadcast %706 : vector<1x1xf32> to vector<1x6xf32>
    %735 = arith.cmpf oeq, %3, %734 : vector<1x6xf32>
    %736 = arith.extui %735 : vector<1x6xi1> to vector<1x6xi32>
    %737 = arith.sitofp %736 : vector<1x6xi32> to vector<1x6xf32>
    %738 = vector.broadcast %720 : vector<1x1xf32> to vector<1x6xf32>
    %739 = arith.mulf %737, %738 : vector<1x6xf32>
    %740 = arith.maximumf %637, %739 : vector<1x6xf32>
    %cst_216 = arith.constant 6.000000e+00 : f32
    %741 = vector.broadcast %cst_216 : f32 to vector<1x8xf32>
    %742 = arith.cmpf oeq, %5, %741 : vector<1x8xf32>
    %743 = vector.shape_cast %700 : vector<1x1xf32> to vector<1x1xf32>
    %744 = vector.broadcast %743 : vector<1x1xf32> to vector<1x8xf32>
    %745 = arith.select %742, %744, %642 : vector<1x8xi1>, vector<1x8xf32>
    %746 = vector.shape_cast %706 : vector<1x1xf32> to vector<1x1xf32>
    %747 = vector.broadcast %746 : vector<1x1xf32> to vector<1x8xf32>
    %748 = arith.select %742, %747, %645 : vector<1x8xi1>, vector<1x8xf32>
    %749 = vector.shape_cast %730 : vector<1x1xf32> to vector<1x1xf32>
    %750 = vector.broadcast %749 : vector<1x1xf32> to vector<1x8xf32>
    %751 = arith.select %742, %750, %648 : vector<1x8xi1>, vector<1x8xf32>
    %c0_217 = arith.constant 0 : index
    %c0_218 = arith.constant 0 : index
    %752 = vector.load %arg7[%c0_217, %c0_218] : memref<4x96xf32, #tpu.memory_space<vmem>>, vector<4x96xf32>
    %cst_219 = arith.constant dense<0.000000e+00> : vector<6x96xf32>
    %753 = tpu.matmul %726, %752, %cst_219 {dimension_numbers = #tpu.dot_dimension_numbers<[1], [0], [0], [1], [0, 0, 1, 1], [], []>} : vector<6x4xf32>, vector<4x96xf32>, vector<6x96xf32> -> vector<6x96xf32>
    %754 = arith.addf %12, %753 : vector<6x96xf32>
    %c0_220 = arith.constant 0 : index
    %c0_221 = arith.constant 0 : index
    %755 = vector.load %arg8[%c0_220, %c0_221] : memref<1x96xf32, #tpu.memory_space<vmem>>, vector<1x96xf32>
    %756 = vector.broadcast %733 : vector<6x1xf32> to vector<6x96xf32>
    %757 = vector.broadcast %755 : vector<1x96xf32> to vector<6x96xf32>
    %758 = arith.mulf %756, %757 : vector<6x96xf32>
    %759 = arith.addf %754, %758 : vector<6x96xf32>
    %760 = vector.extract_strided_slice %19 {offsets = [7, 0], sizes = [1, 96], strides = [1, 1]} : vector<8x96xf32> to vector<1x96xf32>
    %761 = vector.broadcast %760 : vector<1x96xf32> to vector<6x96xf32>
    %762 = arith.mulf %759, %761 : vector<6x96xf32>
    %cst_222 = arith.constant dense<0.000000e+00> : vector<6xf32>
    %763 = vector.multi_reduction <add>, %762, %cst_222 [1] : vector<6x96xf32> to vector<6xf32>
    %764 = vector.shape_cast %763 : vector<6xf32> to vector<6x1xf32>
    %cst_223 = arith.constant dense<0xFF800000> : vector<1xf32>
    %765 = vector.multi_reduction <maximumf>, %764, %cst_223 [0] : vector<6x1xf32> to vector<1xf32>
    %766 = vector.shape_cast %765 : vector<1xf32> to vector<1x1xf32>
    %767 = vector.broadcast %766 : vector<1x1xf32> to vector<6x1xf32>
    %768 = arith.subf %764, %767 : vector<6x1xf32>
    %769 = math.exp %768 : vector<6x1xf32>
    %cst_224 = arith.constant dense<0.000000e+00> : vector<1xf32>
    %770 = vector.multi_reduction <add>, %769, %cst_224 [0] : vector<6x1xf32> to vector<1xf32>
    %771 = vector.shape_cast %770 : vector<1xf32> to vector<1x1xf32>
    %772 = vector.broadcast %771 : vector<1x1xf32> to vector<6x1xf32>
    %773 = arith.divf %769, %772 : vector<6x1xf32>
    %774 = vector.broadcast %773 : vector<6x1xf32> to vector<6x96xf32>
    %775 = arith.mulf %774, %759 : vector<6x96xf32>
    %cst_225 = arith.constant dense<0.000000e+00> : vector<96xf32>
    %776 = vector.multi_reduction <add>, %775, %cst_225 [0] : vector<6x96xf32> to vector<96xf32>
    %777 = vector.shape_cast %776 : vector<96xf32> to vector<1x96xf32>
    %c0_226 = arith.constant 0 : index
    %c0_227 = arith.constant 0 : index
    %778 = vector.load %arg12[%c0_226, %c0_227] : memref<96x96xf32, #tpu.memory_space<vmem>>, vector<96x96xf32>
    %cst_228 = arith.constant dense<0.000000e+00> : vector<1x96xf32>
    %779 = tpu.matmul %777, %778, %cst_228 {dimension_numbers = #tpu.dot_dimension_numbers<[1], [0], [0], [1], [0, 0, 1, 1], [], []>} : vector<1x96xf32>, vector<96x96xf32>, vector<1x96xf32> -> vector<1x96xf32>
    %780 = vector.broadcast %779 : vector<1x96xf32> to vector<6x96xf32>
    %781 = arith.addf %759, %780 : vector<6x96xf32>
    %782 = math.tanh %781 : vector<6x96xf32>
    %c0_229 = arith.constant 0 : index
    %c0_230 = arith.constant 0 : index
    %783 = vector.load %arg13[%c0_229, %c0_230] : memref<1x96xf32, #tpu.memory_space<vmem>>, vector<1x96xf32>
    %784 = vector.broadcast %783 : vector<1x96xf32> to vector<6x96xf32>
    %785 = arith.mulf %782, %784 : vector<6x96xf32>
    %cst_231 = arith.constant dense<0.000000e+00> : vector<6xf32>
    %786 = vector.multi_reduction <add>, %785, %cst_231 [1] : vector<6x96xf32> to vector<6xf32>
    %787 = vector.shape_cast %786 : vector<6xf32> to vector<6x1xf32>
    %788 = vector.extract_strided_slice %23 {offsets = [0, 7], sizes = [6, 1], strides = [1, 1]} : vector<6x8xf32> to vector<6x1xf32>
    %cst_232 = arith.constant 5.000000e-01 : f32
    %789 = vector.broadcast %cst_232 : f32 to vector<6x1xf32>
    %790 = arith.cmpf ogt, %788, %789 : vector<6x1xf32>
    %cst_233 = arith.constant -1036.16333 : f32
    %791 = vector.broadcast %cst_233 : f32 to vector<6x1xf32>
    %792 = arith.select %790, %787, %791 : vector<6x1xi1>, vector<6x1xf32>
    %cst_234 = arith.constant dense<0xFF800000> : vector<1xf32>
    %793 = vector.multi_reduction <maximumf>, %792, %cst_234 [0] : vector<6x1xf32> to vector<1xf32>
    %794 = vector.shape_cast %793 : vector<1xf32> to vector<1x1xf32>
    %795 = vector.broadcast %794 : vector<1x1xf32> to vector<6x1xf32>
    %796 = arith.subf %792, %795 : vector<6x1xf32>
    %797 = math.exp %796 : vector<6x1xf32>
    %cst_235 = arith.constant dense<0.000000e+00> : vector<1xf32>
    %798 = vector.multi_reduction <add>, %797, %cst_235 [0] : vector<6x1xf32> to vector<1xf32>
    %799 = vector.shape_cast %798 : vector<1xf32> to vector<1x1xf32>
    %800 = vector.broadcast %799 : vector<1x1xf32> to vector<6x1xf32>
    %801 = arith.divf %797, %800 : vector<6x1xf32>
    %cst_236 = arith.constant dense<0xFF800000> : vector<1xf32>
    %802 = vector.multi_reduction <maximumf>, %801, %cst_236 [0] : vector<6x1xf32> to vector<1xf32>
    %803 = vector.shape_cast %802 : vector<1xf32> to vector<1x1xf32>
    %804 = vector.broadcast %803 : vector<1x1xf32> to vector<6x1xf32>
    %805 = arith.cmpf oge, %801, %804 : vector<6x1xf32>
    %cst_237 = arith.constant 6.000000e+00 : f32
    %806 = vector.broadcast %cst_237 : f32 to vector<6x1xf32>
    %807 = arith.select %805, %1, %806 : vector<6x1xi1>, vector<6x1xf32>
    %cst_238 = arith.constant dense<0x7F800000> : vector<1xf32>
    %808 = vector.multi_reduction <minimumf>, %807, %cst_238 [0] : vector<6x1xf32> to vector<1xf32>
    %809 = vector.shape_cast %808 : vector<1xf32> to vector<1x1xf32>
    %810 = vector.broadcast %809 : vector<1x1xf32> to vector<6x1xf32>
    %811 = arith.cmpf oeq, %1, %810 : vector<6x1xf32>
    %812 = arith.extui %811 : vector<6x1xi1> to vector<6x1xi32>
    %813 = arith.sitofp %812 : vector<6x1xi32> to vector<6x1xf32>
    %814 = vector.extract_strided_slice %21 {offsets = [7, 0], sizes = [1, 4], strides = [1, 1]} : vector<8x4xf32> to vector<1x4xf32>
    %815 = vector.broadcast %813 : vector<6x1xf32> to vector<6x4xf32>
    %816 = arith.mulf %815, %726 : vector<6x4xf32>
    %cst_239 = arith.constant dense<0.000000e+00> : vector<4xf32>
    %817 = vector.multi_reduction <add>, %816, %cst_239 [0] : vector<6x4xf32> to vector<4xf32>
    %818 = vector.shape_cast %817 : vector<4xf32> to vector<1x4xf32>
    %819 = arith.cmpf oge, %818, %814 : vector<1x4xf32>
    %820 = arith.extui %819 : vector<1x4xi1> to vector<1x4xi32>
    %821 = arith.sitofp %820 : vector<1x4xi32> to vector<1x4xf32>
    %cst_240 = arith.constant dense<0x7F800000> : vector<1xf32>
    %822 = vector.multi_reduction <minimumf>, %821, %cst_240 [1] : vector<1x4xf32> to vector<1xf32>
    %823 = vector.shape_cast %822 : vector<1xf32> to vector<1x1xf32>
    %824 = vector.broadcast %823 : vector<1x1xf32> to vector<1x4xf32>
    %825 = arith.mulf %814, %824 : vector<1x4xf32>
    %826 = vector.broadcast %813 : vector<6x1xf32> to vector<6x4xf32>
    %827 = vector.broadcast %825 : vector<1x4xf32> to vector<6x4xf32>
    %828 = arith.mulf %826, %827 : vector<6x4xf32>
    %829 = arith.subf %726, %828 : vector<6x4xf32>
    %cst_241 = arith.constant 5.000000e-01 : f32
    %830 = vector.broadcast %cst_241 : f32 to vector<1x1xf32>
    %831 = arith.cmpf ogt, %823, %830 : vector<1x1xf32>
    %cst_242 = arith.constant -1.000000e+00 : f32
    %832 = vector.broadcast %cst_242 : f32 to vector<1x1xf32>
    %833 = arith.select %831, %809, %832 : vector<1x1xi1>, vector<1x1xf32>
    %834 = vector.broadcast %809 : vector<1x1xf32> to vector<1x6xf32>
    %835 = arith.cmpf oeq, %3, %834 : vector<1x6xf32>
    %836 = arith.extui %835 : vector<1x6xi1> to vector<1x6xi32>
    %837 = arith.sitofp %836 : vector<1x6xi32> to vector<1x6xf32>
    %838 = vector.broadcast %823 : vector<1x1xf32> to vector<1x6xf32>
    %839 = arith.mulf %837, %838 : vector<1x6xf32>
    %840 = arith.maximumf %740, %839 : vector<1x6xf32>
    %cst_243 = arith.constant 7.000000e+00 : f32
    %841 = vector.broadcast %cst_243 : f32 to vector<1x8xf32>
    %842 = arith.cmpf oeq, %5, %841 : vector<1x8xf32>
    %843 = vector.shape_cast %803 : vector<1x1xf32> to vector<1x1xf32>
    %844 = vector.broadcast %843 : vector<1x1xf32> to vector<1x8xf32>
    %845 = arith.select %842, %844, %745 : vector<1x8xi1>, vector<1x8xf32>
    %846 = vector.shape_cast %809 : vector<1x1xf32> to vector<1x1xf32>
    %847 = vector.broadcast %846 : vector<1x1xf32> to vector<1x8xf32>
    %848 = arith.select %842, %847, %748 : vector<1x8xi1>, vector<1x8xf32>
    %849 = vector.shape_cast %833 : vector<1x1xf32> to vector<1x1xf32>
    %850 = vector.broadcast %849 : vector<1x1xf32> to vector<1x8xf32>
    %851 = arith.select %842, %850, %751 : vector<1x8xi1>, vector<1x8xf32>
    %c0_244 = arith.constant 0 : index
    %c0_245 = arith.constant 0 : index
    %c0_246 = arith.constant 0 : index
    %852 = vector.load %arg14[%c0_244, %c0_245, %c0_246] : memref<1x1x8xf32, #tpu.memory_space<vmem>>, vector<1x1x8xf32>
    %853 = vector.shape_cast %852 : vector<1x1x8xf32> to vector<1x8xf32>
    %854 = vector.shape_cast %845 : vector<1x8xf32> to vector<1x1x8xf32>
    tpu.vector_store %arg14[%c0_244, %c0_245, %c0_246], %854 {strides = array<i32>} : memref<1x1x8xf32, #tpu.memory_space<vmem>>, vector<1x1x8xf32>,
    %855 = arith.fptosi %848 : vector<1x8xf32> to vector<1x8xi32>
    %c0_247 = arith.constant 0 : index
    %c0_248 = arith.constant 0 : index
    %c0_249 = arith.constant 0 : index
    %856 = vector.load %arg15[%c0_247, %c0_248, %c0_249] : memref<1x1x8xi32, #tpu.memory_space<vmem>>, vector<1x1x8xi32>
    %857 = vector.shape_cast %856 : vector<1x1x8xi32> to vector<1x8xi32>
    %858 = vector.shape_cast %855 : vector<1x8xi32> to vector<1x1x8xi32>
    tpu.vector_store %arg15[%c0_247, %c0_248, %c0_249], %858 {strides = array<i32>} : memref<1x1x8xi32, #tpu.memory_space<vmem>>, vector<1x1x8xi32>,
    %859 = arith.fptosi %851 : vector<1x8xf32> to vector<1x8xi32>
    %c0_250 = arith.constant 0 : index
    %c0_251 = arith.constant 0 : index
    %c0_252 = arith.constant 0 : index
    %860 = vector.load %arg16[%c0_250, %c0_251, %c0_252] : memref<1x1x8xi32, #tpu.memory_space<vmem>>, vector<1x1x8xi32>
    %861 = vector.shape_cast %860 : vector<1x1x8xi32> to vector<1x8xi32>
    %862 = vector.shape_cast %859 : vector<1x8xi32> to vector<1x1x8xi32>
    tpu.vector_store %arg16[%c0_250, %c0_251, %c0_252], %862 {strides = array<i32>} : memref<1x1x8xi32, #tpu.memory_space<vmem>>, vector<1x1x8xi32>,
    %863 = arith.fptosi %840 : vector<1x6xf32> to vector<1x6xi32>
    %c0_253 = arith.constant 0 : index
    %c0_254 = arith.constant 0 : index
    %c0_255 = arith.constant 0 : index
    %864 = vector.load %arg17[%c0_253, %c0_254, %c0_255] : memref<1x1x6xi32, #tpu.memory_space<vmem>>, vector<1x1x6xi32>
    %865 = vector.shape_cast %864 : vector<1x1x6xi32> to vector<1x6xi32>
    %866 = vector.shape_cast %863 : vector<1x6xi32> to vector<1x1x6xi32>
    tpu.vector_store %arg17[%c0_253, %c0_254, %c0_255], %866 {strides = array<i32>} : memref<1x1x6xi32, #tpu.memory_space<vmem>>, vector<1x1x6xi32>,
    %c0_256 = arith.constant 0 : index
    %c0_257 = arith.constant 0 : index
    %c0_258 = arith.constant 0 : index
    %867 = vector.load %arg18[%c0_256, %c0_257, %c0_258] : memref<1x6x4xf32, #tpu.memory_space<vmem>>, vector<1x6x4xf32>
    %868 = vector.shape_cast %867 : vector<1x6x4xf32> to vector<6x4xf32>
    %869 = vector.shape_cast %829 : vector<6x4xf32> to vector<1x6x4xf32>
    tpu.vector_store %arg18[%c0_256, %c0_257, %c0_258], %869 {strides = array<i32>} : memref<1x6x4xf32, #tpu.memory_space<vmem>>, vector<1x6x4xf32>,
    return
  }
  func.func @transform_0(%arg0: i32) -> (i32, i32, i32) {
    %c0_i32 = arith.constant 0 : i32
    %c0_i32_0 = arith.constant 0 : i32
    %c0_i32_1 = arith.constant 0 : i32
    return %arg0, %c0_i32, %c0_i32_0 : i32, i32, i32
  }
  func.func @transform_1(%arg0: i32) -> (i32, i32, i32) {
    %c0_i32 = arith.constant 0 : i32
    %c0_i32_0 = arith.constant 0 : i32
    %c0_i32_1 = arith.constant 0 : i32
    return %arg0, %c0_i32, %c0_i32_0 : i32, i32, i32
  }
  func.func @transform_2(%arg0: i32) -> (i32, i32, i32) {
    %c0_i32 = arith.constant 0 : i32
    %c0_i32_0 = arith.constant 0 : i32
    %c0_i32_1 = arith.constant 0 : i32
    return %arg0, %c0_i32, %c0_i32_0 : i32, i32, i32
  }
  func.func @transform_3(%arg0: i32) -> (i32, i32, i32) {
    %c0_i32 = arith.constant 0 : i32
    %c0_i32_0 = arith.constant 0 : i32
    %c0_i32_1 = arith.constant 0 : i32
    return %arg0, %c0_i32, %c0_i32_0 : i32, i32, i32
  }
  func.func @transform_4(%arg0: i32) -> (i32, i32, i32) {
    %c0_i32 = arith.constant 0 : i32
    %c0_i32_0 = arith.constant 0 : i32
    %c0_i32_1 = arith.constant 0 : i32
    return %arg0, %c0_i32, %c0_i32_0 : i32, i32, i32
  }
  func.func @transform_5(%arg0: i32) -> (i32, i32) {
    %c0_i32 = arith.constant 0 : i32
    %c0_i32_0 = arith.constant 0 : i32
    %c0_i32_1 = arith.constant 0 : i32
    return %c0_i32, %c0_i32_0 : i32, i32
  }
  func.func @transform_6(%arg0: i32) -> (i32, i32) {
    %c0_i32 = arith.constant 0 : i32
    %c0_i32_0 = arith.constant 0 : i32
    %c0_i32_1 = arith.constant 0 : i32
    return %c0_i32, %c0_i32_0 : i32, i32
  }
  func.func @transform_7(%arg0: i32) -> (i32, i32) {
    %c0_i32 = arith.constant 0 : i32
    %c0_i32_0 = arith.constant 0 : i32
    %c0_i32_1 = arith.constant 0 : i32
    return %c0_i32, %c0_i32_0 : i32, i32
  }
  func.func @transform_8(%arg0: i32) -> (i32, i32) {
    %c0_i32 = arith.constant 0 : i32
    %c0_i32_0 = arith.constant 0 : i32
    %c0_i32_1 = arith.constant 0 : i32
    return %c0_i32, %c0_i32_0 : i32, i32
  }
  func.func @transform_9(%arg0: i32) -> (i32, i32) {
    %c0_i32 = arith.constant 0 : i32
    %c0_i32_0 = arith.constant 0 : i32
    %c0_i32_1 = arith.constant 0 : i32
    return %c0_i32, %c0_i32_0 : i32, i32
  }
  func.func @transform_10(%arg0: i32) -> (i32, i32) {
    %c0_i32 = arith.constant 0 : i32
    %c0_i32_0 = arith.constant 0 : i32
    %c0_i32_1 = arith.constant 0 : i32
    return %c0_i32, %c0_i32_0 : i32, i32
  }
  func.func @transform_11(%arg0: i32) -> (i32, i32) {
    %c0_i32 = arith.constant 0 : i32
    %c0_i32_0 = arith.constant 0 : i32
    %c0_i32_1 = arith.constant 0 : i32
    return %c0_i32, %c0_i32_0 : i32, i32
  }
  func.func @transform_12(%arg0: i32) -> (i32, i32) {
    %c0_i32 = arith.constant 0 : i32
    %c0_i32_0 = arith.constant 0 : i32
    %c0_i32_1 = arith.constant 0 : i32
    return %c0_i32, %c0_i32_0 : i32, i32
  }
  func.func @transform_13(%arg0: i32) -> (i32, i32, i32) {
    %c0_i32 = arith.constant 0 : i32
    %c0_i32_0 = arith.constant 0 : i32
    %c0_i32_1 = arith.constant 0 : i32
    return %arg0, %c0_i32, %c0_i32_0 : i32, i32, i32
  }
  func.func @transform_14(%arg0: i32) -> (i32, i32, i32) {
    %c0_i32 = arith.constant 0 : i32
    %c0_i32_0 = arith.constant 0 : i32
    %c0_i32_1 = arith.constant 0 : i32
    return %arg0, %c0_i32, %c0_i32_0 : i32, i32, i32
  }
  func.func @transform_15(%arg0: i32) -> (i32, i32, i32) {
    %c0_i32 = arith.constant 0 : i32
    %c0_i32_0 = arith.constant 0 : i32
    %c0_i32_1 = arith.constant 0 : i32
    return %arg0, %c0_i32, %c0_i32_0 : i32, i32, i32
  }
  func.func @transform_16(%arg0: i32) -> (i32, i32, i32) {
    %c0_i32 = arith.constant 0 : i32
    %c0_i32_0 = arith.constant 0 : i32
    %c0_i32_1 = arith.constant 0 : i32
    return %arg0, %c0_i32, %c0_i32_0 : i32, i32, i32
  }
  func.func @transform_17(%arg0: i32) -> (i32, i32, i32) {
    %c0_i32 = arith.constant 0 : i32
    %c0_i32_0 = arith.constant 0 : i32
    %c0_i32_1 = arith.constant 0 : i32
    return %arg0, %c0_i32, %c0_i32_0 : i32, i32, i32
  }
}

</mosaic_0001>

<llo_original>
// kernel: attention_net_forward.1
$region0: #{attention_net_forward.1}
  #allocation0 [shape = 'u32[]', space=smem, size = 0x4, offset = 0x4, fixed_abs, tag = 'smem constant byte address 0x4 - core index']
  #allocation1 [shape = 'u32[144,128]{1,0:T(1,128)}', space=vmem, size = 0x12000, scoped, tag = 'internal scratch']
  %s0 = inlined_call_operand.vmem [shape: f32[2,8,6], index: 0, kind: input, shape index: {}]
  %s1 = inlined_call_operand.vmem [shape: f32[2,8,4], index: 1, kind: input, shape index: {}]
  %s2 = inlined_call_operand.vmem [shape: f32[2,6,3], index: 2, kind: input, shape index: {}]
  %s3 = inlined_call_operand.vmem [shape: f32[2,6,4], index: 3, kind: input, shape index: {}]
  %s4 = inlined_call_operand.vmem [shape: f32[2,6,8], index: 4, kind: input, shape index: {}]
  %s5 = inlined_call_operand.vmem [shape: f32[3,96], index: 5, kind: input, shape index: {}]
  %s6 = inlined_call_operand.vmem [shape: f32[4,96], index: 6, kind: input, shape index: {}]
  %s7 = inlined_call_operand.vmem [shape: f32[1,96], index: 7, kind: input, shape index: {}]
  %s8 = inlined_call_operand.vmem [shape: f32[1,96], index: 8, kind: input, shape index: {}]
  %s9 = inlined_call_operand.vmem [shape: f32[6,96], index: 9, kind: input, shape index: {}]
  %s10 = inlined_call_operand.vmem [shape: f32[1,96], index: 10, kind: input, shape index: {}]
  %s11 = inlined_call_operand.vmem [shape: f32[96,96], index: 11, kind: input, shape index: {}]
  %s12 = inlined_call_operand.vmem [shape: f32[1,96], index: 12, kind: input, shape index: {}]
  %s13 = inlined_call_operand.hbm [shape: f32[2,1,8], index: 13, kind: output, shape index: {0}]
  %s14 = inlined_call_operand.hbm [shape: s32[2,1,8], index: 14, kind: output, shape index: {1}]
  %s15 = inlined_call_operand.vmem [shape: s32[2,1,8], index: 15, kind: output, shape index: {2}]
  %s16 = inlined_call_operand.vmem [shape: s32[2,1,6], index: 16, kind: output, shape index: {3}]
  %s17 = inlined_call_operand.vmem [shape: f32[2,6,4], index: 17, kind: output, shape index: {4}]
  %18 = xla_tuple %s13, %s14, %s15, %s16, %s17
  %s19 = sld [smem:[#allocation0]]
  $region117: #{attention_net_forward.1} parent=0
    _
  %s21 = ssub.s32 1, %s19
  %s22 = scalar_select 0, %s21, %s19
  $region1: #{attention_net_forward.1} parent=0
    #allocation2 [shape = 'u8[1024]{0}', space=vmem, size = 0x400, scoped, tag = 'output window, operand 0']
    #allocation3 [shape = 's32[2]{0}', space=sflag, size = 0x8, scoped, tag = 'scoped memory for attention_net_forward.1']
    #allocation4 [shape = 'u8[1024]{0}', space=vmem, size = 0x400, scoped, tag = 'output window, operand 1']
    #allocation5 [shape = 's32[2]{0}', space=sflag, size = 0x8, scoped, tag = 'scoped memory for attention_net_forward.1']
    %23 = vsyncpa [#allocation3], 0
    %s24 = scalar_lea.sflag [#allocation3], 1
    %25 = vsyncpa %s24, 0
    %26 = vsyncpa [#allocation5], 0
    %s27 = scalar_lea.sflag [#allocation5], 1
    %28 = vsyncpa %s27, 0
    loop: start=0, step=1, limit=4
    $region2: #{attention_net_forward.1} parent=1 // loop_pre_header
      _
    $region3: #{attention_net_forward.1} parent=1 // loop_header
      %s30 = sphi 0, %s34
      %p31 = scmp.ge.s32.totalorder %s30, 4
      %s40 = sphi 0, %s42
      %s43 = sphi 0, %s40
      %s44 = sphi 0, %s43
      %s60 = sphi 0, %s44
      %s66 = sphi 0, %s68
      %s69 = sphi 0, %s66
      %s70 = sphi 0, %s69
      %s86 = sphi 0, %s70
      %s92 = sphi 0, %s94
      %s95 = sphi 0, %s92
      %s96 = sphi 0, %s95
      %s112 = sphi 0, %s96
      %s118 = sphi 0, %s120
      %s121 = sphi 0, %s118
      %s122 = sphi 0, %s121
      %s138 = sphi 0, %s122
      %s144 = sphi 0, %s146
      %s147 = sphi 0, %s144
      %s148 = sphi 0, %s147
      %s164 = sphi 0, %s148
      %s168 = sphi 0, %s168
      %s170 = sphi 0, %s168
      %s171 = sphi 0, %s170
      %s185 = sphi 0, %s171
      %s189 = sphi 0, %s189
      %s191 = sphi 0, %s189
      %s192 = sphi 0, %s191
      %s206 = sphi 0, %s192
      %s210 = sphi 0, %s210
      %s212 = sphi 0, %s210
      %s213 = sphi 0, %s212
      %s227 = sphi 0, %s213
      %s231 = sphi 0, %s231
      %s233 = sphi 0, %s231
      %s234 = sphi 0, %s233
      %s248 = sphi 0, %s234
      %s252 = sphi 0, %s252
      %s254 = sphi 0, %s252
      %s255 = sphi 0, %s254
      %s269 = sphi 0, %s255
      %s273 = sphi 0, %s273
      %s275 = sphi 0, %s273
      %s276 = sphi 0, %s275
      %s290 = sphi 0, %s276
      %s294 = sphi 0, %s294
      %s296 = sphi 0, %s294
      %s297 = sphi 0, %s296
      %s311 = sphi 0, %s297
      %s315 = sphi 0, %s315
      %s317 = sphi 0, %s315
      %s318 = sphi 0, %s317
      %s332 = sphi 0, %s318
      %s338 = sphi 0, %s340
      %s341 = sphi 0, %s338
      %s342 = sphi 0, %s341
      %s358 = sphi 0, %s342
      %s364 = sphi 0, %s366
      %s367 = sphi 0, %s364
      %s368 = sphi 0, %s367
      %s384 = sphi 0, %s368
      %s390 = sphi 0, %s392
      %s393 = sphi 0, %s390
      %s394 = sphi 0, %s393
      %s410 = sphi 0, %s394
      %s416 = sphi 0, %s418
      %s419 = sphi 0, %s416
      %s420 = sphi 0, %s419
      %s436 = sphi 0, %s420
      %s442 = sphi 0, %s444
      %s445 = sphi 0, %s442
      %s446 = sphi 0, %s445
      %s462 = sphi 0, %s446
    $region4: #{attention_net_forward.1} parent=1 // loop_header_branch
      %33 = sbr.rel (%p31) target = $region8
    $region5: #{attention_net_forward.1} parent=1 // loop_body
      %s35 = ssub.s32 %s30, 1
      %s36 = ssub.s32 %s30, 2
      %s37 = sadd.s32 %s30, 1
      %s38 = ssub.s32 %s30, %s37
      %p39 = scmp.eq.s32.totalorder %s38, 0
      %s41 = sadd.s32 %s40, 1
      %s42 = scalar_select %p39, %s40, %s41
      %p45 = pneg %p39
      %p46 = scmp.eq.s32.totalorder %s30, 1
      %p47 = por %p45, %p46
      %p48 = scmp.ne.s32.totalorder %s40, %s43
      %p49 = scmp.eq.s32.totalorder %s30, 0
      %p50 = por %p48, %p49
      %p51 = scmp.ne.s32.totalorder %s40, %s43
      %p52 = scmp.eq.s32.totalorder %s35, 1
      %p53 = por %p51, %p52
      %p54 = scmp.ne.s32.totalorder %s43, %s44
      %p55 = scmp.eq.s32.totalorder %s35, 0
      %p56 = por %p54, %p55
      %p57 = scmp.ne.s32.totalorder %s43, %s44
      %p58 = scmp.eq.s32.totalorder %s36, 1
      %p59 = por %p57, %p58
      %p61 = scmp.ne.s32.totalorder %s44, %s60
      %p62 = scmp.eq.s32.totalorder %s36, 0
      %p63 = por %p61, %p62
      %s64 = ssub.s32 %s30, %s37
      %p65 = scmp.eq.s32.totalorder %s64, 0
      %s67 = sadd.s32 %s66, 1
      %s68 = scalar_select %p65, %s66, %s67
      %p71 = pneg %p65
      %p72 = scmp.eq.s32.totalorder %s30, 1
      %p73 = por %p71, %p72
      %p74 = scmp.ne.s32.totalorder %s66, %s69
      %p75 = scmp.eq.s32.totalorder %s30, 0
      %p76 = por %p74, %p75
      %p77 = scmp.ne.s32.totalorder %s66, %s69
      %p78 = scmp.eq.s32.totalorder %s35, 1
      %p79 = por %p77, %p78
      %p80 = scmp.ne.s32.totalorder %s69, %s70
      %p81 = scmp.eq.s32.totalorder %s35, 0
      %p82 = por %p80, %p81
      %p83 = scmp.ne.s32.totalorder %s69, %s70
      %p84 = scmp.eq.s32.totalorder %s36, 1
      %p85 = por %p83, %p84
      %p87 = scmp.ne.s32.totalorder %s70, %s86
      %p88 = scmp.eq.s32.totalorder %s36, 0
      %p89 = por %p87, %p88
      %s90 = ssub.s32 %s30, %s37
      %p91 = scmp.eq.s32.totalorder %s90, 0
      %s93 = sadd.s32 %s92, 1
      %s94 = scalar_select %p91, %s92, %s93
      %p97 = pneg %p91
      %p98 = scmp.eq.s32.totalorder %s30, 1
      %p99 = por %p97, %p98
      %p100 = scmp.ne.s32.totalorder %s92, %s95
      %p101 = scmp.eq.s32.totalorder %s30, 0
      %p102 = por %p100, %p101
      %p103 = scmp.ne.s32.totalorder %s92, %s95
      %p104 = scmp.eq.s32.totalorder %s35, 1
      %p105 = por %p103, %p104
      %p106 = scmp.ne.s32.totalorder %s95, %s96
      %p107 = scmp.eq.s32.totalorder %s35, 0
      %p108 = por %p106, %p107
      %p109 = scmp.ne.s32.totalorder %s95, %s96
      %p110 = scmp.eq.s32.totalorder %s36, 1
      %p111 = por %p109, %p110
      %p113 = scmp.ne.s32.totalorder %s96, %s112
      %p114 = scmp.eq.s32.totalorder %s36, 0
      %p115 = por %p113, %p114
      %s116 = ssub.s32 %s30, %s37
      %p117 = scmp.eq.s32.totalorder %s116, 0
      %s119 = sadd.s32 %s118, 1
      %s120 = scalar_select %p117, %s118, %s119
      %p123 = pneg %p117
      %p124 = scmp.eq.s32.totalorder %s30, 1
      %p125 = por %p123, %p124
      %p126 = scmp.ne.s32.totalorder %s118, %s121
      %p127 = scmp.eq.s32.totalorder %s30, 0
      %p128 = por %p126, %p127
      %p129 = scmp.ne.s32.totalorder %s118, %s121
      %p130 = scmp.eq.s32.totalorder %s35, 1
      %p131 = por %p129, %p130
      %p132 = scmp.ne.s32.totalorder %s121, %s122
      %p133 = scmp.eq.s32.totalorder %s35, 0
      %p134 = por %p132, %p133
      %p135 = scmp.ne.s32.totalorder %s121, %s122
      %p136 = scmp.eq.s32.totalorder %s36, 1
      %p137 = por %p135, %p136
      %p139 = scmp.ne.s32.totalorder %s122, %s138
      %p140 = scmp.eq.s32.totalorder %s36, 0
      %p141 = por %p139, %p140
      %s142 = ssub.s32 %s30, %s37
      %p143 = scmp.eq.s32.totalorder %s142, 0
      %s145 = sadd.s32 %s144, 1
      %s146 = scalar_select %p143, %s144, %s145
      %p149 = pneg %p143
      %p150 = scmp.eq.s32.totalorder %s30, 1
      %p151 = por %p149, %p150
      %p152 = scmp.ne.s32.totalorder %s144, %s147
      %p153 = scmp.eq.s32.totalorder %s30, 0
      %p154 = por %p152, %p153
      %p155 = scmp.ne.s32.totalorder %s144, %s147
      %p156 = scmp.eq.s32.totalorder %s35, 1
      %p157 = por %p155, %p156
      %p158 = scmp.ne.s32.totalorder %s147, %s148
      %p159 = scmp.eq.s32.totalorder %s35, 0
      %p160 = por %p158, %p159
      %p161 = scmp.ne.s32.totalorder %s147, %s148
      %p162 = scmp.eq.s32.totalorder %s36, 1
      %p163 = por %p161, %p162
      %p165 = scmp.ne.s32.totalorder %s148, %s164
      %p166 = scmp.eq.s32.totalorder %s36, 0
      %p167 = por %p165, %p166
      %s169 = sadd.s32 %s168, 1
      %p172 = scmp.eq.s32.totalorder %s30, 1
      %p173 = scmp.ne.s32.totalorder %s168, %s170
      %p174 = scmp.eq.s32.totalorder %s30, 0
      %p175 = por %p173, %p174
      %p176 = scmp.ne.s32.totalorder %s168, %s170
      %p177 = scmp.eq.s32.totalorder %s35, 1
      %p178 = por %p176, %p177
      %p179 = scmp.ne.s32.totalorder %s170, %s171
      %p180 = scmp.eq.s32.totalorder %s35, 0
      %p181 = por %p179, %p180
      %p182 = scmp.ne.s32.totalorder %s170, %s171
      %p183 = scmp.eq.s32.totalorder %s36, 1
      %p184 = por %p182, %p183
      %p186 = scmp.ne.s32.totalorder %s171, %s185
      %p187 = scmp.eq.s32.totalorder %s36, 0
      %p188 = por %p186, %p187
      %s190 = sadd.s32 %s189, 1
      %p193 = scmp.eq.s32.totalorder %s30, 1
      %p194 = scmp.ne.s32.totalorder %s189, %s191
      %p195 = scmp.eq.s32.totalorder %s30, 0
      %p196 = por %p194, %p195
      %p197 = scmp.ne.s32.totalorder %s189, %s191
      %p198 = scmp.eq.s32.totalorder %s35, 1
      %p199 = por %p197, %p198
      %p200 = scmp.ne.s32.totalorder %s191, %s192
      %p201 = scmp.eq.s32.totalorder %s35, 0
      %p202 = por %p200, %p201
      %p203 = scmp.ne.s32.totalorder %s191, %s192
      %p204 = scmp.eq.s32.totalorder %s36, 1
      %p205 = por %p203, %p204
      %p207 = scmp.ne.s32.totalorder %s192, %s206
      %p208 = scmp.eq.s32.totalorder %s36, 0
      %p209 = por %p207, %p208
      %s211 = sadd.s32 %s210, 1
      %p214 = scmp.eq.s32.totalorder %s30, 1
      %p215 = scmp.ne.s32.totalorder %s210, %s212
      %p216 = scmp.eq.s32.totalorder %s30, 0
      %p217 = por %p215, %p216
      %p218 = scmp.ne.s32.totalorder %s210, %s212
      %p219 = scmp.eq.s32.totalorder %s35, 1
      %p220 = por %p218, %p219
      %p221 = scmp.ne.s32.totalorder %s212, %s213
      %p222 = scmp.eq.s32.totalorder %s35, 0
      %p223 = por %p221, %p222
      %p224 = scmp.ne.s32.totalorder %s212, %s213
      %p225 = scmp.eq.s32.totalorder %s36, 1
      %p226 = por %p224, %p225
      %p228 = scmp.ne.s32.totalorder %s213, %s227
      %p229 = scmp.eq.s32.totalorder %s36, 0
      %p230 = por %p228, %p229
      %s232 = sadd.s32 %s231, 1
      %p235 = scmp.eq.s32.totalorder %s30, 1
      %p236 = scmp.ne.s32.totalorder %s231, %s233
      %p237 = scmp.eq.s32.totalorder %s30, 0
      %p238 = por %p236, %p237
      %p239 = scmp.ne.s32.totalorder %s231, %s233
      %p240 = scmp.eq.s32.totalorder %s35, 1
      %p241 = por %p239, %p240
      %p242 = scmp.ne.s32.totalorder %s233, %s234
      %p243 = scmp.eq.s32.totalorder %s35, 0
      %p244 = por %p242, %p243
      %p245 = scmp.ne.s32.totalorder %s233, %s234
      %p246 = scmp.eq.s32.totalorder %s36, 1
      %p247 = por %p245, %p246
      %p249 = scmp.ne.s32.totalorder %s234, %s248
      %p250 = scmp.eq.s32.totalorder %s36, 0
      %p251 = por %p249, %p250
      %s253 = sadd.s32 %s252, 1
      %p256 = scmp.eq.s32.totalorder %s30, 1
      %p257 = scmp.ne.s32.totalorder %s252, %s254
      %p258 = scmp.eq.s32.totalorder %s30, 0
      %p259 = por %p257, %p258
      %p260 = scmp.ne.s32.totalorder %s252, %s254
      %p261 = scmp.eq.s32.totalorder %s35, 1
      %p262 = por %p260, %p261
      %p263 = scmp.ne.s32.totalorder %s254, %s255
      %p264 = scmp.eq.s32.totalorder %s35, 0
      %p265 = por %p263, %p264
      %p266 = scmp.ne.s32.totalorder %s254, %s255
      %p267 = scmp.eq.s32.totalorder %s36, 1
      %p268 = por %p266, %p267
      %p270 = scmp.ne.s32.totalorder %s255, %s269
      %p271 = scmp.eq.s32.totalorder %s36, 0
      %p272 = por %p270, %p271
      %s274 = sadd.s32 %s273, 1
      %p277 = scmp.eq.s32.totalorder %s30, 1
      %p278 = scmp.ne.s32.totalorder %s273, %s275
      %p279 = scmp.eq.s32.totalorder %s30, 0
      %p280 = por %p278, %p279
      %p281 = scmp.ne.s32.totalorder %s273, %s275
      %p282 = scmp.eq.s32.totalorder %s35, 1
      %p283 = por %p281, %p282
      %p284 = scmp.ne.s32.totalorder %s275, %s276
      %p285 = scmp.eq.s32.totalorder %s35, 0
      %p286 = por %p284, %p285
      %p287 = scmp.ne.s32.totalorder %s275, %s276
      %p288 = scmp.eq.s32.totalorder %s36, 1
      %p289 = por %p287, %p288
      %p291 = scmp.ne.s32.totalorder %s276, %s290
      %p292 = scmp.eq.s32.totalorder %s36, 0
      %p293 = por %p291, %p292
      %s295 = sadd.s32 %s294, 1
      %p298 = scmp.eq.s32.totalorder %s30, 1
      %p299 = scmp.ne.s32.totalorder %s294, %s296
      %p300 = scmp.eq.s32.totalorder %s30, 0
      %p301 = por %p299, %p300
      %p302 = scmp.ne.s32.totalorder %s294, %s296
      %p303 = scmp.eq.s32.totalorder %s35, 1
      %p304 = por %p302, %p303
      %p305 = scmp.ne.s32.totalorder %s296, %s297
      %p306 = scmp.eq.s32.totalorder %s35, 0
      %p307 = por %p305, %p306
      %p308 = scmp.ne.s32.totalorder %s296, %s297
      %p309 = scmp.eq.s32.totalorder %s36, 1
      %p310 = por %p308, %p309
      %p312 = scmp.ne.s32.totalorder %s297, %s311
      %p313 = scmp.eq.s32.totalorder %s36, 0
      %p314 = por %p312, %p313
      %s316 = sadd.s32 %s315, 1
      %p319 = scmp.eq.s32.totalorder %s30, 1
      %p320 = scmp.ne.s32.totalorder %s315, %s317
      %p321 = scmp.eq.s32.totalorder %s30, 0
      %p322 = por %p320, %p321
      %p323 = scmp.ne.s32.totalorder %s315, %s317
      %p324 = scmp.eq.s32.totalorder %s35, 1
      %p325 = por %p323, %p324
      %p326 = scmp.ne.s32.totalorder %s317, %s318
      %p327 = scmp.eq.s32.totalorder %s35, 0
      %p328 = por %p326, %p327
      %p329 = scmp.ne.s32.totalorder %s317, %s318
      %p330 = scmp.eq.s32.totalorder %s36, 1
      %p331 = por %p329, %p330
      %p333 = scmp.ne.s32.totalorder %s318, %s332
      %p334 = scmp.eq.s32.totalorder %s36, 0
      %p335 = por %p333, %p334
      %s336 = ssub.s32 %s30, %s37
      %p337 = scmp.eq.s32.totalorder %s336, 0
      %s339 = sadd.s32 %s338, 1
      %s340 = scalar_select %p337, %s338, %s339
      %p343 = pneg %p337
      %p344 = scmp.eq.s32.totalorder %s30, 1
      %p345 = por %p343, %p344
      %p346 = scmp.ne.s32.totalorder %s338, %s341
      %p347 = scmp.eq.s32.totalorder %s30, 0
      %p348 = por %p346, %p347
      %p349 = scmp.ne.s32.totalorder %s338, %s341
      %p350 = scmp.eq.s32.totalorder %s35, 1
      %p351 = por %p349, %p350
      %p352 = scmp.ne.s32.totalorder %s341, %s342
      %p353 = scmp.eq.s32.totalorder %s35, 0
      %p354 = por %p352, %p353
      %p355 = scmp.ne.s32.totalorder %s341, %s342
      %p356 = scmp.eq.s32.totalorder %s36, 1
      %p357 = por %p355, %p356
      %p359 = scmp.ne.s32.totalorder %s342, %s358
      %p360 = scmp.eq.s32.totalorder %s36, 0
      %p361 = por %p359, %p360
      %s362 = ssub.s32 %s30, %s37
      %p363 = scmp.eq.s32.totalorder %s362, 0
      %s365 = sadd.s32 %s364, 1
      %s366 = scalar_select %p363, %s364, %s365
      %p369 = pneg %p363
      %p370 = scmp.eq.s32.totalorder %s30, 1
      %p371 = por %p369, %p370
      %p372 = scmp.ne.s32.totalorder %s364, %s367
      %p373 = scmp.eq.s32.totalorder %s30, 0
      %p374 = por %p372, %p373
      %p375 = scmp.ne.s32.totalorder %s364, %s367
      %p376 = scmp.eq.s32.totalorder %s35, 1
      %p377 = por %p375, %p376
      %p378 = scmp.ne.s32.totalorder %s367, %s368
      %p379 = scmp.eq.s32.totalorder %s35, 0
      %p380 = por %p378, %p379
      %p381 = scmp.ne.s32.totalorder %s367, %s368
      %p382 = scmp.eq.s32.totalorder %s36, 1
      %p383 = por %p381, %p382
      %p385 = scmp.ne.s32.totalorder %s368, %s384
      %p386 = scmp.eq.s32.totalorder %s36, 0
      %p387 = por %p385, %p386
      %s388 = ssub.s32 %s30, %s37
      %p389 = scmp.eq.s32.totalorder %s388, 0
      %s391 = sadd.s32 %s390, 1
      %s392 = scalar_select %p389, %s390, %s391
      %p395 = pneg %p389
      %p396 = scmp.eq.s32.totalorder %s30, 1
      %p397 = por %p395, %p396
      %p398 = scmp.ne.s32.totalorder %s390, %s393
      %p399 = scmp.eq.s32.totalorder %s30, 0
      %p400 = por %p398, %p399
      %p401 = scmp.ne.s32.totalorder %s390, %s393
      %p402 = scmp.eq.s32.totalorder %s35, 1
      %p403 = por %p401, %p402
      %p404 = scmp.ne.s32.totalorder %s393, %s394
      %p405 = scmp.eq.s32.totalorder %s35, 0
      %p406 = por %p404, %p405
      %p407 = scmp.ne.s32.totalorder %s393, %s394
      %p408 = scmp.eq.s32.totalorder %s36, 1
      %p409 = por %p407, %p408
      %p411 = scmp.ne.s32.totalorder %s394, %s410
      %p412 = scmp.eq.s32.totalorder %s36, 0
      %p413 = por %p411, %p412
      %s414 = ssub.s32 %s30, %s37
      %p415 = scmp.eq.s32.totalorder %s414, 0
      %s417 = sadd.s32 %s416, 1
      %s418 = scalar_select %p415, %s416, %s417
      %p421 = pneg %p415
      %p422 = scmp.eq.s32.totalorder %s30, 1
      %p423 = por %p421, %p422
      %p424 = scmp.ne.s32.totalorder %s416, %s419
      %p425 = scmp.eq.s32.totalorder %s30, 0
      %p426 = por %p424, %p425
      %p427 = scmp.ne.s32.totalorder %s416, %s419
      %p428 = scmp.eq.s32.totalorder %s35, 1
      %p429 = por %p427, %p428
      %p430 = scmp.ne.s32.totalorder %s419, %s420
      %p431 = scmp.eq.s32.totalorder %s35, 0
      %p432 = por %p430, %p431
      %p433 = scmp.ne.s32.totalorder %s419, %s420
      %p434 = scmp.eq.s32.totalorder %s36, 1
      %p435 = por %p433, %p434
      %p437 = scmp.ne.s32.totalorder %s420, %s436
      %p438 = scmp.eq.s32.totalorder %s36, 0
      %p439 = por %p437, %p438
      %s440 = ssub.s32 %s30, %s37
      %p441 = scmp.eq.s32.totalorder %s440, 0
      %s443 = sadd.s32 %s442, 1
      %s444 = scalar_select %p441, %s442, %s443
      %p447 = pneg %p441
      %p448 = scmp.eq.s32.totalorder %s30, 1
      %p449 = por %p447, %p448
      %p450 = scmp.ne.s32.totalorder %s442, %s445
      %p451 = scmp.eq.s32.totalorder %s30, 0
      %p452 = por %p450, %p451
      %p453 = scmp.ne.s32.totalorder %s442, %s445
      %p454 = scmp.eq.s32.totalorder %s35, 1
      %p455 = por %p453, %p454
      %p456 = scmp.ne.s32.totalorder %s445, %s446
      %p457 = scmp.eq.s32.totalorder %s35, 0
      %p458 = por %p456, %p457
      %p459 = scmp.ne.s32.totalorder %s445, %s446
      %p460 = scmp.eq.s32.totalorder %s36, 1
      %p461 = por %p459, %p460
      %p463 = scmp.ne.s32.totalorder %s446, %s462
      %p464 = scmp.eq.s32.totalorder %s36, 0
      %p465 = por %p463, %p464
      %p466 = scmp.le.s32.totalorder 1, %s30
      %p467 = scmp.lt.s32.totalorder %s30, 3
      %p468 = pnand %p466, %p467
      %p469 = pneg %p468
      // Predicated region
      $region9: #{attention_net_forward.1} parent=5 // pred_check
        _
      $region10: #{attention_net_forward.1} parent=5 // pred_check_branch
        %471 = sbr.rel (%p468) target = $region12
      $region11: #{attention_net_forward.1} parent=5 // pred_region
        %s472 = ssub.s32 %s30, 1
        // Predicated region
        $region13: #{attention_net_forward.1} parent=11 // pred_check
          %p473 = pneg %p181
        $region14: #{attention_net_forward.1} parent=11 // pred_check_branch
          %475 = sbr.rel (%p473) target = $region16
        $region15: #{attention_net_forward.1} parent=11 // pred_region
          _
        $region16: #{attention_net_forward.1} parent=11 // pred_fallthru
          _
        // Predicated region
        $region17: #{attention_net_forward.1} parent=11 // pred_check
          %p476 = pneg %p202
        $region18: #{attention_net_forward.1} parent=11 // pred_check_branch
          %478 = sbr.rel (%p476) target = $region20
        $region19: #{attention_net_forward.1} parent=11 // pred_region
          _
        $region20: #{attention_net_forward.1} parent=11 // pred_fallthru
          _
        // Predicated region
        $region21: #{attention_net_forward.1} parent=11 // pred_check
          %p479 = pneg %p223
        $region22: #{attention_net_forward.1} parent=11 // pred_check_branch
          %481 = sbr.rel (%p479) target = $region24
        $region23: #{attention_net_forward.1} parent=11 // pred_region
          _
        $region24: #{attention_net_forward.1} parent=11 // pred_fallthru
          _
        // Predicated region
        $region25: #{attention_net_forward.1} parent=11 // pred_check
          %p482 = pneg %p244
        $region26: #{attention_net_forward.1} parent=11 // pred_check_branch
          %484 = sbr.rel (%p482) target = $region28
        $region27: #{attention_net_forward.1} parent=11 // pred_region
          _
        $region28: #{attention_net_forward.1} parent=11 // pred_fallthru
          _
        // Predicated region
        $region29: #{attention_net_forward.1} parent=11 // pred_check
          %p485 = pneg %p265
        $region30: #{attention_net_forward.1} parent=11 // pred_check_branch
          %487 = sbr.rel (%p485) target = $region32
        $region31: #{attention_net_forward.1} parent=11 // pred_region
          _
        $region32: #{attention_net_forward.1} parent=11 // pred_fallthru
          _
        // Predicated region
        $region33: #{attention_net_forward.1} parent=11 // pred_check
          %p488 = pneg %p286
        $region34: #{attention_net_forward.1} parent=11 // pred_check_branch
          %490 = sbr.rel (%p488) target = $region36
        $region35: #{attention_net_forward.1} parent=11 // pred_region
          _
        $region36: #{attention_net_forward.1} parent=11 // pred_fallthru
          _
        // Predicated region
        $region37: #{attention_net_forward.1} parent=11 // pred_check
          %p491 = pneg %p307
        $region38: #{attention_net_forward.1} parent=11 // pred_check_branch
          %493 = sbr.rel (%p491) target = $region40
        $region39: #{attention_net_forward.1} parent=11 // pred_region
          _
        $region40: #{attention_net_forward.1} parent=11 // pred_fallthru
          _
        // Predicated region
        $region41: #{attention_net_forward.1} parent=11 // pred_check
          %p494 = pneg %p328
        $region42: #{attention_net_forward.1} parent=11 // pred_check_branch
          %496 = sbr.rel (%p494) target = $region44
        $region43: #{attention_net_forward.1} parent=11 // pred_region
          _
        $region44: #{attention_net_forward.1} parent=11 // pred_fallthru
          _
      $region12: #{attention_net_forward.1} parent=5 // pred_fallthru
        _
      %p497 = scmp.lt.s32.totalorder %s30, 2
      // Predicated region
      $region45: #{attention_net_forward.1} parent=5 // pred_check
        %p498 = pneg %p497
      $region46: #{attention_net_forward.1} parent=5 // pred_check_branch
        %500 = sbr.rel (%p498) target = $region48
      $region47: #{attention_net_forward.1} parent=5 // pred_region
        // Predicated region
        $region49: #{attention_net_forward.1} parent=47 // pred_check
          %p501 = pneg %p50
        $region50: #{attention_net_forward.1} parent=47 // pred_check_branch
          %503 = sbr.rel (%p501) target = $region52
        $region51: #{attention_net_forward.1} parent=47 // pred_region
          %p504 = scmp.lt.s32.totalorder %s30, 1
          %s505 = scalar_select %p504, %s30, 1
          %s506 = smul.addr %s505, 8
          %s507 = scalar_lea.vmem %s0, %s506
        $region52: #{attention_net_forward.1} parent=47 // pred_fallthru
          _
        // Predicated region
        $region53: #{attention_net_forward.1} parent=47 // pred_check
          %p508 = pneg %p76
        $region54: #{attention_net_forward.1} parent=47 // pred_check_branch
          %510 = sbr.rel (%p508) target = $region56
        $region55: #{attention_net_forward.1} parent=47 // pred_region
          %p511 = scmp.lt.s32.totalorder %s30, 1
          %s512 = scalar_select %p511, %s30, 1
          %s513 = smul.addr %s512, 8
          %s514 = scalar_lea.vmem %s1, %s513
        $region56: #{attention_net_forward.1} parent=47 // pred_fallthru
          _
        // Predicated region
        $region57: #{attention_net_forward.1} parent=47 // pred_check
          %p515 = pneg %p102
        $region58: #{attention_net_forward.1} parent=47 // pred_check_branch
          %517 = sbr.rel (%p515) target = $region60
        $region59: #{attention_net_forward.1} parent=47 // pred_region
          %p518 = scmp.lt.s32.totalorder %s30, 1
          %s519 = scalar_select %p518, %s30, 1
          %s520 = smul.addr %s519, 8
          %s521 = scalar_lea.vmem %s2, %s520
        $region60: #{attention_net_forward.1} parent=47 // pred_fallthru
          _
        // Predicated region
        $region61: #{attention_net_forward.1} parent=47 // pred_check
          %p522 = pneg %p128
        $region62: #{attention_net_forward.1} parent=47 // pred_check_branch
          %524 = sbr.rel (%p522) target = $region64
        $region63: #{attention_net_forward.1} parent=47 // pred_region
          %p525 = scmp.lt.s32.totalorder %s30, 1
          %s526 = scalar_select %p525, %s30, 1
          %s527 = smul.addr %s526, 8
          %s528 = scalar_lea.vmem %s3, %s527
        $region64: #{attention_net_forward.1} parent=47 // pred_fallthru
          _
        // Predicated region
        $region65: #{attention_net_forward.1} parent=47 // pred_check
          %p529 = pneg %p154
        $region66: #{attention_net_forward.1} parent=47 // pred_check_branch
          %531 = sbr.rel (%p529) target = $region68
        $region67: #{attention_net_forward.1} parent=47 // pred_region
          %p532 = scmp.lt.s32.totalorder %s30, 1
          %s533 = scalar_select %p532, %s30, 1
          %s534 = smul.addr %s533, 8
          %s535 = scalar_lea.vmem %s4, %s534
        $region68: #{attention_net_forward.1} parent=47 // pred_fallthru
          _
      $region48: #{attention_net_forward.1} parent=5 // pred_fallthru
        _
      %p536 = scmp.le.s32.totalorder 1, %s30
      %p537 = scmp.lt.s32.totalorder %s30, 3
      %p538 = pnand %p536, %p537
      %p539 = pneg %p538
      // Predicated region
      $region69: #{attention_net_forward.1} parent=5 // pred_check
        _
      $region70: #{attention_net_forward.1} parent=5 // pred_check_branch
        %541 = sbr.rel (%p538) target = $region72
      $region71: #{attention_net_forward.1} parent=5 // pred_region
        %s542 = ssub.s32 %s30, 1
        %p543 = scmp.lt.s32.totalorder %s35, 1
        %s544 = scalar_select %p543, %s35, 1
        %s545 = smul.addr %s544, 8
        %s546 = scalar_lea.vmem %s0, %s545
        %p547 = pneg %p56
        %p548 = pneg %p53
        %p549 = scmp.lt.s32.totalorder %s35, 1
        %s550 = scalar_select %p549, %s35, 1
        %s551 = smul.addr %s550, 8
        %s552 = scalar_lea.vmem %s1, %s551
        %p553 = pneg %p82
        %p554 = pneg %p79
        %p555 = scmp.lt.s32.totalorder %s35, 1
        %s556 = scalar_select %p555, %s35, 1
        %s557 = smul.addr %s556, 8
        %s558 = scalar_lea.vmem %s2, %s557
        %p559 = pneg %p108
        %p560 = pneg %p105
        %p561 = scmp.lt.s32.totalorder %s35, 1
        %s562 = scalar_select %p561, %s35, 1
        %s563 = smul.addr %s562, 8
        %s564 = scalar_lea.vmem %s3, %s563
        %p565 = pneg %p134
        %p566 = pneg %p131
        %p567 = scmp.lt.s32.totalorder %s35, 1
        %s568 = scalar_select %p567, %s35, 1
        %s569 = smul.addr %s568, 8
        %s570 = scalar_lea.vmem %s4, %s569
        %p571 = pneg %p160
        %p572 = pneg %p157
        %p573 = pneg %p181
        %p574 = pneg %p178
        %p575 = pneg %p202
        %p576 = pneg %p199
        %p577 = pneg %p223
        %p578 = pneg %p220
        %p579 = pneg %p244
        %p580 = pneg %p241
        %p581 = pneg %p265
        %p582 = pneg %p262
        %p583 = pneg %p286
        %p584 = pneg %p283
        %p585 = pneg %p307
        %p586 = pneg %p304
        %p587 = pneg %p328
        %p588 = pneg %p325
        %p589 = pneg %p354
        %p590 = pneg %p351
        %s591 = sand.u32 %s341, 1
        %s592 = scalar_lea.sflag [#allocation3], %s591
        %s593 = sand.u32 %s341, 1
        %s594 = scalar_lea.vmem [#allocation2], %s593
        %p595 = pneg %p380
        %p596 = pneg %p377
        %s597 = sand.u32 %s367, 1
        %s598 = scalar_lea.sflag [#allocation5], %s597
        %s599 = sand.u32 %s367, 1
        %s600 = scalar_lea.vmem [#allocation4], %s599
        %p601 = pneg %p406
        %p602 = pneg %p403
        %p603 = scmp.lt.s32.totalorder %s35, 1
        %s604 = scalar_select %p603, %s35, 1
        %s605 = scalar_lea.vmem %s15, %s604
        %p606 = pneg %p432
        %p607 = pneg %p429
        %p608 = scmp.lt.s32.totalorder %s35, 1
        %s609 = scalar_select %p608, %s35, 1
        %s610 = scalar_lea.vmem %s16, %s609
        %p611 = pneg %p458
        %p612 = pneg %p455
        %p613 = scmp.lt.s32.totalorder %s35, 1
        %s614 = scalar_select %p613, %s35, 1
        %s615 = smul.addr %s614, 8
        %s616 = scalar_lea.vmem %s17, %s615
        %p617 = scmp.lt.s32.totalorder %s35, 1
        %s618 = scalar_select %p617, %s35, 1
        %s619 = smul.addr %s618, 8
        %s620 = scalar_lea.vmem %s0, %s619
        %p621 = scmp.lt.s32.totalorder %s35, 1
        %s622 = scalar_select %p621, %s35, 1
        %s623 = smul.addr %s622, 8
        %s624 = scalar_lea.vmem %s1, %s623
        %p625 = scmp.lt.s32.totalorder %s35, 1
        %s626 = scalar_select %p625, %s35, 1
        %s627 = smul.addr %s626, 8
        %s628 = scalar_lea.vmem %s2, %s627
        %p629 = scmp.lt.s32.totalorder %s35, 1
        %s630 = scalar_select %p629, %s35, 1
        %s631 = smul.addr %s630, 8
        %s632 = scalar_lea.vmem %s3, %s631
        %p633 = scmp.lt.s32.totalorder %s35, 1
        %s634 = scalar_select %p633, %s35, 1
        %s635 = smul.addr %s634, 8
        %s636 = scalar_lea.vmem %s4, %s635
        %p637 = scmp.lt.s32.totalorder %s35, 1
        %s638 = scalar_select %p637, %s35, 1
        %s639 = scalar_lea.vmem %s15, %s638
        %p640 = scmp.lt.s32.totalorder %s35, 1
        %s641 = scalar_select %p640, %s35, 1
        %s642 = scalar_lea.vmem %s16, %s641
        %p643 = scmp.lt.s32.totalorder %s35, 1
        %s644 = scalar_select %p643, %s35, 1
        %s645 = smul.addr %s644, 8
        %s646 = scalar_lea.vmem %s17, %s645
        %v647 = vlaneseq
        %v648 = vshrl.u32 %v647, 7
        %v649 = vcvt.s32.f32 %v648
        %v650 = vlaneseq
        %v651 = vand.u32 %v650, 127
        %v652 = vcvt.s32.f32 %v651
        %v653 = vld [vmem:[%s628] sm:$0x3f]
        %v654 = vld [vmem:[%s5] sm:$0x7]
        %v655 = vld [vmem:[%s8] sm:$0x1]
        %v657 = vlaneseq
        %v658 = vshrl.u32 %v657, 7
        %v659 = vsub.s32 0, %v658
        %v660 = vrot.slane %v655, %v659
        %vm662 = vcmask 23552
        %v664 = vsel %vm662, %v653, 0
        %vm666 = vcmask 1042432
        %v668 = vsel %vm666, %v654, 0
        %670 = vmatprep.subr.mxu0 0.0
        %671 = vmatpush1.msra.mxu0 %v668
        %672 = vmatprep.subr.mxu0 0.0
        %673 = vmatpush1.msra.mxu0 0.0
        %674 = vmatprep.subr.mxu0 0.0
        %675 = vmatpush1.msra.mxu0 0.0
        %676 = vmatprep.subr.mxu0 0.0
        %677 = vmatpush1.msra.mxu0 0.0
        %678 = vmatprep.subr.mxu0 0.0
        %679 = vmatpush1.msra.mxu0 0.0
        %680 = vmatprep.subr.mxu0 0.0
        %681 = vmatpush1.msra.mxu0 0.0
        %682 = vmatprep.subr.mxu0 0.0
        %683 = vmatpush1.msra.mxu0 0.0
        %684 = vmatprep.subr.mxu0 0.0
        %685 = vmatpush1.msra.mxu0 0.0
        %686 = vmatprep.subr.mxu0 0.0
        %687 = vmatpush1.msra.mxu0 0.0
        %688 = vmatprep.subr.mxu0 0.0
        %689 = vmatpush1.msra.mxu0 0.0
        %690 = vmatprep.subr.mxu0 0.0
        %691 = vmatpush1.msra.mxu0 0.0
        %692 = vmatprep.subr.mxu0 0.0
        %693 = vmatpush1.msra.mxu0 0.0
        %694 = vmatprep.subr.mxu0 0.0
        %695 = vmatpush1.msra.mxu0 0.0
        %696 = vmatprep.subr.mxu0 0.0
        %697 = vmatpush1.msra.mxu0 0.0
        %698 = vmatprep.subr.mxu0 0.0
        %699 = vmatpush1.msra.mxu0 0.0
        %700 = vmatprep.subr.mxu0 0.0
        %701 = vmatpush1.msra.mxu0 0.0
        %702 = vmatprep.subr.mxu0 0.0
        %703 = vmatpush1.msra.mxu0 0.0
        %704 = vmatprep.subr.mxu0 0.0
        %705 = vmatpush1.msra.mxu0 0.0
        %706 = vmatprep.subr.mxu0 0.0
        %707 = vmatpush1.msra.mxu0 0.0
        %708 = vmatprep.subr.mxu0 0.0
        %709 = vmatpush1.msra.mxu0 0.0
        %710 = vmatprep.subr.mxu0 0.0
        %711 = vmatpush1.msra.mxu0 0.0
        %712 = vmatprep.subr.mxu0 0.0
        %713 = vmatpush1.msra.mxu0 0.0
        %714 = vmatprep.subr.mxu0 0.0
        %715 = vmatpush1.msra.mxu0 0.0
        %716 = vmatprep.subr.mxu0 0.0
        %717 = vmatpush1.msra.mxu0 0.0
        %718 = vmatprep.subr.mxu0 0.0
        %719 = vmatpush1.msra.mxu0 0.0
        %720 = vmatprep.subr.mxu0 0.0
        %721 = vmatpush1.msra.mxu0 0.0
        %722 = vmatprep.subr.mxu0 0.0
        %723 = vmatpush1.msra.mxu0 0.0
        %724 = vmatprep.subr.mxu0 0.0
        %725 = vmatpush1.msra.mxu0 0.0
        %726 = vmatprep.subr.mxu0 0.0
        %727 = vmatpush1.msra.mxu0 0.0
        %728 = vmatprep.subr.mxu0 0.0
        %729 = vmatpush1.msra.mxu0 0.0
        %730 = vmatprep.subr.mxu0 0.0
        %731 = vmatpush1.msra.mxu0 0.0
        %732 = vmatprep.subr.mxu0 0.0
        %733 = vmatpush1.msra.mxu0 0.0
        %734 = vmatprep.mubr.f32.mxu0 0.0
        %735 = vmatmul.mubr.f32.gmra.mrb[0].mxu0 %v664
        %v736 = vpop.f32.mrb[0].mxu0
        %v737 = vadd.f32 %v660, %v736
        %v738 = vpop.f32.mrb[0].mxu0
        %739 = vdwg.mxu0
        %v740 = vld [vmem:[%s620] sm:$0xff]
        %v741 = vld [vmem:[%s9] sm:$0x3f]
        %v742 = vld [vmem:[%s10] sm:$0x1]
        %v744 = vlaneseq
        %v745 = vshrl.u32 %v744, 7
        %v746 = vsub.s32 0, %v745
        %v747 = vrot.slane %v742, %v746
        %vm749 = vcmask 48128
        %v751 = vsel %vm749, %v740, 0
        %vm753 = vcmask 1045504
        %v755 = vsel %vm753, %v741, 0
        %757 = vmatprep.subr.mxu0 0.0
        %758 = vmatpush1.msra.mxu0 %v755
        %759 = vmatprep.subr.mxu0 0.0
        %760 = vmatpush1.msra.mxu0 0.0
        %761 = vmatprep.subr.mxu0 0.0
        %762 = vmatpush1.msra.mxu0 0.0
        %763 = vmatprep.subr.mxu0 0.0
        %764 = vmatpush1.msra.mxu0 0.0
        %765 = vmatprep.subr.mxu0 0.0
        %766 = vmatpush1.msra.mxu0 0.0
        %767 = vmatprep.subr.mxu0 0.0
        %768 = vmatpush1.msra.mxu0 0.0
        %769 = vmatprep.subr.mxu0 0.0
        %770 = vmatpush1.msra.mxu0 0.0
        %771 = vmatprep.subr.mxu0 0.0
        %772 = vmatpush1.msra.mxu0 0.0
        %773 = vmatprep.subr.mxu0 0.0
        %774 = vmatpush1.msra.mxu0 0.0
        %775 = vmatprep.subr.mxu0 0.0
        %776 = vmatpush1.msra.mxu0 0.0
        %777 = vmatprep.subr.mxu0 0.0
        %778 = vmatpush1.msra.mxu0 0.0
        %779 = vmatprep.subr.mxu0 0.0
        %780 = vmatpush1.msra.mxu0 0.0
        %781 = vmatprep.subr.mxu0 0.0
        %782 = vmatpush1.msra.mxu0 0.0
        %783 = vmatprep.subr.mxu0 0.0
        %784 = vmatpush1.msra.mxu0 0.0
        %785 = vmatprep.subr.mxu0 0.0
        %786 = vmatpush1.msra.mxu0 0.0
        %787 = vmatprep.subr.mxu0 0.0
        %788 = vmatpush1.msra.mxu0 0.0
        %789 = vmatprep.subr.mxu0 0.0
        %790 = vmatpush1.msra.mxu0 0.0
        %791 = vmatprep.subr.mxu0 0.0
        %792 = vmatpush1.msra.mxu0 0.0
        %793 = vmatprep.subr.mxu0 0.0
        %794 = vmatpush1.msra.mxu0 0.0
        %795 = vmatprep.subr.mxu0 0.0
        %796 = vmatpush1.msra.mxu0 0.0
        %797 = vmatprep.subr.mxu0 0.0
        %798 = vmatpush1.msra.mxu0 0.0
        %799 = vmatprep.subr.mxu0 0.0
        %800 = vmatpush1.msra.mxu0 0.0
        %801 = vmatprep.subr.mxu0 0.0
        %802 = vmatpush1.msra.mxu0 0.0
        %803 = vmatprep.subr.mxu0 0.0
        %804 = vmatpush1.msra.mxu0 0.0
        %805 = vmatprep.subr.mxu0 0.0
        %806 = vmatpush1.msra.mxu0 0.0
        %807 = vmatprep.subr.mxu0 0.0
        %808 = vmatpush1.msra.mxu0 0.0
        %809 = vmatprep.subr.mxu0 0.0
        %810 = vmatpush1.msra.mxu0 0.0
        %811 = vmatprep.subr.mxu0 0.0
        %812 = vmatpush1.msra.mxu0 0.0
        %813 = vmatprep.subr.mxu0 0.0
        %814 = vmatpush1.msra.mxu0 0.0
        %815 = vmatprep.subr.mxu0 0.0
        %816 = vmatpush1.msra.mxu0 0.0
        %817 = vmatprep.subr.mxu0 0.0
        %818 = vmatpush1.msra.mxu0 0.0
        %819 = vmatprep.subr.mxu0 0.0
        %820 = vmatpush1.msra.mxu0 0.0
        %821 = vmatprep.mubr.f32.mxu0 0.0
        %822 = vmatmul.mubr.f32.gmra.mrb[0].mxu0 %v751
        %v823 = vpop.f32.mrb[0].mxu0
        %v824 = vadd.f32 %v747, %v823
        %v825 = vpop.f32.mrb[0].mxu0
        %826 = vdwg.mxu0
        %v827 = vld [vmem:[%s624] sm:$0xff]
        %v828 = vld [vmem:[%s636] sm:$0x3f]
        %v829 = vld [vmem:[%s632] sm:$0x3f]
        %v830 = vld [vmem:[%s6] sm:$0xf]
        %vm831 = vcmask 31744
        %v833 = vsel %vm831, %v829, 0
        %vm835 = vcmask 1043456
        %v837 = vsel %vm835, %v830, 0
        %839 = vmatprep.subr.mxu0 0.0
        %840 = vmatpush1.msra.mxu0 %v837
        %841 = vmatprep.subr.mxu0 0.0
        %842 = vmatpush1.msra.mxu0 0.0
        %843 = vmatprep.subr.mxu0 0.0
        %844 = vmatpush1.msra.mxu0 0.0
        %845 = vmatprep.subr.mxu0 0.0
        %846 = vmatpush1.msra.mxu0 0.0
        %847 = vmatprep.subr.mxu0 0.0
        %848 = vmatpush1.msra.mxu0 0.0
        %849 = vmatprep.subr.mxu0 0.0
        %850 = vmatpush1.msra.mxu0 0.0
        %851 = vmatprep.subr.mxu0 0.0
        %852 = vmatpush1.msra.mxu0 0.0
        %853 = vmatprep.subr.mxu0 0.0
        %854 = vmatpush1.msra.mxu0 0.0
        %855 = vmatprep.subr.mxu0 0.0
        %856 = vmatpush1.msra.mxu0 0.0
        %857 = vmatprep.subr.mxu0 0.0
        %858 = vmatpush1.msra.mxu0 0.0
        %859 = vmatprep.subr.mxu0 0.0
        %860 = vmatpush1.msra.mxu0 0.0
        %861 = vmatprep.subr.mxu0 0.0
        %862 = vmatpush1.msra.mxu0 0.0
        %863 = vmatprep.subr.mxu0 0.0
        %864 = vmatpush1.msra.mxu0 0.0
        %865 = vmatprep.subr.mxu0 0.0
        %866 = vmatpush1.msra.mxu0 0.0
        %867 = vmatprep.subr.mxu0 0.0
        %868 = vmatpush1.msra.mxu0 0.0
        %869 = vmatprep.subr.mxu0 0.0
        %870 = vmatpush1.msra.mxu0 0.0
        %871 = vmatprep.subr.mxu0 0.0
        %872 = vmatpush1.msra.mxu0 0.0
        %873 = vmatprep.subr.mxu0 0.0
        %874 = vmatpush1.msra.mxu0 0.0
        %875 = vmatprep.subr.mxu0 0.0
        %876 = vmatpush1.msra.mxu0 0.0
        %877 = vmatprep.subr.mxu0 0.0
        %878 = vmatpush1.msra.mxu0 0.0
        %879 = vmatprep.subr.mxu0 0.0
        %880 = vmatpush1.msra.mxu0 0.0
        %881 = vmatprep.subr.mxu0 0.0
        %882 = vmatpush1.msra.mxu0 0.0
        %883 = vmatprep.subr.mxu0 0.0
        %884 = vmatpush1.msra.mxu0 0.0
        %885 = vmatprep.subr.mxu0 0.0
        %886 = vmatpush1.msra.mxu0 0.0
        %887 = vmatprep.subr.mxu0 0.0
        %888 = vmatpush1.msra.mxu0 0.0
        %889 = vmatprep.subr.mxu0 0.0
        %890 = vmatpush1.msra.mxu0 0.0
        %891 = vmatprep.subr.mxu0 0.0
        %892 = vmatpush1.msra.mxu0 0.0
        %893 = vmatprep.subr.mxu0 0.0
        %894 = vmatpush1.msra.mxu0 0.0
        %895 = vmatprep.subr.mxu0 0.0
        %896 = vmatpush1.msra.mxu0 0.0
        %897 = vmatprep.subr.mxu0 0.0
        %898 = vmatpush1.msra.mxu0 0.0
        %899 = vmatprep.subr.mxu0 0.0
        %900 = vmatpush1.msra.mxu0 0.0
        %901 = vmatprep.subr.mxu0 0.0
        %902 = vmatpush1.msra.mxu0 0.0
        %903 = vmatprep.mubr.f32.mxu0 0.0
        %904 = vmatmul.mubr.f32.gmra.mrb[0].mxu0 %v833
        %v905 = vpop.f32.mrb[0].mxu0
        %v906 = vadd.f32 0.0, %v905
        %v907 = vpop.f32.mrb[0].mxu0
        %908 = vdwg.mxu0
        %v909 = vadd.f32 %v737, %v906
        %v910 = vld [vmem:[%s7] sm:$0x1]
        %v912 = vlaneseq
        %v913 = vshrl.u32 %v912, 7
        %v914 = vsub.s32 0, %v913
        %v915 = vrot.slane %v910, %v914
        %v917 = vmul.f32 %v915, 0.0
        %v918 = vadd.f32 %v909, %v917
        %v919 = vlaneseq
        %v920 = vshrl.u32 %v919, 7
        %v921 = vsub.s32 0, %v920
        %v922 = vrot.slane %v824, %v921
        %v923 = vmul.f32 %v918, %v922
        %vm924 = vcmask 783360
        %v925 = vsel %vm924, %v923, 0.0
        %926 = vadd.xlane.f32.xlu0 %v925
        %v927 = vpop.xlane.xlu0 %926
        %v928 = vsel %vm753, %v927, -inf
        %v929 = vrot.slane %v928, 4
        %v930 = vmax.f32 %v928, %v929
        %v931 = vrot.slane %v930, 2
        %v932 = vmax.f32 %v930, %v931
        %v933 = vrot.slane %v932, 1
        %v934 = vmax.f32 %v932, %v933
        %v935 = vsub.f32 %v927, %v934
        %v936 = vmul.f32 %v935, 1.442695
        %v937 = vpow.pop %v936
        %v938 = vsel %vm753, %v937, 0.0
        %v939 = vrot.slane %v938, 4
        %v940 = vadd.f32 %v938, %v939
        %v941 = vrot.slane %v940, 2
        %v942 = vadd.f32 %v940, %v941
        %v943 = vrot.slane %v942, 1
        %v944 = vadd.f32 %v942, %v943
        %v945 = vrcp.pop %v944
        %v946 = vmul.f32 %v937, %v945
        %v947 = vmul.f32 %v946, %v918
        %v948 = vsel %vm924, %v947, 0.0
        %v949 = vrot.slane %v948, 4
        %v950 = vadd.f32 %v948, %v949
        %v951 = vrot.slane %v950, 2
        %v952 = vadd.f32 %v950, %v951
        %v953 = vrot.slane %v952, 1
        %v954 = vadd.f32 %v952, %v953
        %v955 = vld [vmem:[%s11] sm:$0xff]
        %v956 = vld [vmem:[%s11 + $0x8] sm:$0xff]
        %v957 = vld [vmem:[%s11 + $0x10] sm:$0xff]
        %v958 = vld [vmem:[%s11 + $0x18] sm:$0xff]
        %v959 = vld [vmem:[%s11 + $0x20] sm:$0xff]
        %v960 = vld [vmem:[%s11 + $0x28] sm:$0xff]
        %v961 = vld [vmem:[%s11 + $0x30] sm:$0xff]
        %v962 = vld [vmem:[%s11 + $0x38] sm:$0xff]
        %v963 = vld [vmem:[%s11 + $0x40] sm:$0xff]
        %v964 = vld [vmem:[%s11 + $0x48] sm:$0xff]
        %v965 = vld [vmem:[%s11 + $0x50] sm:$0xff]
        %v966 = vld [vmem:[%s11 + $0x58] sm:$0xff]
        %vm967 = vcmask 785408
        %v969 = vsel %vm967, %v954, 0
        %971 = vmatprep.subr.mxu0 0.0
        %972 = vmatpush1.msra.mxu0 %v955
        %973 = vmatprep.subr.mxu0 0.0
        %974 = vmatpush1.msra.mxu0 %v956
        %975 = vmatprep.subr.mxu0 0.0
        %976 = vmatpush1.msra.mxu0 %v957
        %977 = vmatprep.subr.mxu0 0.0
        %978 = vmatpush1.msra.mxu0 %v958
        %979 = vmatprep.subr.mxu0 0.0
        %980 = vmatpush1.msra.mxu0 %v959
        %981 = vmatprep.subr.mxu0 0.0
        %982 = vmatpush1.msra.mxu0 %v960
        %983 = vmatprep.subr.mxu0 0.0
        %984 = vmatpush1.msra.mxu0 %v961
        %985 = vmatprep.subr.mxu0 0.0
        %986 = vmatpush1.msra.mxu0 %v962
        %987 = vmatprep.subr.mxu0 0.0
        %988 = vmatpush1.msra.mxu0 %v963
        %989 = vmatprep.subr.mxu0 0.0
        %990 = vmatpush1.msra.mxu0 %v964
        %991 = vmatprep.subr.mxu0 0.0
        %992 = vmatpush1.msra.mxu0 %v965
        %993 = vmatprep.subr.mxu0 0.0
        %994 = vmatpush1.msra.mxu0 %v966
        %995 = vmatprep.subr.mxu0 0.0
        %996 = vmatpush1.msra.mxu0 0.0
        %997 = vmatprep.subr.mxu0 0.0
        %998 = vmatpush1.msra.mxu0 0.0
        %999 = vmatprep.subr.mxu0 0.0
        %1000 = vmatpush1.msra.mxu0 0.0
        %1001 = vmatprep.subr.mxu0 0.0
        %1002 = vmatpush1.msra.mxu0 0.0
        %1003 = vmatprep.subr.mxu0 0.0
        %1004 = vmatpush1.msra.mxu0 0.0
        %1005 = vmatprep.subr.mxu0 0.0
        %1006 = vmatpush1.msra.mxu0 0.0
        %1007 = vmatprep.subr.mxu0 0.0
        %1008 = vmatpush1.msra.mxu0 0.0
        %1009 = vmatprep.subr.mxu0 0.0
        %1010 = vmatpush1.msra.mxu0 0.0
        %1011 = vmatprep.subr.mxu0 0.0
        %1012 = vmatpush1.msra.mxu0 0.0
        %1013 = vmatprep.subr.mxu0 0.0
        %1014 = vmatpush1.msra.mxu0 0.0
        %1015 = vmatprep.subr.mxu0 0.0
        %1016 = vmatpush1.msra.mxu0 0.0
        %1017 = vmatprep.subr.mxu0 0.0
        %1018 = vmatpush1.msra.mxu0 0.0
        %1019 = vmatprep.subr.mxu0 0.0
        %1020 = vmatpush1.msra.mxu0 0.0
        %1021 = vmatprep.subr.mxu0 0.0
        %1022 = vmatpush1.msra.mxu0 0.0
        %1023 = vmatprep.subr.mxu0 0.0
        %1024 = vmatpush1.msra.mxu0 0.0
        %1025 = vmatprep.subr.mxu0 0.0
        %1026 = vmatpush1.msra.mxu0 0.0
        %1027 = vmatprep.subr.mxu0 0.0
        %1028 = vmatpush1.msra.mxu0 0.0
        %1029 = vmatprep.subr.mxu0 0.0
        %1030 = vmatpush1.msra.mxu0 0.0
        %1031 = vmatprep.subr.mxu0 0.0
        %1032 = vmatpush1.msra.mxu0 0.0
        %1033 = vmatprep.subr.mxu0 0.0
        %1034 = vmatpush1.msra.mxu0 0.0
        %1035 = vmatprep.mubr.f32.mxu0 0.0
        %1036 = vmatmul.mubr.f32.gmra.mrb[0].mxu0 %v969
        %v1037 = vpop.f32.mrb[0].mxu0
        %v1038 = vadd.f32 0.0, %v1037
        %v1039 = vpop.f32.mrb[0].mxu0
        %1040 = vdwg.mxu0
        %v1041 = vlaneseq
        %v1042 = vshrl.u32 %v1041, 7
        %v1043 = vsub.s32 0, %v1042
        %v1044 = vrot.slane %v1038, %v1043
        %v1045 = vadd.f32 %v918, %v1044
        %v1046 = vtanh.pop %v1045
        %v1047 = vld [vmem:[%s12] sm:$0x1]
        %v1049 = vlaneseq
        %v1050 = vshrl.u32 %v1049, 7
        %v1051 = vsub.s32 0, %v1050
        %v1052 = vrot.slane %v1047, %v1051
        %v1054 = vmul.f32 %v1046, %v1052
        %v1055 = vsel %vm924, %v1054, 0.0
        %1056 = vadd.xlane.f32.xlu0 %v1055
        %v1057 = vpop.xlane.xlu0 %1056
        %vm1058 = vcmp.gt.f32.partialorder %v828, 0.5
        %v1059 = vsel %vm1058, %v1057, -1036.1633
        %vm1060 = vcmask 5120
        %v1061 = vsel %vm1060, %v1059, -inf
        %v1062 = vrot.slane %v1061, 4
        %v1063 = vmax.f32 %v1061, %v1062
        %v1064 = vrot.slane %v1063, 2
        %v1065 = vmax.f32 %v1063, %v1064
        %v1066 = vrot.slane %v1065, 1
        %v1067 = vmax.f32 %v1065, %v1066
        %v1068 = vsub.f32 %v1059, %v1067
        %v1069 = vmul.f32 %v1068, 1.442695
        %v1070 = vpow.pop %v1069
        %v1071 = vsel %vm1060, %v1070, 0.0
        %v1072 = vrot.slane %v1071, 4
        %v1073 = vadd.f32 %v1071, %v1072
        %v1074 = vrot.slane %v1073, 2
        %v1075 = vadd.f32 %v1073, %v1074
        %v1076 = vrot.slane %v1075, 1
        %v1077 = vadd.f32 %v1075, %v1076
        %v1078 = vrcp.pop %v1077
        %v1079 = vmul.f32 %v1070, %v1078
        %v1080 = vsel %vm1060, %v1079, -inf
        %v1081 = vrot.slane %v1080, 4
        %v1082 = vmax.f32 %v1080, %v1081
        %v1083 = vrot.slane %v1082, 2
        %v1084 = vmax.f32 %v1082, %v1083
        %v1085 = vrot.slane %v1084, 1
        %v1086 = vmax.f32 %v1084, %v1085
        %vm1087 = vcmp.ge.f32.partialorder %v1079, %v1086
        %v1088 = vsel %vm1087, %v649, 6.0
        %v1089 = vsel %vm1060, %v1088, inf
        %v1090 = vrot.slane %v1089, 4
        %v1091 = vmin.f32 %v1089, %v1090
        %v1092 = vrot.slane %v1091, 2
        %v1093 = vmin.f32 %v1091, %v1092
        %v1094 = vrot.slane %v1093, 1
        %v1095 = vmin.f32 %v1093, %v1094
        %vm1096 = vcmp.eq.f32.partialorder %v649, %v1095
        %v1097 = vsel %vm1096, 1, 0
        %v1098 = vcvt.s32.f32 %v1097
        %1100 = vset.pattern.permute.xlu0 0
        %1101 = vperm.xlu0 %1100, %v1098
        %v1102 = vpop.permute.xlu0 %1101
        %v1104 = vmul.f32 %v1102, %v829
        %vm1105 = vcmask 29696
        %v1106 = vsel %vm1105, %v1104, 0.0
        %v1107 = vrot.slane %v1106, 4
        %v1108 = vadd.f32 %v1106, %v1107
        %v1109 = vrot.slane %v1108, 2
        %v1110 = vadd.f32 %v1108, %v1109
        %v1111 = vrot.slane %v1110, 1
        %v1112 = vadd.f32 %v1110, %v1111
        %vm1113 = vcmp.ge.f32.partialorder %v1112, %v827
        %v1114 = vsel %vm1113, 1, 0
        %v1115 = vcvt.s32.f32 %v1114
        %vm1116 = vcmask 24576
        %v1117 = vsel %vm1116, %v1115, inf
        %1118 = vmin.xlane.f32.xlu0 %v1117
        %v1119 = vpop.xlane.xlu0 %1118
        %v1120 = vmul.f32 %v827, %v1119
        %v1121 = vlaneseq
        %v1122 = vshrl.u32 %v1121, 7
        %v1123 = vsub.s32 0, %v1122
        %v1124 = vrot.slane %v1120, %v1123
        %v1125 = vmul.f32 %v1102, %v1124
        %v1126 = vsub.f32 %v829, %v1125
        %vm1127 = vcmp.gt.f32.partialorder %v1119, 0.5
        %v1128 = vsel %vm1127, %v1095, -1.0
        %v1129 = vlaneseq
        %v1130 = vshrl.u32 %v1129, 7
        %v1131 = vsub.s32 0, %v1130
        %v1132 = vrot.slane %v1119, %v1131
        %v1133 = vmul.f32 %v1098, %v1132
        %v1134 = vmax.f32 %v1133, 0.0
        %1136 = vset.pattern.permute.xlu0 0
        %1137 = vperm.xlu0 %1136, %v1095
        %v1138 = vpop.permute.xlu0 %1137
        %vm1140 = vcmp.eq.f32.partialorder %v652, %v1138
        %v1141 = vsel %vm1140, 1, 0
        %v1142 = vcvt.s32.f32 %v1141
        %v1143 = vmul.f32 %v1142, %v1119
        %v1144 = vmax.f32 %v1143, 0.0
        %vm1145 = vcmp.eq.f32.partialorder %v652, 0.0
        %1147 = vset.pattern.permute.xlu0 0
        %1148 = vperm.xlu0 %1147, %v1086
        %v1149 = vpop.permute.xlu0 %1148
        %v1151 = vsel %vm1145, %v1149, 0.0
        %v1152 = vsel %vm1145, %v1138, 0.0
        %1154 = vset.pattern.permute.xlu0 0
        %1155 = vperm.xlu0 %1154, %v1128
        %v1156 = vpop.permute.xlu0 %1155
        %v1158 = vsel %vm1145, %v1156, 0.0
        %v1160 = vsel %vm831, %v1126, 0
        %1162 = vmatprep.subr.mxu0 0.0
        %1163 = vmatpush1.msra.mxu0 %v837
        %1164 = vmatprep.subr.mxu0 0.0
        %1165 = vmatpush1.msra.mxu0 0.0
        %1166 = vmatprep.subr.mxu0 0.0
        %1167 = vmatpush1.msra.mxu0 0.0
        %1168 = vmatprep.subr.mxu0 0.0
        %1169 = vmatpush1.msra.mxu0 0.0
        %1170 = vmatprep.subr.mxu0 0.0
        %1171 = vmatpush1.msra.mxu0 0.0
        %1172 = vmatprep.subr.mxu0 0.0
        %1173 = vmatpush1.msra.mxu0 0.0
        %1174 = vmatprep.subr.mxu0 0.0
        %1175 = vmatpush1.msra.mxu0 0.0
        %1176 = vmatprep.subr.mxu0 0.0
        %1177 = vmatpush1.msra.mxu0 0.0
        %1178 = vmatprep.subr.mxu0 0.0
        %1179 = vmatpush1.msra.mxu0 0.0
        %1180 = vmatprep.subr.mxu0 0.0
        %1181 = vmatpush1.msra.mxu0 0.0
        %1182 = vmatprep.subr.mxu0 0.0
        %1183 = vmatpush1.msra.mxu0 0.0
        %1184 = vmatprep.subr.mxu0 0.0
        %1185 = vmatpush1.msra.mxu0 0.0
        %1186 = vmatprep.subr.mxu0 0.0
        %1187 = vmatpush1.msra.mxu0 0.0
        %1188 = vmatprep.subr.mxu0 0.0
        %1189 = vmatpush1.msra.mxu0 0.0
        %1190 = vmatprep.subr.mxu0 0.0
        %1191 = vmatpush1.msra.mxu0 0.0
        %1192 = vmatprep.subr.mxu0 0.0
        %1193 = vmatpush1.msra.mxu0 0.0
        %1194 = vmatprep.subr.mxu0 0.0
        %1195 = vmatpush1.msra.mxu0 0.0
        %1196 = vmatprep.subr.mxu0 0.0
        %1197 = vmatpush1.msra.mxu0 0.0
        %1198 = vmatprep.subr.mxu0 0.0
        %1199 = vmatpush1.msra.mxu0 0.0
        %1200 = vmatprep.subr.mxu0 0.0
        %1201 = vmatpush1.msra.mxu0 0.0
        %1202 = vmatprep.subr.mxu0 0.0
        %1203 = vmatpush1.msra.mxu0 0.0
        %1204 = vmatprep.subr.mxu0 0.0
        %1205 = vmatpush1.msra.mxu0 0.0
        %1206 = vmatprep.subr.mxu0 0.0
        %1207 = vmatpush1.msra.mxu0 0.0
        %1208 = vmatprep.subr.mxu0 0.0
        %1209 = vmatpush1.msra.mxu0 0.0
        %1210 = vmatprep.subr.mxu0 0.0
        %1211 = vmatpush1.msra.mxu0 0.0
        %1212 = vmatprep.subr.mxu0 0.0
        %1213 = vmatpush1.msra.mxu0 0.0
        %1214 = vmatprep.subr.mxu0 0.0
        %1215 = vmatpush1.msra.mxu0 0.0
        %1216 = vmatprep.subr.mxu0 0.0
        %1217 = vmatpush1.msra.mxu0 0.0
        %1218 = vmatprep.subr.mxu0 0.0
        %1219 = vmatpush1.msra.mxu0 0.0
        %1220 = vmatprep.subr.mxu0 0.0
        %1221 = vmatpush1.msra.mxu0 0.0
        %1222 = vmatprep.subr.mxu0 0.0
        %1223 = vmatpush1.msra.mxu0 0.0
        %1224 = vmatprep.subr.mxu0 0.0
        %1225 = vmatpush1.msra.mxu0 0.0
        %1226 = vmatprep.mubr.f32.mxu0 0.0
        %1227 = vmatmul.mubr.f32.gmra.mrb[0].mxu0 %v1160
        %v1228 = vpop.f32.mrb[0].mxu0
        %v1229 = vadd.f32 0.0, %v1228
        %v1230 = vpop.f32.mrb[0].mxu0
        %1231 = vdwg.mxu0
        %v1232 = vadd.f32 %v737, %v1229
        %1234 = vset.pattern.permute.xlu0 0
        %1235 = vperm.xlu0 %1234, %v1134
        %v1236 = vpop.permute.xlu0 %1235
        %v1238 = vmul.f32 %v1236, %v915
        %v1239 = vadd.f32 %v1232, %v1238
        %v1240 = vlaneseq
        %v1241 = vshrl.u32 %v1240, 7
        %v1242 = vsub.s32 1, %v1241
        %v1243 = vrot.slane %v824, %v1242
        %v1244 = vmul.f32 %v1239, %v1243
        %v1245 = vsel %vm924, %v1244, 0.0
        %1246 = vadd.xlane.f32.xlu0 %v1245
        %v1247 = vpop.xlane.xlu0 %1246
        %v1248 = vsel %vm753, %v1247, -inf
        %v1249 = vrot.slane %v1248, 4
        %v1250 = vmax.f32 %v1248, %v1249
        %v1251 = vrot.slane %v1250, 2
        %v1252 = vmax.f32 %v1250, %v1251
        %v1253 = vrot.slane %v1252, 1
        %v1254 = vmax.f32 %v1252, %v1253
        %v1255 = vsub.f32 %v1247, %v1254
        %v1256 = vmul.f32 %v1255, 1.442695
        %v1257 = vpow.pop %v1256
        %v1258 = vsel %vm753, %v1257, 0.0
        %v1259 = vrot.slane %v1258, 4
        %v1260 = vadd.f32 %v1258, %v1259
        %v1261 = vrot.slane %v1260, 2
        %v1262 = vadd.f32 %v1260, %v1261
        %v1263 = vrot.slane %v1262, 1
        %v1264 = vadd.f32 %v1262, %v1263
        %v1265 = vrcp.pop %v1264
        %v1266 = vmul.f32 %v1257, %v1265
        %v1267 = vmul.f32 %v1266, %v1239
        %v1268 = vsel %vm924, %v1267, 0.0
        %v1269 = vrot.slane %v1268, 4
        %v1270 = vadd.f32 %v1268, %v1269
        %v1271 = vrot.slane %v1270, 2
        %v1272 = vadd.f32 %v1270, %v1271
        %v1273 = vrot.slane %v1272, 1
        %v1274 = vadd.f32 %v1272, %v1273
        %v1276 = vsel %vm967, %v1274, 0
        %1278 = vmatprep.subr.mxu0 0.0
        %1279 = vmatpush1.msra.mxu0 %v955
        %1280 = vmatprep.subr.mxu0 0.0
        %1281 = vmatpush1.msra.mxu0 %v956
        %1282 = vmatprep.subr.mxu0 0.0
        %1283 = vmatpush1.msra.mxu0 %v957
        %1284 = vmatprep.subr.mxu0 0.0
        %1285 = vmatpush1.msra.mxu0 %v958
        %1286 = vmatprep.subr.mxu0 0.0
        %1287 = vmatpush1.msra.mxu0 %v959
        %1288 = vmatprep.subr.mxu0 0.0
        %1289 = vmatpush1.msra.mxu0 %v960
        %1290 = vmatprep.subr.mxu0 0.0
        %1291 = vmatpush1.msra.mxu0 %v961
        %1292 = vmatprep.subr.mxu0 0.0
        %1293 = vmatpush1.msra.mxu0 %v962
        %1294 = vmatprep.subr.mxu0 0.0
        %1295 = vmatpush1.msra.mxu0 %v963
        %1296 = vmatprep.subr.mxu0 0.0
        %1297 = vmatpush1.msra.mxu0 %v964
        %1298 = vmatprep.subr.mxu0 0.0
        %1299 = vmatpush1.msra.mxu0 %v965
        %1300 = vmatprep.subr.mxu0 0.0
        %1301 = vmatpush1.msra.mxu0 %v966
        %1302 = vmatprep.subr.mxu0 0.0
        %1303 = vmatpush1.msra.mxu0 0.0
        %1304 = vmatprep.subr.mxu0 0.0
        %1305 = vmatpush1.msra.mxu0 0.0
        %1306 = vmatprep.subr.mxu0 0.0
        %1307 = vmatpush1.msra.mxu0 0.0
        %1308 = vmatprep.subr.mxu0 0.0
        %1309 = vmatpush1.msra.mxu0 0.0
        %1310 = vmatprep.subr.mxu0 0.0
        %1311 = vmatpush1.msra.mxu0 0.0
        %1312 = vmatprep.subr.mxu0 0.0
        %1313 = vmatpush1.msra.mxu0 0.0
        %1314 = vmatprep.subr.mxu0 0.0
        %1315 = vmatpush1.msra.mxu0 0.0
        %1316 = vmatprep.subr.mxu0 0.0
        %1317 = vmatpush1.msra.mxu0 0.0
        %1318 = vmatprep.subr.mxu0 0.0
        %1319 = vmatpush1.msra.mxu0 0.0
        %1320 = vmatprep.subr.mxu0 0.0
        %1321 = vmatpush1.msra.mxu0 0.0
        %1322 = vmatprep.subr.mxu0 0.0
        %1323 = vmatpush1.msra.mxu0 0.0
        %1324 = vmatprep.subr.mxu0 0.0
        %1325 = vmatpush1.msra.mxu0 0.0
        %1326 = vmatprep.subr.mxu0 0.0
        %1327 = vmatpush1.msra.mxu0 0.0
        %1328 = vmatprep.subr.mxu0 0.0
        %1329 = vmatpush1.msra.mxu0 0.0
        %1330 = vmatprep.subr.mxu0 0.0
        %1331 = vmatpush1.msra.mxu0 0.0
        %1332 = vmatprep.subr.mxu0 0.0
        %1333 = vmatpush1.msra.mxu0 0.0
        %1334 = vmatprep.subr.mxu0 0.0
        %1335 = vmatpush1.msra.mxu0 0.0
        %1336 = vmatprep.subr.mxu0 0.0
        %1337 = vmatpush1.msra.mxu0 0.0
        %1338 = vmatprep.subr.mxu0 0.0
        %1339 = vmatpush1.msra.mxu0 0.0
        %1340 = vmatprep.subr.mxu0 0.0
        %1341 = vmatpush1.msra.mxu0 0.0
        %1342 = vmatprep.mubr.f32.mxu0 0.0
        %1343 = vmatmul.mubr.f32.gmra.mrb[0].mxu0 %v1276
        %v1344 = vpop.f32.mrb[0].mxu0
        %v1345 = vadd.f32 0.0, %v1344
        %v1346 = vpop.f32.mrb[0].mxu0
        %1347 = vdwg.mxu0
        %v1348 = vlaneseq
        %v1349 = vshrl.u32 %v1348, 7
        %v1350 = vsub.s32 0, %v1349
        %v1351 = vrot.slane %v1345, %v1350
        %v1352 = vadd.f32 %v1239, %v1351
        %v1353 = vtanh.pop %v1352
        %v1354 = vmul.f32 %v1353, %v1052
        %v1355 = vsel %vm924, %v1354, 0.0
        %1356 = vadd.xlane.f32.xlu0 %v1355
        %v1357 = vpop.xlane.xlu0 %1356
        %v1358 = vsel %vm1058, %v1357, -1036.1633
        %vm1359 = vcmask 13320
        %v1360 = vsel %vm1359, %v1358, -inf
        %v1361 = vrot.slane %v1360, 4
        %v1362 = vmax.f32 %v1360, %v1361
        %v1363 = vrot.slane %v1362, 2
        %v1364 = vmax.f32 %v1362, %v1363
        %v1365 = vrot.slane %v1364, 1
        %v1366 = vmax.f32 %v1364, %v1365
        %v1367 = vsub.f32 %v1358, %v1366
        %v1368 = vmul.f32 %v1367, 1.442695
        %v1369 = vpow.pop %v1368
        %v1370 = vsel %vm1359, %v1369, 0.0
        %v1371 = vrot.slane %v1370, 4
        %v1372 = vadd.f32 %v1370, %v1371
        %v1373 = vrot.slane %v1372, 2
        %v1374 = vadd.f32 %v1372, %v1373
        %v1375 = vrot.slane %v1374, 1
        %v1376 = vadd.f32 %v1374, %v1375
        %v1377 = vrcp.pop %v1376
        %v1378 = vmul.f32 %v1369, %v1377
        %v1379 = vsel %vm1359, %v1378, -inf
        %v1380 = vrot.slane %v1379, 4
        %v1381 = vmax.f32 %v1379, %v1380
        %v1382 = vrot.slane %v1381, 2
        %v1383 = vmax.f32 %v1381, %v1382
        %v1384 = vrot.slane %v1383, 1
        %v1385 = vmax.f32 %v1383, %v1384
        %vm1386 = vcmp.ge.f32.partialorder %v1378, %v1385
        %v1387 = vsel %vm1386, %v649, 6.0
        %v1388 = vsel %vm1359, %v1387, inf
        %v1389 = vrot.slane %v1388, 4
        %v1390 = vmin.f32 %v1388, %v1389
        %v1391 = vrot.slane %v1390, 2
        %v1392 = vmin.f32 %v1390, %v1391
        %v1393 = vrot.slane %v1392, 1
        %v1394 = vmin.f32 %v1392, %v1393
        %vm1395 = vcmp.eq.f32.partialorder %v649, %v1394
        %v1396 = vsel %vm1395, 1, 0
        %v1397 = vcvt.s32.f32 %v1396
        %1399 = vset.pattern.permute.xlu0 1
        %1400 = vperm.xlu0 %1399, %v1397
        %v1401 = vpop.permute.xlu0 %1400
        %v1403 = vmul.f32 %v1401, %v1126
        %v1404 = vsel %vm1105, %v1403, 0.0
        %v1405 = vrot.slane %v1404, 4
        %v1406 = vadd.f32 %v1404, %v1405
        %v1407 = vrot.slane %v1406, 2
        %v1408 = vadd.f32 %v1406, %v1407
        %v1409 = vrot.slane %v1408, 1
        %v1410 = vadd.f32 %v1408, %v1409
        %vm1411 = vcmp.ge.f32.partialorder %v1410, %v827
        %v1412 = vsel %vm1411, 1, 0
        %v1413 = vcvt.s32.f32 %v1412
        %vm1414 = vcmask 25601
        %v1415 = vsel %vm1414, %v1413, inf
        %1416 = vmin.xlane.f32.xlu0 %v1415
        %v1417 = vpop.xlane.xlu0 %1416
        %v1418 = vmul.f32 %v827, %v1417
        %v1419 = vlaneseq
        %v1420 = vshrl.u32 %v1419, 7
        %v1421 = vsub.s32 1, %v1420
        %v1422 = vrot.slane %v1418, %v1421
        %v1423 = vmul.f32 %v1401, %v1422
        %v1424 = vsub.f32 %v1126, %v1423
        %vm1425 = vcmp.gt.f32.partialorder %v1417, 0.5
        %v1426 = vsel %vm1425, %v1394, -1.0
        %v1427 = vlaneseq
        %v1428 = vshrl.u32 %v1427, 7
        %v1429 = vsub.s32 1, %v1428
        %v1430 = vrot.slane %v1417, %v1429
        %v1431 = vmul.f32 %v1397, %v1430
        %1433 = vrot.lane.b32.xlu0 %v1431, 127
        %v1434 = vpop.permute.xlu0 %1433
        %v1436 = vmax.f32 %v1134, %v1434
        %1438 = vset.pattern.permute.xlu0 1
        %1439 = vperm.xlu0 %1438, %v1394
        %v1440 = vpop.permute.xlu0 %1439
        %vm1442 = vcmp.eq.f32.partialorder %v652, %v1440
        %v1443 = vsel %vm1442, 1, 0
        %v1444 = vcvt.s32.f32 %v1443
        %v1445 = vmul.f32 %v1444, %v1417
        %v1447 = vrot.slane %v1445, 1
        %v1449 = vmax.f32 %v1144, %v1447
        %vm1450 = vcmp.eq.f32.partialorder %v652, 1.0
        %1452 = vset.pattern.permute.xlu0 1
        %1453 = vperm.xlu0 %1452, %v1385
        %v1454 = vpop.permute.xlu0 %1453
        %v1456 = vsel %vm1450, %v1454, %v1151
        %v1457 = vsel %vm1450, %v1440, %v1152
        %1459 = vset.pattern.permute.xlu0 1
        %1460 = vperm.xlu0 %1459, %v1426
        %v1461 = vpop.permute.xlu0 %1460
        %v1464 = vrot.slane %v1158, 7
        %v1466 = vsel %vm1450, %v1461, %v1464
        %v1468 = vsel %vm831, %v1424, 0
        %1470 = vmatprep.subr.mxu0 0.0
        %1471 = vmatpush1.msra.mxu0 %v837
        %1472 = vmatprep.subr.mxu0 0.0
        %1473 = vmatpush1.msra.mxu0 0.0
        %1474 = vmatprep.subr.mxu0 0.0
        %1475 = vmatpush1.msra.mxu0 0.0
        %1476 = vmatprep.subr.mxu0 0.0
        %1477 = vmatpush1.msra.mxu0 0.0
        %1478 = vmatprep.subr.mxu0 0.0
        %1479 = vmatpush1.msra.mxu0 0.0
        %1480 = vmatprep.subr.mxu0 0.0
        %1481 = vmatpush1.msra.mxu0 0.0
        %1482 = vmatprep.subr.mxu0 0.0
        %1483 = vmatpush1.msra.mxu0 0.0
        %1484 = vmatprep.subr.mxu0 0.0
        %1485 = vmatpush1.msra.mxu0 0.0
        %1486 = vmatprep.subr.mxu0 0.0
        %1487 = vmatpush1.msra.mxu0 0.0
        %1488 = vmatprep.subr.mxu0 0.0
        %1489 = vmatpush1.msra.mxu0 0.0
        %1490 = vmatprep.subr.mxu0 0.0
        %1491 = vmatpush1.msra.mxu0 0.0
        %1492 = vmatprep.subr.mxu0 0.0
        %1493 = vmatpush1.msra.mxu0 0.0
        %1494 = vmatprep.subr.mxu0 0.0
        %1495 = vmatpush1.msra.mxu0 0.0
        %1496 = vmatprep.subr.mxu0 0.0
        %1497 = vmatpush1.msra.mxu0 0.0
        %1498 = vmatprep.subr.mxu0 0.0
        %1499 = vmatpush1.msra.mxu0 0.0
        %1500 = vmatprep.subr.mxu0 0.0
        %1501 = vmatpush1.msra.mxu0 0.0
        %1502 = vmatprep.subr.mxu0 0.0
        %1503 = vmatpush1.msra.mxu0 0.0
        %1504 = vmatprep.subr.mxu0 0.0
        %1505 = vmatpush1.msra.mxu0 0.0
        %1506 = vmatprep.subr.mxu0 0.0
        %1507 = vmatpush1.msra.mxu0 0.0
        %1508 = vmatprep.subr.mxu0 0.0
        %1509 = vmatpush1.msra.mxu0 0.0
        %1510 = vmatprep.subr.mxu0 0.0
        %1511 = vmatpush1.msra.mxu0 0.0
        %1512 = vmatprep.subr.mxu0 0.0
        %1513 = vmatpush1.msra.mxu0 0.0
        %1514 = vmatprep.subr.mxu0 0.0
        %1515 = vmatpush1.msra.mxu0 0.0
        %1516 = vmatprep.subr.mxu0 0.0
        %1517 = vmatpush1.msra.mxu0 0.0
        %1518 = vmatprep.subr.mxu0 0.0
        %1519 = vmatpush1.msra.mxu0 0.0
        %1520 = vmatprep.subr.mxu0 0.0
        %1521 = vmatpush1.msra.mxu0 0.0
        %1522 = vmatprep.subr.mxu0 0.0
        %1523 = vmatpush1.msra.mxu0 0.0
        %1524 = vmatprep.subr.mxu0 0.0
        %1525 = vmatpush1.msra.mxu0 0.0
        %1526 = vmatprep.subr.mxu0 0.0
        %1527 = vmatpush1.msra.mxu0 0.0
        %1528 = vmatprep.subr.mxu0 0.0
        %1529 = vmatpush1.msra.mxu0 0.0
        %1530 = vmatprep.subr.mxu0 0.0
        %1531 = vmatpush1.msra.mxu0 0.0
        %1532 = vmatprep.subr.mxu0 0.0
        %1533 = vmatpush1.msra.mxu0 0.0
        %1534 = vmatprep.mubr.f32.mxu0 0.0
        %1535 = vmatmul.mubr.f32.gmra.mrb[0].mxu0 %v1468
        %v1536 = vpop.f32.mrb[0].mxu0
        %v1537 = vadd.f32 0.0, %v1536
        %v1538 = vpop.f32.mrb[0].mxu0
        %1539 = vdwg.mxu0
        %v1540 = vadd.f32 %v737, %v1537
        %1542 = vset.pattern.permute.xlu0 0
        %1543 = vperm.xlu0 %1542, %v1436
        %v1544 = vpop.permute.xlu0 %1543
        %v1546 = vmul.f32 %v1544, %v915
        %v1547 = vadd.f32 %v1540, %v1546
        %v1548 = vlaneseq
        %v1549 = vshrl.u32 %v1548, 7
        %v1550 = vsub.s32 2, %v1549
        %v1551 = vrot.slane %v824, %v1550
        %v1552 = vmul.f32 %v1547, %v1551
        %v1553 = vsel %vm924, %v1552, 0.0
        %1554 = vadd.xlane.f32.xlu0 %v1553
        %v1555 = vpop.xlane.xlu0 %1554
        %v1556 = vsel %vm753, %v1555, -inf
        %v1557 = vrot.slane %v1556, 4
        %v1558 = vmax.f32 %v1556, %v1557
        %v1559 = vrot.slane %v1558, 2
        %v1560 = vmax.f32 %v1558, %v1559
        %v1561 = vrot.slane %v1560, 1
        %v1562 = vmax.f32 %v1560, %v1561
        %v1563 = vsub.f32 %v1555, %v1562
        %v1564 = vmul.f32 %v1563, 1.442695
        %v1565 = vpow.pop %v1564
        %v1566 = vsel %vm753, %v1565, 0.0
        %v1567 = vrot.slane %v1566, 4
        %v1568 = vadd.f32 %v1566, %v1567
        %v1569 = vrot.slane %v1568, 2
        %v1570 = vadd.f32 %v1568, %v1569
        %v1571 = vrot.slane %v1570, 1
        %v1572 = vadd.f32 %v1570, %v1571
        %v1573 = vrcp.pop %v1572
        %v1574 = vmul.f32 %v1565, %v1573
        %v1575 = vmul.f32 %v1574, %v1547
        %v1576 = vsel %vm924, %v1575, 0.0
        %v1577 = vrot.slane %v1576, 4
        %v1578 = vadd.f32 %v1576, %v1577
        %v1579 = vrot.slane %v1578, 2
        %v1580 = vadd.f32 %v1578, %v1579
        %v1581 = vrot.slane %v1580, 1
        %v1582 = vadd.f32 %v1580, %v1581
        %v1584 = vsel %vm967, %v1582, 0
        %1586 = vmatprep.subr.mxu0 0.0
        %1587 = vmatpush1.msra.mxu0 %v955
        %1588 = vmatprep.subr.mxu0 0.0
        %1589 = vmatpush1.msra.mxu0 %v956
        %1590 = vmatprep.subr.mxu0 0.0
        %1591 = vmatpush1.msra.mxu0 %v957
        %1592 = vmatprep.subr.mxu0 0.0
        %1593 = vmatpush1.msra.mxu0 %v958
        %1594 = vmatprep.subr.mxu0 0.0
        %1595 = vmatpush1.msra.mxu0 %v959
        %1596 = vmatprep.subr.mxu0 0.0
        %1597 = vmatpush1.msra.mxu0 %v960
        %1598 = vmatprep.subr.mxu0 0.0
        %1599 = vmatpush1.msra.mxu0 %v961
        %1600 = vmatprep.subr.mxu0 0.0
        %1601 = vmatpush1.msra.mxu0 %v962
        %1602 = vmatprep.subr.mxu0 0.0
        %1603 = vmatpush1.msra.mxu0 %v963
        %1604 = vmatprep.subr.mxu0 0.0
        %1605 = vmatpush1.msra.mxu0 %v964
        %1606 = vmatprep.subr.mxu0 0.0
        %1607 = vmatpush1.msra.mxu0 %v965
        %1608 = vmatprep.subr.mxu0 0.0
        %1609 = vmatpush1.msra.mxu0 %v966
        %1610 = vmatprep.subr.mxu0 0.0
        %1611 = vmatpush1.msra.mxu0 0.0
        %1612 = vmatprep.subr.mxu0 0.0
        %1613 = vmatpush1.msra.mxu0 0.0
        %1614 = vmatprep.subr.mxu0 0.0
        %1615 = vmatpush1.msra.mxu0 0.0
        %1616 = vmatprep.subr.mxu0 0.0
        %1617 = vmatpush1.msra.mxu0 0.0
        %1618 = vmatprep.subr.mxu0 0.0
        %1619 = vmatpush1.msra.mxu0 0.0
        %1620 = vmatprep.subr.mxu0 0.0
        %1621 = vmatpush1.msra.mxu0 0.0
        %1622 = vmatprep.subr.mxu0 0.0
        %1623 = vmatpush1.msra.mxu0 0.0
        %1624 = vmatprep.subr.mxu0 0.0
        %1625 = vmatpush1.msra.mxu0 0.0
        %1626 = vmatprep.subr.mxu0 0.0
        %1627 = vmatpush1.msra.mxu0 0.0
        %1628 = vmatprep.subr.mxu0 0.0
        %1629 = vmatpush1.msra.mxu0 0.0
        %1630 = vmatprep.subr.mxu0 0.0
        %1631 = vmatpush1.msra.mxu0 0.0
        %1632 = vmatprep.subr.mxu0 0.0
        %1633 = vmatpush1.msra.mxu0 0.0
        %1634 = vmatprep.subr.mxu0 0.0
        %1635 = vmatpush1.msra.mxu0 0.0
        %1636 = vmatprep.subr.mxu0 0.0
        %1637 = vmatpush1.msra.mxu0 0.0
        %1638 = vmatprep.subr.mxu0 0.0
        %1639 = vmatpush1.msra.mxu0 0.0
        %1640 = vmatprep.subr.mxu0 0.0
        %1641 = vmatpush1.msra.mxu0 0.0
        %1642 = vmatprep.subr.mxu0 0.0
        %1643 = vmatpush1.msra.mxu0 0.0
        %1644 = vmatprep.subr.mxu0 0.0
        %1645 = vmatpush1.msra.mxu0 0.0
        %1646 = vmatprep.subr.mxu0 0.0
        %1647 = vmatpush1.msra.mxu0 0.0
        %1648 = vmatprep.subr.mxu0 0.0
        %1649 = vmatpush1.msra.mxu0 0.0
        %1650 = vmatprep.mubr.f32.mxu0 0.0
        %1651 = vmatmul.mubr.f32.gmra.mrb[0].mxu0 %v1584
        %v1652 = vpop.f32.mrb[0].mxu0
        %v1653 = vadd.f32 0.0, %v1652
        %v1654 = vpop.f32.mrb[0].mxu0
        %1655 = vdwg.mxu0
        %v1656 = vlaneseq
        %v1657 = vshrl.u32 %v1656, 7
        %v1658 = vsub.s32 0, %v1657
        %v1659 = vrot.slane %v1653, %v1658
        %v1660 = vadd.f32 %v1547, %v1659
        %v1661 = vtanh.pop %v1660
        %v1662 = vmul.f32 %v1661, %v1052
        %v1663 = vsel %vm924, %v1662, 0.0
        %1664 = vadd.xlane.f32.xlu0 %v1663
        %v1665 = vpop.xlane.xlu0 %1664
        %v1666 = vsel %vm1058, %v1665, -1036.1633
        %vm1667 = vcmask 21520
        %v1668 = vsel %vm1667, %v1666, -inf
        %v1669 = vrot.slane %v1668, 4
        %v1670 = vmax.f32 %v1668, %v1669
        %v1671 = vrot.slane %v1670, 2
        %v1672 = vmax.f32 %v1670, %v1671
        %v1673 = vrot.slane %v1672, 1
        %v1674 = vmax.f32 %v1672, %v1673
        %v1675 = vsub.f32 %v1666, %v1674
        %v1676 = vmul.f32 %v1675, 1.442695
        %v1677 = vpow.pop %v1676
        %v1678 = vsel %vm1667, %v1677, 0.0
        %v1679 = vrot.slane %v1678, 4
        %v1680 = vadd.f32 %v1678, %v1679
        %v1681 = vrot.slane %v1680, 2
        %v1682 = vadd.f32 %v1680, %v1681
        %v1683 = vrot.slane %v1682, 1
        %v1684 = vadd.f32 %v1682, %v1683
        %v1685 = vrcp.pop %v1684
        %v1686 = vmul.f32 %v1677, %v1685
        %v1687 = vsel %vm1667, %v1686, -inf
        %v1688 = vrot.slane %v1687, 4
        %v1689 = vmax.f32 %v1687, %v1688
        %v1690 = vrot.slane %v1689, 2
        %v1691 = vmax.f32 %v1689, %v1690
        %v1692 = vrot.slane %v1691, 1
        %v1693 = vmax.f32 %v1691, %v1692
        %vm1694 = vcmp.ge.f32.partialorder %v1686, %v1693
        %v1695 = vsel %vm1694, %v649, 6.0
        %v1696 = vsel %vm1667, %v1695, inf
        %v1697 = vrot.slane %v1696, 4
        %v1698 = vmin.f32 %v1696, %v1697
        %v1699 = vrot.slane %v1698, 2
        %v1700 = vmin.f32 %v1698, %v1699
        %v1701 = vrot.slane %v1700, 1
        %v1702 = vmin.f32 %v1700, %v1701
        %vm1703 = vcmp.eq.f32.partialorder %v649, %v1702
        %v1704 = vsel %vm1703, 1, 0
        %v1705 = vcvt.s32.f32 %v1704
        %1707 = vset.pattern.permute.xlu0 2
        %1708 = vperm.xlu0 %1707, %v1705
        %v1709 = vpop.permute.xlu0 %1708
        %v1711 = vmul.f32 %v1709, %v1424
        %v1712 = vsel %vm1105, %v1711, 0.0
        %v1713 = vrot.slane %v1712, 4
        %v1714 = vadd.f32 %v1712, %v1713
        %v1715 = vrot.slane %v1714, 2
        %v1716 = vadd.f32 %v1714, %v1715
        %v1717 = vrot.slane %v1716, 1
        %v1718 = vadd.f32 %v1716, %v1717
        %vm1719 = vcmp.ge.f32.partialorder %v1718, %v827
        %v1720 = vsel %vm1719, 1, 0
        %v1721 = vcvt.s32.f32 %v1720
        %vm1722 = vcmask 26626
        %v1723 = vsel %vm1722, %v1721, inf
        %1724 = vmin.xlane.f32.xlu0 %v1723
        %v1725 = vpop.xlane.xlu0 %1724
        %v1726 = vmul.f32 %v827, %v1725
        %v1727 = vlaneseq
        %v1728 = vshrl.u32 %v1727, 7
        %v1729 = vsub.s32 2, %v1728
        %v1730 = vrot.slane %v1726, %v1729
        %v1731 = vmul.f32 %v1709, %v1730
        %v1732 = vsub.f32 %v1424, %v1731
        %vm1733 = vcmp.gt.f32.partialorder %v1725, 0.5
        %v1734 = vsel %vm1733, %v1702, -1.0
        %v1735 = vlaneseq
        %v1736 = vshrl.u32 %v1735, 7
        %v1737 = vsub.s32 2, %v1736
        %v1738 = vrot.slane %v1725, %v1737
        %v1739 = vmul.f32 %v1705, %v1738
        %1741 = vrot.lane.b32.xlu0 %v1739, 126
        %v1742 = vpop.permute.xlu0 %1741
        %v1744 = vmax.f32 %v1436, %v1742
        %1746 = vset.pattern.permute.xlu0 2
        %1747 = vperm.xlu0 %1746, %v1702
        %v1748 = vpop.permute.xlu0 %1747
        %vm1750 = vcmp.eq.f32.partialorder %v652, %v1748
        %v1751 = vsel %vm1750, 1, 0
        %v1752 = vcvt.s32.f32 %v1751
        %v1753 = vmul.f32 %v1752, %v1725
        %v1755 = vrot.slane %v1753, 2
        %v1757 = vmax.f32 %v1449, %v1755
        %vm1758 = vcmp.eq.f32.partialorder %v652, 2.0
        %1760 = vset.pattern.permute.xlu0 2
        %1761 = vperm.xlu0 %1760, %v1693
        %v1762 = vpop.permute.xlu0 %1761
        %v1764 = vsel %vm1758, %v1762, %v1456
        %v1765 = vsel %vm1758, %v1748, %v1457
        %1767 = vset.pattern.permute.xlu0 2
        %1768 = vperm.xlu0 %1767, %v1734
        %v1769 = vpop.permute.xlu0 %1768
        %v1772 = vrot.slane %v1466, 7
        %v1774 = vsel %vm1758, %v1769, %v1772
        %v1776 = vsel %vm831, %v1732, 0
        %1778 = vmatprep.subr.mxu0 0.0
        %1779 = vmatpush1.msra.mxu0 %v837
        %1780 = vmatprep.subr.mxu0 0.0
        %1781 = vmatpush1.msra.mxu0 0.0
        %1782 = vmatprep.subr.mxu0 0.0
        %1783 = vmatpush1.msra.mxu0 0.0
        %1784 = vmatprep.subr.mxu0 0.0
        %1785 = vmatpush1.msra.mxu0 0.0
        %1786 = vmatprep.subr.mxu0 0.0
        %1787 = vmatpush1.msra.mxu0 0.0
        %1788 = vmatprep.subr.mxu0 0.0
        %1789 = vmatpush1.msra.mxu0 0.0
        %1790 = vmatprep.subr.mxu0 0.0
        %1791 = vmatpush1.msra.mxu0 0.0
        %1792 = vmatprep.subr.mxu0 0.0
        %1793 = vmatpush1.msra.mxu0 0.0
        %1794 = vmatprep.subr.mxu0 0.0
        %1795 = vmatpush1.msra.mxu0 0.0
        %1796 = vmatprep.subr.mxu0 0.0
        %1797 = vmatpush1.msra.mxu0 0.0
        %1798 = vmatprep.subr.mxu0 0.0
        %1799 = vmatpush1.msra.mxu0 0.0
        %1800 = vmatprep.subr.mxu0 0.0
        %1801 = vmatpush1.msra.mxu0 0.0
        %1802 = vmatprep.subr.mxu0 0.0
        %1803 = vmatpush1.msra.mxu0 0.0
        %1804 = vmatprep.subr.mxu0 0.0
        %1805 = vmatpush1.msra.mxu0 0.0
        %1806 = vmatprep.subr.mxu0 0.0
        %1807 = vmatpush1.msra.mxu0 0.0
        %1808 = vmatprep.subr.mxu0 0.0
        %1809 = vmatpush1.msra.mxu0 0.0
        %1810 = vmatprep.subr.mxu0 0.0
        %1811 = vmatpush1.msra.mxu0 0.0
        %1812 = vmatprep.subr.mxu0 0.0
        %1813 = vmatpush1.msra.mxu0 0.0
        %1814 = vmatprep.subr.mxu0 0.0
        %1815 = vmatpush1.msra.mxu0 0.0
        %1816 = vmatprep.subr.mxu0 0.0
        %1817 = vmatpush1.msra.mxu0 0.0
        %1818 = vmatprep.subr.mxu0 0.0
        %1819 = vmatpush1.msra.mxu0 0.0
        %1820 = vmatprep.subr.mxu0 0.0
        %1821 = vmatpush1.msra.mxu0 0.0
        %1822 = vmatprep.subr.mxu0 0.0
        %1823 = vmatpush1.msra.mxu0 0.0
        %1824 = vmatprep.subr.mxu0 0.0
        %1825 = vmatpush1.msra.mxu0 0.0
        %1826 = vmatprep.subr.mxu0 0.0
        %1827 = vmatpush1.msra.mxu0 0.0
        %1828 = vmatprep.subr.mxu0 0.0
        %1829 = vmatpush1.msra.mxu0 0.0
        %1830 = vmatprep.subr.mxu0 0.0
        %1831 = vmatpush1.msra.mxu0 0.0
        %1832 = vmatprep.subr.mxu0 0.0
        %1833 = vmatpush1.msra.mxu0 0.0
        %1834 = vmatprep.subr.mxu0 0.0
        %1835 = vmatpush1.msra.mxu0 0.0
        %1836 = vmatprep.subr.mxu0 0.0
        %1837 = vmatpush1.msra.mxu0 0.0
        %1838 = vmatprep.subr.mxu0 0.0
        %1839 = vmatpush1.msra.mxu0 0.0
        %1840 = vmatprep.subr.mxu0 0.0
        %1841 = vmatpush1.msra.mxu0 0.0
        %1842 = vmatprep.mubr.f32.mxu0 0.0
        %1843 = vmatmul.mubr.f32.gmra.mrb[0].mxu0 %v1776
        %v1844 = vpop.f32.mrb[0].mxu0
        %v1845 = vadd.f32 0.0, %v1844
        %v1846 = vpop.f32.mrb[0].mxu0
        %1847 = vdwg.mxu0
        %v1848 = vadd.f32 %v737, %v1845
        %1850 = vset.pattern.permute.xlu0 0
        %1851 = vperm.xlu0 %1850, %v1744
        %v1852 = vpop.permute.xlu0 %1851
        %v1854 = vmul.f32 %v1852, %v915
        %v1855 = vadd.f32 %v1848, %v1854
        %v1856 = vlaneseq
        %v1857 = vshrl.u32 %v1856, 7
        %v1858 = vsub.s32 3, %v1857
        %v1859 = vrot.slane %v824, %v1858
        %v1860 = vmul.f32 %v1855, %v1859
        %v1861 = vsel %vm924, %v1860, 0.0
        %1862 = vadd.xlane.f32.xlu0 %v1861
        %v1863 = vpop.xlane.xlu0 %1862
        %v1864 = vsel %vm753, %v1863, -inf
        %v1865 = vrot.slane %v1864, 4
        %v1866 = vmax.f32 %v1864, %v1865
        %v1867 = vrot.slane %v1866, 2
        %v1868 = vmax.f32 %v1866, %v1867
        %v1869 = vrot.slane %v1868, 1
        %v1870 = vmax.f32 %v1868, %v1869
        %v1871 = vsub.f32 %v1863, %v1870
        %v1872 = vmul.f32 %v1871, 1.442695
        %v1873 = vpow.pop %v1872
        %v1874 = vsel %vm753, %v1873, 0.0
        %v1875 = vrot.slane %v1874, 4
        %v1876 = vadd.f32 %v1874, %v1875
        %v1877 = vrot.slane %v1876, 2
        %v1878 = vadd.f32 %v1876, %v1877
        %v1879 = vrot.slane %v1878, 1
        %v1880 = vadd.f32 %v1878, %v1879
        %v1881 = vrcp.pop %v1880
        %v1882 = vmul.f32 %v1873, %v1881
        %v1883 = vmul.f32 %v1882, %v1855
        %v1884 = vsel %vm924, %v1883, 0.0
        %v1885 = vrot.slane %v1884, 4
        %v1886 = vadd.f32 %v1884, %v1885
        %v1887 = vrot.slane %v1886, 2
        %v1888 = vadd.f32 %v1886, %v1887
        %v1889 = vrot.slane %v1888, 1
        %v1890 = vadd.f32 %v1888, %v1889
        %v1892 = vsel %vm967, %v1890, 0
        %1894 = vmatprep.subr.mxu0 0.0
        %1895 = vmatpush1.msra.mxu0 %v955
        %1896 = vmatprep.subr.mxu0 0.0
        %1897 = vmatpush1.msra.mxu0 %v956
        %1898 = vmatprep.subr.mxu0 0.0
        %1899 = vmatpush1.msra.mxu0 %v957
        %1900 = vmatprep.subr.mxu0 0.0
        %1901 = vmatpush1.msra.mxu0 %v958
        %1902 = vmatprep.subr.mxu0 0.0
        %1903 = vmatpush1.msra.mxu0 %v959
        %1904 = vmatprep.subr.mxu0 0.0
        %1905 = vmatpush1.msra.mxu0 %v960
        %1906 = vmatprep.subr.mxu0 0.0
        %1907 = vmatpush1.msra.mxu0 %v961
        %1908 = vmatprep.subr.mxu0 0.0
        %1909 = vmatpush1.msra.mxu0 %v962
        %1910 = vmatprep.subr.mxu0 0.0
        %1911 = vmatpush1.msra.mxu0 %v963
        %1912 = vmatprep.subr.mxu0 0.0
        %1913 = vmatpush1.msra.mxu0 %v964
        %1914 = vmatprep.subr.mxu0 0.0
        %1915 = vmatpush1.msra.mxu0 %v965
        %1916 = vmatprep.subr.mxu0 0.0
        %1917 = vmatpush1.msra.mxu0 %v966
        %1918 = vmatprep.subr.mxu0 0.0
        %1919 = vmatpush1.msra.mxu0 0.0
        %1920 = vmatprep.subr.mxu0 0.0
        %1921 = vmatpush1.msra.mxu0 0.0
        %1922 = vmatprep.subr.mxu0 0.0
        %1923 = vmatpush1.msra.mxu0 0.0
        %1924 = vmatprep.subr.mxu0 0.0
        %1925 = vmatpush1.msra.mxu0 0.0
        %1926 = vmatprep.subr.mxu0 0.0
        %1927 = vmatpush1.msra.mxu0 0.0
        %1928 = vmatprep.subr.mxu0 0.0
        %1929 = vmatpush1.msra.mxu0 0.0
        %1930 = vmatprep.subr.mxu0 0.0
        %1931 = vmatpush1.msra.mxu0 0.0
        %1932 = vmatprep.subr.mxu0 0.0
        %1933 = vmatpush1.msra.mxu0 0.0
        %1934 = vmatprep.subr.mxu0 0.0
        %1935 = vmatpush1.msra.mxu0 0.0
        %1936 = vmatprep.subr.mxu0 0.0
        %1937 = vmatpush1.msra.mxu0 0.0
        %1938 = vmatprep.subr.mxu0 0.0
        %1939 = vmatpush1.msra.mxu0 0.0
        %1940 = vmatprep.subr.mxu0 0.0
        %1941 = vmatpush1.msra.mxu0 0.0
        %1942 = vmatprep.subr.mxu0 0.0
        %1943 = vmatpush1.msra.mxu0 0.0
        %1944 = vmatprep.subr.mxu0 0.0
        %1945 = vmatpush1.msra.mxu0 0.0
        %1946 = vmatprep.subr.mxu0 0.0
        %1947 = vmatpush1.msra.mxu0 0.0
        %1948 = vmatprep.subr.mxu0 0.0
        %1949 = vmatpush1.msra.mxu0 0.0
        %1950 = vmatprep.subr.mxu0 0.0
        %1951 = vmatpush1.msra.mxu0 0.0
        %1952 = vmatprep.subr.mxu0 0.0
        %1953 = vmatpush1.msra.mxu0 0.0
        %1954 = vmatprep.subr.mxu0 0.0
        %1955 = vmatpush1.msra.mxu0 0.0
        %1956 = vmatprep.subr.mxu0 0.0
        %1957 = vmatpush1.msra.mxu0 0.0
        %1958 = vmatprep.mubr.f32.mxu0 0.0
        %1959 = vmatmul.mubr.f32.gmra.mrb[0].mxu0 %v1892
        %v1960 = vpop.f32.mrb[0].mxu0
        %v1961 = vadd.f32 0.0, %v1960
        %v1962 = vpop.f32.mrb[0].mxu0
        %1963 = vdwg.mxu0
        %v1964 = vlaneseq
        %v1965 = vshrl.u32 %v1964, 7
        %v1966 = vsub.s32 0, %v1965
        %v1967 = vrot.slane %v1961, %v1966
        %v1968 = vadd.f32 %v1855, %v1967
        %v1969 = vtanh.pop %v1968
        %v1970 = vmul.f32 %v1969, %v1052
        %v1971 = vsel %vm924, %v1970, 0.0
        %1972 = vadd.xlane.f32.xlu0 %v1971
        %v1973 = vpop.xlane.xlu0 %1972
        %v1974 = vsel %vm1058, %v1973, -1036.1633
        %vm1975 = vcmask 29720
        %v1976 = vsel %vm1975, %v1974, -inf
        %v1977 = vrot.slane %v1976, 4
        %v1978 = vmax.f32 %v1976, %v1977
        %v1979 = vrot.slane %v1978, 2
        %v1980 = vmax.f32 %v1978, %v1979
        %v1981 = vrot.slane %v1980, 1
        %v1982 = vmax.f32 %v1980, %v1981
        %v1983 = vsub.f32 %v1974, %v1982
        %v1984 = vmul.f32 %v1983, 1.442695
        %v1985 = vpow.pop %v1984
        %v1986 = vsel %vm1975, %v1985, 0.0
        %v1987 = vrot.slane %v1986, 4
        %v1988 = vadd.f32 %v1986, %v1987
        %v1989 = vrot.slane %v1988, 2
        %v1990 = vadd.f32 %v1988, %v1989
        %v1991 = vrot.slane %v1990, 1
        %v1992 = vadd.f32 %v1990, %v1991
        %v1993 = vrcp.pop %v1992
        %v1994 = vmul.f32 %v1985, %v1993
        %v1995 = vsel %vm1975, %v1994, -inf
        %v1996 = vrot.slane %v1995, 4
        %v1997 = vmax.f32 %v1995, %v1996
        %v1998 = vrot.slane %v1997, 2
        %v1999 = vmax.f32 %v1997, %v1998
        %v2000 = vrot.slane %v1999, 1
        %v2001 = vmax.f32 %v1999, %v2000
        %vm2002 = vcmp.ge.f32.partialorder %v1994, %v2001
        %v2003 = vsel %vm2002, %v649, 6.0
        %v2004 = vsel %vm1975, %v2003, inf
        %v2005 = vrot.slane %v2004, 4
        %v2006 = vmin.f32 %v2004, %v2005
        %v2007 = vrot.slane %v2006, 2
        %v2008 = vmin.f32 %v2006, %v2007
        %v2009 = vrot.slane %v2008, 1
        %v2010 = vmin.f32 %v2008, %v2009
        %vm2011 = vcmp.eq.f32.partialorder %v649, %v2010
        %v2012 = vsel %vm2011, 1, 0
        %v2013 = vcvt.s32.f32 %v2012
        %2015 = vset.pattern.permute.xlu0 3
        %2016 = vperm.xlu0 %2015, %v2013
        %v2017 = vpop.permute.xlu0 %2016
        %v2019 = vmul.f32 %v2017, %v1732
        %v2020 = vsel %vm1105, %v2019, 0.0
        %v2021 = vrot.slane %v2020, 4
        %v2022 = vadd.f32 %v2020, %v2021
        %v2023 = vrot.slane %v2022, 2
        %v2024 = vadd.f32 %v2022, %v2023
        %v2025 = vrot.slane %v2024, 1
        %v2026 = vadd.f32 %v2024, %v2025
        %vm2027 = vcmp.ge.f32.partialorder %v2026, %v827
        %v2028 = vsel %vm2027, 1, 0
        %v2029 = vcvt.s32.f32 %v2028
        %vm2030 = vcmask 27651
        %v2031 = vsel %vm2030, %v2029, inf
        %2032 = vmin.xlane.f32.xlu0 %v2031
        %v2033 = vpop.xlane.xlu0 %2032
        %v2034 = vmul.f32 %v827, %v2033
        %v2035 = vlaneseq
        %v2036 = vshrl.u32 %v2035, 7
        %v2037 = vsub.s32 3, %v2036
        %v2038 = vrot.slane %v2034, %v2037
        %v2039 = vmul.f32 %v2017, %v2038
        %v2040 = vsub.f32 %v1732, %v2039
        %vm2041 = vcmp.gt.f32.partialorder %v2033, 0.5
        %v2042 = vsel %vm2041, %v2010, -1.0
        %v2043 = vlaneseq
        %v2044 = vshrl.u32 %v2043, 7
        %v2045 = vsub.s32 3, %v2044
        %v2046 = vrot.slane %v2033, %v2045
        %v2047 = vmul.f32 %v2013, %v2046
        %2049 = vrot.lane.b32.xlu0 %v2047, 125
        %v2050 = vpop.permute.xlu0 %2049
        %v2052 = vmax.f32 %v1744, %v2050
        %2054 = vset.pattern.permute.xlu0 3
        %2055 = vperm.xlu0 %2054, %v2010
        %v2056 = vpop.permute.xlu0 %2055
        %vm2058 = vcmp.eq.f32.partialorder %v652, %v2056
        %v2059 = vsel %vm2058, 1, 0
        %v2060 = vcvt.s32.f32 %v2059
        %v2061 = vmul.f32 %v2060, %v2033
        %v2063 = vrot.slane %v2061, 3
        %v2065 = vmax.f32 %v1757, %v2063
        %vm2066 = vcmp.eq.f32.partialorder %v652, 3.0
        %2068 = vset.pattern.permute.xlu0 3
        %2069 = vperm.xlu0 %2068, %v2001
        %v2070 = vpop.permute.xlu0 %2069
        %v2072 = vsel %vm2066, %v2070, %v1764
        %v2073 = vsel %vm2066, %v2056, %v1765
        %2075 = vset.pattern.permute.xlu0 3
        %2076 = vperm.xlu0 %2075, %v2042
        %v2077 = vpop.permute.xlu0 %2076
        %v2080 = vrot.slane %v1774, 7
        %v2082 = vsel %vm2066, %v2077, %v2080
        %v2084 = vsel %vm831, %v2040, 0
        %2086 = vmatprep.subr.mxu0 0.0
        %2087 = vmatpush1.msra.mxu0 %v837
        %2088 = vmatprep.subr.mxu0 0.0
        %2089 = vmatpush1.msra.mxu0 0.0
        %2090 = vmatprep.subr.mxu0 0.0
        %2091 = vmatpush1.msra.mxu0 0.0
        %2092 = vmatprep.subr.mxu0 0.0
        %2093 = vmatpush1.msra.mxu0 0.0
        %2094 = vmatprep.subr.mxu0 0.0
        %2095 = vmatpush1.msra.mxu0 0.0
        %2096 = vmatprep.subr.mxu0 0.0
        %2097 = vmatpush1.msra.mxu0 0.0
        %2098 = vmatprep.subr.mxu0 0.0
        %2099 = vmatpush1.msra.mxu0 0.0
        %2100 = vmatprep.subr.mxu0 0.0
        %2101 = vmatpush1.msra.mxu0 0.0
        %2102 = vmatprep.subr.mxu0 0.0
        %2103 = vmatpush1.msra.mxu0 0.0
        %2104 = vmatprep.subr.mxu0 0.0
        %2105 = vmatpush1.msra.mxu0 0.0
        %2106 = vmatprep.subr.mxu0 0.0
        %2107 = vmatpush1.msra.mxu0 0.0
        %2108 = vmatprep.subr.mxu0 0.0
        %2109 = vmatpush1.msra.mxu0 0.0
        %2110 = vmatprep.subr.mxu0 0.0
        %2111 = vmatpush1.msra.mxu0 0.0
        %2112 = vmatprep.subr.mxu0 0.0
        %2113 = vmatpush1.msra.mxu0 0.0
        %2114 = vmatprep.subr.mxu0 0.0
        %2115 = vmatpush1.msra.mxu0 0.0
        %2116 = vmatprep.subr.mxu0 0.0
        %2117 = vmatpush1.msra.mxu0 0.0
        %2118 = vmatprep.subr.mxu0 0.0
        %2119 = vmatpush1.msra.mxu0 0.0
        %2120 = vmatprep.subr.mxu0 0.0
        %2121 = vmatpush1.msra.mxu0 0.0
        %2122 = vmatprep.subr.mxu0 0.0
        %2123 = vmatpush1.msra.mxu0 0.0
        %2124 = vmatprep.subr.mxu0 0.0
        %2125 = vmatpush1.msra.mxu0 0.0
        %2126 = vmatprep.subr.mxu0 0.0
        %2127 = vmatpush1.msra.mxu0 0.0
        %2128 = vmatprep.subr.mxu0 0.0
        %2129 = vmatpush1.msra.mxu0 0.0
        %2130 = vmatprep.subr.mxu0 0.0
        %2131 = vmatpush1.msra.mxu0 0.0
        %2132 = vmatprep.subr.mxu0 0.0
        %2133 = vmatpush1.msra.mxu0 0.0
        %2134 = vmatprep.subr.mxu0 0.0
        %2135 = vmatpush1.msra.mxu0 0.0
        %2136 = vmatprep.subr.mxu0 0.0
        %2137 = vmatpush1.msra.mxu0 0.0
        %2138 = vmatprep.subr.mxu0 0.0
        %2139 = vmatpush1.msra.mxu0 0.0
        %2140 = vmatprep.subr.mxu0 0.0
        %2141 = vmatpush1.msra.mxu0 0.0
        %2142 = vmatprep.subr.mxu0 0.0
        %2143 = vmatpush1.msra.mxu0 0.0
        %2144 = vmatprep.subr.mxu0 0.0
        %2145 = vmatpush1.msra.mxu0 0.0
        %2146 = vmatprep.subr.mxu0 0.0
        %2147 = vmatpush1.msra.mxu0 0.0
        %2148 = vmatprep.subr.mxu0 0.0
        %2149 = vmatpush1.msra.mxu0 0.0
        %2150 = vmatprep.mubr.f32.mxu0 0.0
        %2151 = vmatmul.mubr.f32.gmra.mrb[0].mxu0 %v2084
        %v2152 = vpop.f32.mrb[0].mxu0
        %v2153 = vadd.f32 0.0, %v2152
        %v2154 = vpop.f32.mrb[0].mxu0
        %2155 = vdwg.mxu0
        %v2156 = vadd.f32 %v737, %v2153
        %2158 = vset.pattern.permute.xlu0 0
        %2159 = vperm.xlu0 %2158, %v2052
        %v2160 = vpop.permute.xlu0 %2159
        %v2162 = vmul.f32 %v2160, %v915
        %v2163 = vadd.f32 %v2156, %v2162
        %v2164 = vlaneseq
        %v2165 = vshrl.u32 %v2164, 7
        %v2166 = vsub.s32 4, %v2165
        %v2167 = vrot.slane %v824, %v2166
        %v2168 = vmul.f32 %v2163, %v2167
        %v2169 = vsel %vm924, %v2168, 0.0
        %2170 = vadd.xlane.f32.xlu0 %v2169
        %v2171 = vpop.xlane.xlu0 %2170
        %v2172 = vsel %vm753, %v2171, -inf
        %v2173 = vrot.slane %v2172, 4
        %v2174 = vmax.f32 %v2172, %v2173
        %v2175 = vrot.slane %v2174, 2
        %v2176 = vmax.f32 %v2174, %v2175
        %v2177 = vrot.slane %v2176, 1
        %v2178 = vmax.f32 %v2176, %v2177
        %v2179 = vsub.f32 %v2171, %v2178
        %v2180 = vmul.f32 %v2179, 1.442695
        %v2181 = vpow.pop %v2180
        %v2182 = vsel %vm753, %v2181, 0.0
        %v2183 = vrot.slane %v2182, 4
        %v2184 = vadd.f32 %v2182, %v2183
        %v2185 = vrot.slane %v2184, 2
        %v2186 = vadd.f32 %v2184, %v2185
        %v2187 = vrot.slane %v2186, 1
        %v2188 = vadd.f32 %v2186, %v2187
        %v2189 = vrcp.pop %v2188
        %v2190 = vmul.f32 %v2181, %v2189
        %v2191 = vmul.f32 %v2190, %v2163
        %v2192 = vsel %vm924, %v2191, 0.0
        %v2193 = vrot.slane %v2192, 4
        %v2194 = vadd.f32 %v2192, %v2193
        %v2195 = vrot.slane %v2194, 2
        %v2196 = vadd.f32 %v2194, %v2195
        %v2197 = vrot.slane %v2196, 1
        %v2198 = vadd.f32 %v2196, %v2197
        %v2200 = vsel %vm967, %v2198, 0
        %2202 = vmatprep.subr.mxu0 0.0
        %2203 = vmatpush1.msra.mxu0 %v955
        %2204 = vmatprep.subr.mxu0 0.0
        %2205 = vmatpush1.msra.mxu0 %v956
        %2206 = vmatprep.subr.mxu0 0.0
        %2207 = vmatpush1.msra.mxu0 %v957
        %2208 = vmatprep.subr.mxu0 0.0
        %2209 = vmatpush1.msra.mxu0 %v958
        %2210 = vmatprep.subr.mxu0 0.0
        %2211 = vmatpush1.msra.mxu0 %v959
        %2212 = vmatprep.subr.mxu0 0.0
        %2213 = vmatpush1.msra.mxu0 %v960
        %2214 = vmatprep.subr.mxu0 0.0
        %2215 = vmatpush1.msra.mxu0 %v961
        %2216 = vmatprep.subr.mxu0 0.0
        %2217 = vmatpush1.msra.mxu0 %v962
        %2218 = vmatprep.subr.mxu0 0.0
        %2219 = vmatpush1.msra.mxu0 %v963
        %2220 = vmatprep.subr.mxu0 0.0
        %2221 = vmatpush1.msra.mxu0 %v964
        %2222 = vmatprep.subr.mxu0 0.0
        %2223 = vmatpush1.msra.mxu0 %v965
        %2224 = vmatprep.subr.mxu0 0.0
        %2225 = vmatpush1.msra.mxu0 %v966
        %2226 = vmatprep.subr.mxu0 0.0
        %2227 = vmatpush1.msra.mxu0 0.0
        %2228 = vmatprep.subr.mxu0 0.0
        %2229 = vmatpush1.msra.mxu0 0.0
        %2230 = vmatprep.subr.mxu0 0.0
        %2231 = vmatpush1.msra.mxu0 0.0
        %2232 = vmatprep.subr.mxu0 0.0
        %2233 = vmatpush1.msra.mxu0 0.0
        %2234 = vmatprep.subr.mxu0 0.0
        %2235 = vmatpush1.msra.mxu0 0.0
        %2236 = vmatprep.subr.mxu0 0.0
        %2237 = vmatpush1.msra.mxu0 0.0
        %2238 = vmatprep.subr.mxu0 0.0
        %2239 = vmatpush1.msra.mxu0 0.0
        %2240 = vmatprep.subr.mxu0 0.0
        %2241 = vmatpush1.msra.mxu0 0.0
        %2242 = vmatprep.subr.mxu0 0.0
        %2243 = vmatpush1.msra.mxu0 0.0
        %2244 = vmatprep.subr.mxu0 0.0
        %2245 = vmatpush1.msra.mxu0 0.0
        %2246 = vmatprep.subr.mxu0 0.0
        %2247 = vmatpush1.msra.mxu0 0.0
        %2248 = vmatprep.subr.mxu0 0.0
        %2249 = vmatpush1.msra.mxu0 0.0
        %2250 = vmatprep.subr.mxu0 0.0
        %2251 = vmatpush1.msra.mxu0 0.0
        %2252 = vmatprep.subr.mxu0 0.0
        %2253 = vmatpush1.msra.mxu0 0.0
        %2254 = vmatprep.subr.mxu0 0.0
        %2255 = vmatpush1.msra.mxu0 0.0
        %2256 = vmatprep.subr.mxu0 0.0
        %2257 = vmatpush1.msra.mxu0 0.0
        %2258 = vmatprep.subr.mxu0 0.0
        %2259 = vmatpush1.msra.mxu0 0.0
        %2260 = vmatprep.subr.mxu0 0.0
        %2261 = vmatpush1.msra.mxu0 0.0
        %2262 = vmatprep.subr.mxu0 0.0
        %2263 = vmatpush1.msra.mxu0 0.0
        %2264 = vmatprep.subr.mxu0 0.0
        %2265 = vmatpush1.msra.mxu0 0.0
        %2266 = vmatprep.mubr.f32.mxu0 0.0
        %2267 = vmatmul.mubr.f32.gmra.mrb[0].mxu0 %v2200
        %v2268 = vpop.f32.mrb[0].mxu0
        %v2269 = vadd.f32 0.0, %v2268
        %v2270 = vpop.f32.mrb[0].mxu0
        %2271 = vdwg.mxu0
        %v2272 = vlaneseq
        %v2273 = vshrl.u32 %v2272, 7
        %v2274 = vsub.s32 0, %v2273
        %v2275 = vrot.slane %v2269, %v2274
        %v2276 = vadd.f32 %v2163, %v2275
        %v2277 = vtanh.pop %v2276
        %v2278 = vmul.f32 %v2277, %v1052
        %v2279 = vsel %vm924, %v2278, 0.0
        %2280 = vadd.xlane.f32.xlu0 %v2279
        %v2281 = vpop.xlane.xlu0 %2280
        %v2282 = vsel %vm1058, %v2281, -1036.1633
        %vm2283 = vcmask 37920
        %v2284 = vsel %vm2283, %v2282, -inf
        %v2285 = vrot.slane %v2284, 4
        %v2286 = vmax.f32 %v2284, %v2285
        %v2287 = vrot.slane %v2286, 2
        %v2288 = vmax.f32 %v2286, %v2287
        %v2289 = vrot.slane %v2288, 1
        %v2290 = vmax.f32 %v2288, %v2289
        %v2291 = vsub.f32 %v2282, %v2290
        %v2292 = vmul.f32 %v2291, 1.442695
        %v2293 = vpow.pop %v2292
        %v2294 = vsel %vm2283, %v2293, 0.0
        %v2295 = vrot.slane %v2294, 4
        %v2296 = vadd.f32 %v2294, %v2295
        %v2297 = vrot.slane %v2296, 2
        %v2298 = vadd.f32 %v2296, %v2297
        %v2299 = vrot.slane %v2298, 1
        %v2300 = vadd.f32 %v2298, %v2299
        %v2301 = vrcp.pop %v2300
        %v2302 = vmul.f32 %v2293, %v2301
        %v2303 = vsel %vm2283, %v2302, -inf
        %v2304 = vrot.slane %v2303, 4
        %v2305 = vmax.f32 %v2303, %v2304
        %v2306 = vrot.slane %v2305, 2
        %v2307 = vmax.f32 %v2305, %v2306
        %v2308 = vrot.slane %v2307, 1
        %v2309 = vmax.f32 %v2307, %v2308
        %vm2310 = vcmp.ge.f32.partialorder %v2302, %v2309
        %v2311 = vsel %vm2310, %v649, 6.0
        %v2312 = vsel %vm2283, %v2311, inf
        %v2313 = vrot.slane %v2312, 4
        %v2314 = vmin.f32 %v2312, %v2313
        %v2315 = vrot.slane %v2314, 2
        %v2316 = vmin.f32 %v2314, %v2315
        %v2317 = vrot.slane %v2316, 1
        %v2318 = vmin.f32 %v2316, %v2317
        %vm2319 = vcmp.eq.f32.partialorder %v649, %v2318
        %v2320 = vsel %vm2319, 1, 0
        %v2321 = vcvt.s32.f32 %v2320
        %2323 = vset.pattern.permute.xlu0 4
        %2324 = vperm.xlu0 %2323, %v2321
        %v2325 = vpop.permute.xlu0 %2324
        %v2327 = vmul.f32 %v2325, %v2040
        %v2328 = vsel %vm1105, %v2327, 0.0
        %v2329 = vrot.slane %v2328, 4
        %v2330 = vadd.f32 %v2328, %v2329
        %v2331 = vrot.slane %v2330, 2
        %v2332 = vadd.f32 %v2330, %v2331
        %v2333 = vrot.slane %v2332, 1
        %v2334 = vadd.f32 %v2332, %v2333
        %vm2335 = vcmp.ge.f32.partialorder %v2334, %v827
        %v2336 = vsel %vm2335, 1, 0
        %v2337 = vcvt.s32.f32 %v2336
        %vm2338 = vcmask 28676
        %v2339 = vsel %vm2338, %v2337, inf
        %2340 = vmin.xlane.f32.xlu0 %v2339
        %v2341 = vpop.xlane.xlu0 %2340
        %v2342 = vmul.f32 %v827, %v2341
        %v2343 = vlaneseq
        %v2344 = vshrl.u32 %v2343, 7
        %v2345 = vsub.s32 4, %v2344
        %v2346 = vrot.slane %v2342, %v2345
        %v2347 = vmul.f32 %v2325, %v2346
        %v2348 = vsub.f32 %v2040, %v2347
        %vm2349 = vcmp.gt.f32.partialorder %v2341, 0.5
        %v2350 = vsel %vm2349, %v2318, -1.0
        %v2351 = vlaneseq
        %v2352 = vshrl.u32 %v2351, 7
        %v2353 = vsub.s32 4, %v2352
        %v2354 = vrot.slane %v2341, %v2353
        %v2355 = vmul.f32 %v2321, %v2354
        %2357 = vrot.lane.b32.xlu0 %v2355, 124
        %v2358 = vpop.permute.xlu0 %2357
        %v2360 = vmax.f32 %v2052, %v2358
        %2362 = vset.pattern.permute.xlu0 4
        %2363 = vperm.xlu0 %2362, %v2318
        %v2364 = vpop.permute.xlu0 %2363
        %vm2366 = vcmp.eq.f32.partialorder %v652, %v2364
        %v2367 = vsel %vm2366, 1, 0
        %v2368 = vcvt.s32.f32 %v2367
        %v2369 = vmul.f32 %v2368, %v2341
        %v2371 = vrot.slane %v2369, 4
        %v2373 = vmax.f32 %v2065, %v2371
        %vm2374 = vcmp.eq.f32.partialorder %v652, 4.0
        %2376 = vset.pattern.permute.xlu0 4
        %2377 = vperm.xlu0 %2376, %v2309
        %v2378 = vpop.permute.xlu0 %2377
        %v2380 = vsel %vm2374, %v2378, %v2072
        %v2381 = vsel %vm2374, %v2364, %v2073
        %2383 = vset.pattern.permute.xlu0 4
        %2384 = vperm.xlu0 %2383, %v2350
        %v2385 = vpop.permute.xlu0 %2384
        %v2388 = vrot.slane %v2082, 7
        %v2390 = vsel %vm2374, %v2385, %v2388
        %v2392 = vsel %vm831, %v2348, 0
        %2394 = vmatprep.subr.mxu0 0.0
        %2395 = vmatpush1.msra.mxu0 %v837
        %2396 = vmatprep.subr.mxu0 0.0
        %2397 = vmatpush1.msra.mxu0 0.0
        %2398 = vmatprep.subr.mxu0 0.0
        %2399 = vmatpush1.msra.mxu0 0.0
        %2400 = vmatprep.subr.mxu0 0.0
        %2401 = vmatpush1.msra.mxu0 0.0
        %2402 = vmatprep.subr.mxu0 0.0
        %2403 = vmatpush1.msra.mxu0 0.0
        %2404 = vmatprep.subr.mxu0 0.0
        %2405 = vmatpush1.msra.mxu0 0.0
        %2406 = vmatprep.subr.mxu0 0.0
        %2407 = vmatpush1.msra.mxu0 0.0
        %2408 = vmatprep.subr.mxu0 0.0
        %2409 = vmatpush1.msra.mxu0 0.0
        %2410 = vmatprep.subr.mxu0 0.0
        %2411 = vmatpush1.msra.mxu0 0.0
        %2412 = vmatprep.subr.mxu0 0.0
        %2413 = vmatpush1.msra.mxu0 0.0
        %2414 = vmatprep.subr.mxu0 0.0
        %2415 = vmatpush1.msra.mxu0 0.0
        %2416 = vmatprep.subr.mxu0 0.0
        %2417 = vmatpush1.msra.mxu0 0.0
        %2418 = vmatprep.subr.mxu0 0.0
        %2419 = vmatpush1.msra.mxu0 0.0
        %2420 = vmatprep.subr.mxu0 0.0
        %2421 = vmatpush1.msra.mxu0 0.0
        %2422 = vmatprep.subr.mxu0 0.0
        %2423 = vmatpush1.msra.mxu0 0.0
        %2424 = vmatprep.subr.mxu0 0.0
        %2425 = vmatpush1.msra.mxu0 0.0
        %2426 = vmatprep.subr.mxu0 0.0
        %2427 = vmatpush1.msra.mxu0 0.0
        %2428 = vmatprep.subr.mxu0 0.0
        %2429 = vmatpush1.msra.mxu0 0.0
        %2430 = vmatprep.subr.mxu0 0.0
        %2431 = vmatpush1.msra.mxu0 0.0
        %2432 = vmatprep.subr.mxu0 0.0
        %2433 = vmatpush1.msra.mxu0 0.0
        %2434 = vmatprep.subr.mxu0 0.0
        %2435 = vmatpush1.msra.mxu0 0.0
        %2436 = vmatprep.subr.mxu0 0.0
        %2437 = vmatpush1.msra.mxu0 0.0
        %2438 = vmatprep.subr.mxu0 0.0
        %2439 = vmatpush1.msra.mxu0 0.0
        %2440 = vmatprep.subr.mxu0 0.0
        %2441 = vmatpush1.msra.mxu0 0.0
        %2442 = vmatprep.subr.mxu0 0.0
        %2443 = vmatpush1.msra.mxu0 0.0
        %2444 = vmatprep.subr.mxu0 0.0
        %2445 = vmatpush1.msra.mxu0 0.0
        %2446 = vmatprep.subr.mxu0 0.0
        %2447 = vmatpush1.msra.mxu0 0.0
        %2448 = vmatprep.subr.mxu0 0.0
        %2449 = vmatpush1.msra.mxu0 0.0
        %2450 = vmatprep.subr.mxu0 0.0
        %2451 = vmatpush1.msra.mxu0 0.0
        %2452 = vmatprep.subr.mxu0 0.0
        %2453 = vmatpush1.msra.mxu0 0.0
        %2454 = vmatprep.subr.mxu0 0.0
        %2455 = vmatpush1.msra.mxu0 0.0
        %2456 = vmatprep.subr.mxu0 0.0
        %2457 = vmatpush1.msra.mxu0 0.0
        %2458 = vmatprep.mubr.f32.mxu0 0.0
        %2459 = vmatmul.mubr.f32.gmra.mrb[0].mxu0 %v2392
        %v2460 = vpop.f32.mrb[0].mxu0
        %v2461 = vadd.f32 0.0, %v2460
        %v2462 = vpop.f32.mrb[0].mxu0
        %2463 = vdwg.mxu0
        %v2464 = vadd.f32 %v737, %v2461
        %2466 = vset.pattern.permute.xlu0 0
        %2467 = vperm.xlu0 %2466, %v2360
        %v2468 = vpop.permute.xlu0 %2467
        %v2470 = vmul.f32 %v2468, %v915
        %v2471 = vadd.f32 %v2464, %v2470
        %v2472 = vlaneseq
        %v2473 = vshrl.u32 %v2472, 7
        %v2474 = vsub.s32 5, %v2473
        %v2475 = vrot.slane %v824, %v2474
        %v2476 = vmul.f32 %v2471, %v2475
        %v2477 = vsel %vm924, %v2476, 0.0
        %2478 = vadd.xlane.f32.xlu0 %v2477
        %v2479 = vpop.xlane.xlu0 %2478
        %v2480 = vsel %vm753, %v2479, -inf
        %v2481 = vrot.slane %v2480, 4
        %v2482 = vmax.f32 %v2480, %v2481
        %v2483 = vrot.slane %v2482, 2
        %v2484 = vmax.f32 %v2482, %v2483
        %v2485 = vrot.slane %v2484, 1
        %v2486 = vmax.f32 %v2484, %v2485
        %v2487 = vsub.f32 %v2479, %v2486
        %v2488 = vmul.f32 %v2487, 1.442695
        %v2489 = vpow.pop %v2488
        %v2490 = vsel %vm753, %v2489, 0.0
        %v2491 = vrot.slane %v2490, 4
        %v2492 = vadd.f32 %v2490, %v2491
        %v2493 = vrot.slane %v2492, 2
        %v2494 = vadd.f32 %v2492, %v2493
        %v2495 = vrot.slane %v2494, 1
        %v2496 = vadd.f32 %v2494, %v2495
        %v2497 = vrcp.pop %v2496
        %v2498 = vmul.f32 %v2489, %v2497
        %v2499 = vmul.f32 %v2498, %v2471
        %v2500 = vsel %vm924, %v2499, 0.0
        %v2501 = vrot.slane %v2500, 4
        %v2502 = vadd.f32 %v2500, %v2501
        %v2503 = vrot.slane %v2502, 2
        %v2504 = vadd.f32 %v2502, %v2503
        %v2505 = vrot.slane %v2504, 1
        %v2506 = vadd.f32 %v2504, %v2505
        %v2508 = vsel %vm967, %v2506, 0
        %2510 = vmatprep.subr.mxu0 0.0
        %2511 = vmatpush1.msra.mxu0 %v955
        %2512 = vmatprep.subr.mxu0 0.0
        %2513 = vmatpush1.msra.mxu0 %v956
        %2514 = vmatprep.subr.mxu0 0.0
        %2515 = vmatpush1.msra.mxu0 %v957
        %2516 = vmatprep.subr.mxu0 0.0
        %2517 = vmatpush1.msra.mxu0 %v958
        %2518 = vmatprep.subr.mxu0 0.0
        %2519 = vmatpush1.msra.mxu0 %v959
        %2520 = vmatprep.subr.mxu0 0.0
        %2521 = vmatpush1.msra.mxu0 %v960
        %2522 = vmatprep.subr.mxu0 0.0
        %2523 = vmatpush1.msra.mxu0 %v961
        %2524 = vmatprep.subr.mxu0 0.0
        %2525 = vmatpush1.msra.mxu0 %v962
        %2526 = vmatprep.subr.mxu0 0.0
        %2527 = vmatpush1.msra.mxu0 %v963
        %2528 = vmatprep.subr.mxu0 0.0
        %2529 = vmatpush1.msra.mxu0 %v964
        %2530 = vmatprep.subr.mxu0 0.0
        %2531 = vmatpush1.msra.mxu0 %v965
        %2532 = vmatprep.subr.mxu0 0.0
        %2533 = vmatpush1.msra.mxu0 %v966
        %2534 = vmatprep.subr.mxu0 0.0
        %2535 = vmatpush1.msra.mxu0 0.0
        %2536 = vmatprep.subr.mxu0 0.0
        %2537 = vmatpush1.msra.mxu0 0.0
        %2538 = vmatprep.subr.mxu0 0.0
        %2539 = vmatpush1.msra.mxu0 0.0
        %2540 = vmatprep.subr.mxu0 0.0
        %2541 = vmatpush1.msra.mxu0 0.0
        %2542 = vmatprep.subr.mxu0 0.0
        %2543 = vmatpush1.msra.mxu0 0.0
        %2544 = vmatprep.subr.mxu0 0.0
        %2545 = vmatpush1.msra.mxu0 0.0
        %2546 = vmatprep.subr.mxu0 0.0
        %2547 = vmatpush1.msra.mxu0 0.0
        %2548 = vmatprep.subr.mxu0 0.0
        %2549 = vmatpush1.msra.mxu0 0.0
        %2550 = vmatprep.subr.mxu0 0.0
        %2551 = vmatpush1.msra.mxu0 0.0
        %2552 = vmatprep.subr.mxu0 0.0
        %2553 = vmatpush1.msra.mxu0 0.0
        %2554 = vmatprep.subr.mxu0 0.0
        %2555 = vmatpush1.msra.mxu0 0.0
        %2556 = vmatprep.subr.mxu0 0.0
        %2557 = vmatpush1.msra.mxu0 0.0
        %2558 = vmatprep.subr.mxu0 0.0
        %2559 = vmatpush1.msra.mxu0 0.0
        %2560 = vmatprep.subr.mxu0 0.0
        %2561 = vmatpush1.msra.mxu0 0.0
        %2562 = vmatprep.subr.mxu0 0.0
        %2563 = vmatpush1.msra.mxu0 0.0
        %2564 = vmatprep.subr.mxu0 0.0
        %2565 = vmatpush1.msra.mxu0 0.0
        %2566 = vmatprep.subr.mxu0 0.0
        %2567 = vmatpush1.msra.mxu0 0.0
        %2568 = vmatprep.subr.mxu0 0.0
        %2569 = vmatpush1.msra.mxu0 0.0
        %2570 = vmatprep.subr.mxu0 0.0
        %2571 = vmatpush1.msra.mxu0 0.0
        %2572 = vmatprep.subr.mxu0 0.0
        %2573 = vmatpush1.msra.mxu0 0.0
        %2574 = vmatprep.mubr.f32.mxu0 0.0
        %2575 = vmatmul.mubr.f32.gmra.mrb[0].mxu0 %v2508
        %v2576 = vpop.f32.mrb[0].mxu0
        %v2577 = vadd.f32 0.0, %v2576
        %v2578 = vpop.f32.mrb[0].mxu0
        %2579 = vdwg.mxu0
        %v2580 = vlaneseq
        %v2581 = vshrl.u32 %v2580, 7
        %v2582 = vsub.s32 0, %v2581
        %v2583 = vrot.slane %v2577, %v2582
        %v2584 = vadd.f32 %v2471, %v2583
        %v2585 = vtanh.pop %v2584
        %v2586 = vmul.f32 %v2585, %v1052
        %v2587 = vsel %vm924, %v2586, 0.0
        %2588 = vadd.xlane.f32.xlu0 %v2587
        %v2589 = vpop.xlane.xlu0 %2588
        %v2590 = vsel %vm1058, %v2589, -1036.1633
        %vm2591 = vcmask 46120
        %v2592 = vsel %vm2591, %v2590, -inf
        %v2593 = vrot.slane %v2592, 4
        %v2594 = vmax.f32 %v2592, %v2593
        %v2595 = vrot.slane %v2594, 2
        %v2596 = vmax.f32 %v2594, %v2595
        %v2597 = vrot.slane %v2596, 1
        %v2598 = vmax.f32 %v2596, %v2597
        %v2599 = vsub.f32 %v2590, %v2598
        %v2600 = vmul.f32 %v2599, 1.442695
        %v2601 = vpow.pop %v2600
        %v2602 = vsel %vm2591, %v2601, 0.0
        %v2603 = vrot.slane %v2602, 4
        %v2604 = vadd.f32 %v2602, %v2603
        %v2605 = vrot.slane %v2604, 2
        %v2606 = vadd.f32 %v2604, %v2605
        %v2607 = vrot.slane %v2606, 1
        %v2608 = vadd.f32 %v2606, %v2607
        %v2609 = vrcp.pop %v2608
        %v2610 = vmul.f32 %v2601, %v2609
        %v2611 = vsel %vm2591, %v2610, -inf
        %v2612 = vrot.slane %v2611, 4
        %v2613 = vmax.f32 %v2611, %v2612
        %v2614 = vrot.slane %v2613, 2
        %v2615 = vmax.f32 %v2613, %v2614
        %v2616 = vrot.slane %v2615, 1
        %v2617 = vmax.f32 %v2615, %v2616
        %vm2618 = vcmp.ge.f32.partialorder %v2610, %v2617
        %v2619 = vsel %vm2618, %v649, 6.0
        %v2620 = vsel %vm2591, %v2619, inf
        %v2621 = vrot.slane %v2620, 4
        %v2622 = vmin.f32 %v2620, %v2621
        %v2623 = vrot.slane %v2622, 2
        %v2624 = vmin.f32 %v2622, %v2623
        %v2625 = vrot.slane %v2624, 1
        %v2626 = vmin.f32 %v2624, %v2625
        %vm2627 = vcmp.eq.f32.partialorder %v649, %v2626
        %v2628 = vsel %vm2627, 1, 0
        %v2629 = vcvt.s32.f32 %v2628
        %2631 = vset.pattern.permute.xlu0 5
        %2632 = vperm.xlu0 %2631, %v2629
        %v2633 = vpop.permute.xlu0 %2632
        %v2635 = vmul.f32 %v2633, %v2348
        %v2636 = vsel %vm1105, %v2635, 0.0
        %v2637 = vrot.slane %v2636, 4
        %v2638 = vadd.f32 %v2636, %v2637
        %v2639 = vrot.slane %v2638, 2
        %v2640 = vadd.f32 %v2638, %v2639
        %v2641 = vrot.slane %v2640, 1
        %v2642 = vadd.f32 %v2640, %v2641
        %vm2643 = vcmp.ge.f32.partialorder %v2642, %v827
        %v2644 = vsel %vm2643, 1, 0
        %v2645 = vcvt.s32.f32 %v2644
        %vm2646 = vcmask 29701
        %v2647 = vsel %vm2646, %v2645, inf
        %2648 = vmin.xlane.f32.xlu0 %v2647
        %v2649 = vpop.xlane.xlu0 %2648
        %v2650 = vmul.f32 %v827, %v2649
        %v2651 = vlaneseq
        %v2652 = vshrl.u32 %v2651, 7
        %v2653 = vsub.s32 5, %v2652
        %v2654 = vrot.slane %v2650, %v2653
        %v2655 = vmul.f32 %v2633, %v2654
        %v2656 = vsub.f32 %v2348, %v2655
        %vm2657 = vcmp.gt.f32.partialorder %v2649, 0.5
        %v2658 = vsel %vm2657, %v2626, -1.0
        %v2659 = vlaneseq
        %v2660 = vshrl.u32 %v2659, 7
        %v2661 = vsub.s32 5, %v2660
        %v2662 = vrot.slane %v2649, %v2661
        %v2663 = vmul.f32 %v2629, %v2662
        %2665 = vrot.lane.b32.xlu0 %v2663, 123
        %v2666 = vpop.permute.xlu0 %2665
        %v2668 = vmax.f32 %v2360, %v2666
        %2670 = vset.pattern.permute.xlu0 5
        %2671 = vperm.xlu0 %2670, %v2626
        %v2672 = vpop.permute.xlu0 %2671
        %vm2674 = vcmp.eq.f32.partialorder %v652, %v2672
        %v2675 = vsel %vm2674, 1, 0
        %v2676 = vcvt.s32.f32 %v2675
        %v2677 = vmul.f32 %v2676, %v2649
        %v2679 = vrot.slane %v2677, 5
        %v2681 = vmax.f32 %v2373, %v2679
        %vm2682 = vcmp.eq.f32.partialorder %v652, 5.0
        %2684 = vset.pattern.permute.xlu0 5
        %2685 = vperm.xlu0 %2684, %v2617
        %v2686 = vpop.permute.xlu0 %2685
        %v2688 = vsel %vm2682, %v2686, %v2380
        %v2689 = vsel %vm2682, %v2672, %v2381
        %2691 = vset.pattern.permute.xlu0 5
        %2692 = vperm.xlu0 %2691, %v2658
        %v2693 = vpop.permute.xlu0 %2692
        %v2696 = vrot.slane %v2390, 7
        %v2698 = vsel %vm2682, %v2693, %v2696
        %v2700 = vsel %vm831, %v2656, 0
        %2702 = vmatprep.subr.mxu0 0.0
        %2703 = vmatpush1.msra.mxu0 %v837
        %2704 = vmatprep.subr.mxu0 0.0
        %2705 = vmatpush1.msra.mxu0 0.0
        %2706 = vmatprep.subr.mxu0 0.0
        %2707 = vmatpush1.msra.mxu0 0.0
        %2708 = vmatprep.subr.mxu0 0.0
        %2709 = vmatpush1.msra.mxu0 0.0
        %2710 = vmatprep.subr.mxu0 0.0
        %2711 = vmatpush1.msra.mxu0 0.0
        %2712 = vmatprep.subr.mxu0 0.0
        %2713 = vmatpush1.msra.mxu0 0.0
        %2714 = vmatprep.subr.mxu0 0.0
        %2715 = vmatpush1.msra.mxu0 0.0
        %2716 = vmatprep.subr.mxu0 0.0
        %2717 = vmatpush1.msra.mxu0 0.0
        %2718 = vmatprep.subr.mxu0 0.0
        %2719 = vmatpush1.msra.mxu0 0.0
        %2720 = vmatprep.subr.mxu0 0.0
        %2721 = vmatpush1.msra.mxu0 0.0
        %2722 = vmatprep.subr.mxu0 0.0
        %2723 = vmatpush1.msra.mxu0 0.0
        %2724 = vmatprep.subr.mxu0 0.0
        %2725 = vmatpush1.msra.mxu0 0.0
        %2726 = vmatprep.subr.mxu0 0.0
        %2727 = vmatpush1.msra.mxu0 0.0
        %2728 = vmatprep.subr.mxu0 0.0
        %2729 = vmatpush1.msra.mxu0 0.0
        %2730 = vmatprep.subr.mxu0 0.0
        %2731 = vmatpush1.msra.mxu0 0.0
        %2732 = vmatprep.subr.mxu0 0.0
        %2733 = vmatpush1.msra.mxu0 0.0
        %2734 = vmatprep.subr.mxu0 0.0
        %2735 = vmatpush1.msra.mxu0 0.0
        %2736 = vmatprep.subr.mxu0 0.0
        %2737 = vmatpush1.msra.mxu0 0.0
        %2738 = vmatprep.subr.mxu0 0.0
        %2739 = vmatpush1.msra.mxu0 0.0
        %2740 = vmatprep.subr.mxu0 0.0
        %2741 = vmatpush1.msra.mxu0 0.0
        %2742 = vmatprep.subr.mxu0 0.0
        %2743 = vmatpush1.msra.mxu0 0.0
        %2744 = vmatprep.subr.mxu0 0.0
        %2745 = vmatpush1.msra.mxu0 0.0
        %2746 = vmatprep.subr.mxu0 0.0
        %2747 = vmatpush1.msra.mxu0 0.0
        %2748 = vmatprep.subr.mxu0 0.0
        %2749 = vmatpush1.msra.mxu0 0.0
        %2750 = vmatprep.subr.mxu0 0.0
        %2751 = vmatpush1.msra.mxu0 0.0
        %2752 = vmatprep.subr.mxu0 0.0
        %2753 = vmatpush1.msra.mxu0 0.0
        %2754 = vmatprep.subr.mxu0 0.0
        %2755 = vmatpush1.msra.mxu0 0.0
        %2756 = vmatprep.subr.mxu0 0.0
        %2757 = vmatpush1.msra.mxu0 0.0
        %2758 = vmatprep.subr.mxu0 0.0
        %2759 = vmatpush1.msra.mxu0 0.0
        %2760 = vmatprep.subr.mxu0 0.0
        %2761 = vmatpush1.msra.mxu0 0.0
        %2762 = vmatprep.subr.mxu0 0.0
        %2763 = vmatpush1.msra.mxu0 0.0
        %2764 = vmatprep.subr.mxu0 0.0
        %2765 = vmatpush1.msra.mxu0 0.0
        %2766 = vmatprep.mubr.f32.mxu0 0.0
        %2767 = vmatmul.mubr.f32.gmra.mrb[0].mxu0 %v2700
        %v2768 = vpop.f32.mrb[0].mxu0
        %v2769 = vadd.f32 0.0, %v2768
        %v2770 = vpop.f32.mrb[0].mxu0
        %2771 = vdwg.mxu0
        %v2772 = vadd.f32 %v737, %v2769
        %2774 = vset.pattern.permute.xlu0 0
        %2775 = vperm.xlu0 %2774, %v2668
        %v2776 = vpop.permute.xlu0 %2775
        %v2778 = vmul.f32 %v2776, %v915
        %v2779 = vadd.f32 %v2772, %v2778
        %v2780 = vlaneseq
        %v2781 = vshrl.u32 %v2780, 7
        %v2782 = vsub.s32 6, %v2781
        %v2783 = vrot.slane %v824, %v2782
        %v2784 = vmul.f32 %v2779, %v2783
        %v2785 = vsel %vm924, %v2784, 0.0
        %2786 = vadd.xlane.f32.xlu0 %v2785
        %v2787 = vpop.xlane.xlu0 %2786
        %v2788 = vsel %vm753, %v2787, -inf
        %v2789 = vrot.slane %v2788, 4
        %v2790 = vmax.f32 %v2788, %v2789
        %v2791 = vrot.slane %v2790, 2
        %v2792 = vmax.f32 %v2790, %v2791
        %v2793 = vrot.slane %v2792, 1
        %v2794 = vmax.f32 %v2792, %v2793
        %v2795 = vsub.f32 %v2787, %v2794
        %v2796 = vmul.f32 %v2795, 1.442695
        %v2797 = vpow.pop %v2796
        %v2798 = vsel %vm753, %v2797, 0.0
        %v2799 = vrot.slane %v2798, 4
        %v2800 = vadd.f32 %v2798, %v2799
        %v2801 = vrot.slane %v2800, 2
        %v2802 = vadd.f32 %v2800, %v2801
        %v2803 = vrot.slane %v2802, 1
        %v2804 = vadd.f32 %v2802, %v2803
        %v2805 = vrcp.pop %v2804
        %v2806 = vmul.f32 %v2797, %v2805
        %v2807 = vmul.f32 %v2806, %v2779
        %v2808 = vsel %vm924, %v2807, 0.0
        %v2809 = vrot.slane %v2808, 4
        %v2810 = vadd.f32 %v2808, %v2809
        %v2811 = vrot.slane %v2810, 2
        %v2812 = vadd.f32 %v2810, %v2811
        %v2813 = vrot.slane %v2812, 1
        %v2814 = vadd.f32 %v2812, %v2813
        %v2816 = vsel %vm967, %v2814, 0
        %2818 = vmatprep.subr.mxu0 0.0
        %2819 = vmatpush1.msra.mxu0 %v955
        %2820 = vmatprep.subr.mxu0 0.0
        %2821 = vmatpush1.msra.mxu0 %v956
        %2822 = vmatprep.subr.mxu0 0.0
        %2823 = vmatpush1.msra.mxu0 %v957
        %2824 = vmatprep.subr.mxu0 0.0
        %2825 = vmatpush1.msra.mxu0 %v958
        %2826 = vmatprep.subr.mxu0 0.0
        %2827 = vmatpush1.msra.mxu0 %v959
        %2828 = vmatprep.subr.mxu0 0.0
        %2829 = vmatpush1.msra.mxu0 %v960
        %2830 = vmatprep.subr.mxu0 0.0
        %2831 = vmatpush1.msra.mxu0 %v961
        %2832 = vmatprep.subr.mxu0 0.0
        %2833 = vmatpush1.msra.mxu0 %v962
        %2834 = vmatprep.subr.mxu0 0.0
        %2835 = vmatpush1.msra.mxu0 %v963
        %2836 = vmatprep.subr.mxu0 0.0
        %2837 = vmatpush1.msra.mxu0 %v964
        %2838 = vmatprep.subr.mxu0 0.0
        %2839 = vmatpush1.msra.mxu0 %v965
        %2840 = vmatprep.subr.mxu0 0.0
        %2841 = vmatpush1.msra.mxu0 %v966
        %2842 = vmatprep.subr.mxu0 0.0
        %2843 = vmatpush1.msra.mxu0 0.0
        %2844 = vmatprep.subr.mxu0 0.0
        %2845 = vmatpush1.msra.mxu0 0.0
        %2846 = vmatprep.subr.mxu0 0.0
        %2847 = vmatpush1.msra.mxu0 0.0
        %2848 = vmatprep.subr.mxu0 0.0
        %2849 = vmatpush1.msra.mxu0 0.0
        %2850 = vmatprep.subr.mxu0 0.0
        %2851 = vmatpush1.msra.mxu0 0.0
        %2852 = vmatprep.subr.mxu0 0.0
        %2853 = vmatpush1.msra.mxu0 0.0
        %2854 = vmatprep.subr.mxu0 0.0
        %2855 = vmatpush1.msra.mxu0 0.0
        %2856 = vmatprep.subr.mxu0 0.0
        %2857 = vmatpush1.msra.mxu0 0.0
        %2858 = vmatprep.subr.mxu0 0.0
        %2859 = vmatpush1.msra.mxu0 0.0
        %2860 = vmatprep.subr.mxu0 0.0
        %2861 = vmatpush1.msra.mxu0 0.0
        %2862 = vmatprep.subr.mxu0 0.0
        %2863 = vmatpush1.msra.mxu0 0.0
        %2864 = vmatprep.subr.mxu0 0.0
        %2865 = vmatpush1.msra.mxu0 0.0
        %2866 = vmatprep.subr.mxu0 0.0
        %2867 = vmatpush1.msra.mxu0 0.0
        %2868 = vmatprep.subr.mxu0 0.0
        %2869 = vmatpush1.msra.mxu0 0.0
        %2870 = vmatprep.subr.mxu0 0.0
        %2871 = vmatpush1.msra.mxu0 0.0
        %2872 = vmatprep.subr.mxu0 0.0
        %2873 = vmatpush1.msra.mxu0 0.0
        %2874 = vmatprep.subr.mxu0 0.0
        %2875 = vmatpush1.msra.mxu0 0.0
        %2876 = vmatprep.subr.mxu0 0.0
        %2877 = vmatpush1.msra.mxu0 0.0
        %2878 = vmatprep.subr.mxu0 0.0
        %2879 = vmatpush1.msra.mxu0 0.0
        %2880 = vmatprep.subr.mxu0 0.0
        %2881 = vmatpush1.msra.mxu0 0.0
        %2882 = vmatprep.mubr.f32.mxu0 0.0
        %2883 = vmatmul.mubr.f32.gmra.mrb[0].mxu0 %v2816
        %v2884 = vpop.f32.mrb[0].mxu0
        %v2885 = vadd.f32 0.0, %v2884
        %v2886 = vpop.f32.mrb[0].mxu0
        %2887 = vdwg.mxu0
        %v2888 = vlaneseq
        %v2889 = vshrl.u32 %v2888, 7
        %v2890 = vsub.s32 0, %v2889
        %v2891 = vrot.slane %v2885, %v2890
        %v2892 = vadd.f32 %v2779, %v2891
        %v2893 = vtanh.pop %v2892
        %v2894 = vmul.f32 %v2893, %v1052
        %v2895 = vsel %vm924, %v2894, 0.0
        %2896 = vadd.xlane.f32.xlu0 %v2895
        %v2897 = vpop.xlane.xlu0 %2896
        %v2898 = vsel %vm1058, %v2897, -1036.1633
        %vm2899 = vcmask 54320
        %v2900 = vsel %vm2899, %v2898, -inf
        %v2901 = vrot.slane %v2900, 4
        %v2902 = vmax.f32 %v2900, %v2901
        %v2903 = vrot.slane %v2902, 2
        %v2904 = vmax.f32 %v2902, %v2903
        %v2905 = vrot.slane %v2904, 1
        %v2906 = vmax.f32 %v2904, %v2905
        %v2907 = vsub.f32 %v2898, %v2906
        %v2908 = vmul.f32 %v2907, 1.442695
        %v2909 = vpow.pop %v2908
        %v2910 = vsel %vm2899, %v2909, 0.0
        %v2911 = vrot.slane %v2910, 4
        %v2912 = vadd.f32 %v2910, %v2911
        %v2913 = vrot.slane %v2912, 2
        %v2914 = vadd.f32 %v2912, %v2913
        %v2915 = vrot.slane %v2914, 1
        %v2916 = vadd.f32 %v2914, %v2915
        %v2917 = vrcp.pop %v2916
        %v2918 = vmul.f32 %v2909, %v2917
        %v2919 = vsel %vm2899, %v2918, -inf
        %v2920 = vrot.slane %v2919, 4
        %v2921 = vmax.f32 %v2919, %v2920
        %v2922 = vrot.slane %v2921, 2
        %v2923 = vmax.f32 %v2921, %v2922
        %v2924 = vrot.slane %v2923, 1
        %v2925 = vmax.f32 %v2923, %v2924
        %vm2926 = vcmp.ge.f32.partialorder %v2918, %v2925
        %v2927 = vsel %vm2926, %v649, 6.0
        %v2928 = vsel %vm2899, %v2927, inf
        %v2929 = vrot.slane %v2928, 4
        %v2930 = vmin.f32 %v2928, %v2929
        %v2931 = vrot.slane %v2930, 2
        %v2932 = vmin.f32 %v2930, %v2931
        %v2933 = vrot.slane %v2932, 1
        %v2934 = vmin.f32 %v2932, %v2933
        %vm2935 = vcmp.eq.f32.partialorder %v649, %v2934
        %v2936 = vsel %vm2935, 1, 0
        %v2937 = vcvt.s32.f32 %v2936
        %2939 = vset.pattern.permute.xlu0 6
        %2940 = vperm.xlu0 %2939, %v2937
        %v2941 = vpop.permute.xlu0 %2940
        %v2943 = vmul.f32 %v2941, %v2656
        %v2944 = vsel %vm1105, %v2943, 0.0
        %v2945 = vrot.slane %v2944, 4
        %v2946 = vadd.f32 %v2944, %v2945
        %v2947 = vrot.slane %v2946, 2
        %v2948 = vadd.f32 %v2946, %v2947
        %v2949 = vrot.slane %v2948, 1
        %v2950 = vadd.f32 %v2948, %v2949
        %vm2951 = vcmp.ge.f32.partialorder %v2950, %v827
        %v2952 = vsel %vm2951, 1, 0
        %v2953 = vcvt.s32.f32 %v2952
        %vm2954 = vcmask 30726
        %v2955 = vsel %vm2954, %v2953, inf
        %2956 = vmin.xlane.f32.xlu0 %v2955
        %v2957 = vpop.xlane.xlu0 %2956
        %v2958 = vmul.f32 %v827, %v2957
        %v2959 = vlaneseq
        %v2960 = vshrl.u32 %v2959, 7
        %v2961 = vsub.s32 6, %v2960
        %v2962 = vrot.slane %v2958, %v2961
        %v2963 = vmul.f32 %v2941, %v2962
        %v2964 = vsub.f32 %v2656, %v2963
        %vm2965 = vcmp.gt.f32.partialorder %v2957, 0.5
        %v2966 = vsel %vm2965, %v2934, -1.0
        %v2967 = vlaneseq
        %v2968 = vshrl.u32 %v2967, 7
        %v2969 = vsub.s32 6, %v2968
        %v2970 = vrot.slane %v2957, %v2969
        %v2971 = vmul.f32 %v2937, %v2970
        %2973 = vrot.lane.b32.xlu0 %v2971, 122
        %v2974 = vpop.permute.xlu0 %2973
        %v2976 = vmax.f32 %v2668, %v2974
        %2978 = vset.pattern.permute.xlu0 6
        %2979 = vperm.xlu0 %2978, %v2934
        %v2980 = vpop.permute.xlu0 %2979
        %vm2982 = vcmp.eq.f32.partialorder %v652, %v2980
        %v2983 = vsel %vm2982, 1, 0
        %v2984 = vcvt.s32.f32 %v2983
        %v2985 = vmul.f32 %v2984, %v2957
        %v2987 = vrot.slane %v2985, 6
        %v2989 = vmax.f32 %v2681, %v2987
        %vm2990 = vcmp.eq.f32.partialorder %v652, 6.0
        %2992 = vset.pattern.permute.xlu0 6
        %2993 = vperm.xlu0 %2992, %v2925
        %v2994 = vpop.permute.xlu0 %2993
        %v2996 = vsel %vm2990, %v2994, %v2688
        %v2997 = vsel %vm2990, %v2980, %v2689
        %2999 = vset.pattern.permute.xlu0 6
        %3000 = vperm.xlu0 %2999, %v2966
        %v3001 = vpop.permute.xlu0 %3000
        %v3004 = vrot.slane %v2698, 7
        %v3006 = vsel %vm2990, %v3001, %v3004
        %v3008 = vsel %vm831, %v2964, 0
        %3010 = vmatprep.subr.mxu0 0.0
        %3011 = vmatpush1.msra.mxu0 %v837
        %3012 = vmatprep.subr.mxu0 0.0
        %3013 = vmatpush1.msra.mxu0 0.0
        %3014 = vmatprep.subr.mxu0 0.0
        %3015 = vmatpush1.msra.mxu0 0.0
        %3016 = vmatprep.subr.mxu0 0.0
        %3017 = vmatpush1.msra.mxu0 0.0
        %3018 = vmatprep.subr.mxu0 0.0
        %3019 = vmatpush1.msra.mxu0 0.0
        %3020 = vmatprep.subr.mxu0 0.0
        %3021 = vmatpush1.msra.mxu0 0.0
        %3022 = vmatprep.subr.mxu0 0.0
        %3023 = vmatpush1.msra.mxu0 0.0
        %3024 = vmatprep.subr.mxu0 0.0
        %3025 = vmatpush1.msra.mxu0 0.0
        %3026 = vmatprep.subr.mxu0 0.0
        %3027 = vmatpush1.msra.mxu0 0.0
        %3028 = vmatprep.subr.mxu0 0.0
        %3029 = vmatpush1.msra.mxu0 0.0
        %3030 = vmatprep.subr.mxu0 0.0
        %3031 = vmatpush1.msra.mxu0 0.0
        %3032 = vmatprep.subr.mxu0 0.0
        %3033 = vmatpush1.msra.mxu0 0.0
        %3034 = vmatprep.subr.mxu0 0.0
        %3035 = vmatpush1.msra.mxu0 0.0
        %3036 = vmatprep.subr.mxu0 0.0
        %3037 = vmatpush1.msra.mxu0 0.0
        %3038 = vmatprep.subr.mxu0 0.0
        %3039 = vmatpush1.msra.mxu0 0.0
        %3040 = vmatprep.subr.mxu0 0.0
        %3041 = vmatpush1.msra.mxu0 0.0
        %3042 = vmatprep.subr.mxu0 0.0
        %3043 = vmatpush1.msra.mxu0 0.0
        %3044 = vmatprep.subr.mxu0 0.0
        %3045 = vmatpush1.msra.mxu0 0.0
        %3046 = vmatprep.subr.mxu0 0.0
        %3047 = vmatpush1.msra.mxu0 0.0
        %3048 = vmatprep.subr.mxu0 0.0
        %3049 = vmatpush1.msra.mxu0 0.0
        %3050 = vmatprep.subr.mxu0 0.0
        %3051 = vmatpush1.msra.mxu0 0.0
        %3052 = vmatprep.subr.mxu0 0.0
        %3053 = vmatpush1.msra.mxu0 0.0
        %3054 = vmatprep.subr.mxu0 0.0
        %3055 = vmatpush1.msra.mxu0 0.0
        %3056 = vmatprep.subr.mxu0 0.0
        %3057 = vmatpush1.msra.mxu0 0.0
        %3058 = vmatprep.subr.mxu0 0.0
        %3059 = vmatpush1.msra.mxu0 0.0
        %3060 = vmatprep.subr.mxu0 0.0
        %3061 = vmatpush1.msra.mxu0 0.0
        %3062 = vmatprep.subr.mxu0 0.0
        %3063 = vmatpush1.msra.mxu0 0.0
        %3064 = vmatprep.subr.mxu0 0.0
        %3065 = vmatpush1.msra.mxu0 0.0
        %3066 = vmatprep.subr.mxu0 0.0
        %3067 = vmatpush1.msra.mxu0 0.0
        %3068 = vmatprep.subr.mxu0 0.0
        %3069 = vmatpush1.msra.mxu0 0.0
        %3070 = vmatprep.subr.mxu0 0.0
        %3071 = vmatpush1.msra.mxu0 0.0
        %3072 = vmatprep.subr.mxu0 0.0
        %3073 = vmatpush1.msra.mxu0 0.0
        %3074 = vmatprep.mubr.f32.mxu0 0.0
        %3075 = vmatmul.mubr.f32.gmra.mrb[0].mxu0 %v3008
        %v3076 = vpop.f32.mrb[0].mxu0
        %v3077 = vadd.f32 0.0, %v3076
        %v3078 = vpop.f32.mrb[0].mxu0
        %3079 = vdwg.mxu0
        %v3080 = vadd.f32 %v737, %v3077
        %3082 = vset.pattern.permute.xlu0 0
        %3083 = vperm.xlu0 %3082, %v2976
        %v3084 = vpop.permute.xlu0 %3083
        %v3086 = vmul.f32 %v3084, %v915
        %v3087 = vadd.f32 %v3080, %v3086
        %v3088 = vlaneseq
        %v3089 = vshrl.u32 %v3088, 7
        %v3090 = vsub.s32 7, %v3089
        %v3091 = vrot.slane %v824, %v3090
        %v3092 = vmul.f32 %v3087, %v3091
        %v3093 = vsel %vm924, %v3092, 0.0
        %3094 = vadd.xlane.f32.xlu0 %v3093
        %v3095 = vpop.xlane.xlu0 %3094
        %v3096 = vsel %vm753, %v3095, -inf
        %v3097 = vrot.slane %v3096, 4
        %v3098 = vmax.f32 %v3096, %v3097
        %v3099 = vrot.slane %v3098, 2
        %v3100 = vmax.f32 %v3098, %v3099
        %v3101 = vrot.slane %v3100, 1
        %v3102 = vmax.f32 %v3100, %v3101
        %v3103 = vsub.f32 %v3095, %v3102
        %v3104 = vmul.f32 %v3103, 1.442695
        %v3105 = vpow.pop %v3104
        %v3106 = vsel %vm753, %v3105, 0.0
        %v3107 = vrot.slane %v3106, 4
        %v3108 = vadd.f32 %v3106, %v3107
        %v3109 = vrot.slane %v3108, 2
        %v3110 = vadd.f32 %v3108, %v3109
        %v3111 = vrot.slane %v3110, 1
        %v3112 = vadd.f32 %v3110, %v3111
        %v3113 = vrcp.pop %v3112
        %v3114 = vmul.f32 %v3105, %v3113
        %v3115 = vmul.f32 %v3114, %v3087
        %v3116 = vsel %vm924, %v3115, 0.0
        %v3117 = vrot.slane %v3116, 4
        %v3118 = vadd.f32 %v3116, %v3117
        %v3119 = vrot.slane %v3118, 2
        %v3120 = vadd.f32 %v3118, %v3119
        %v3121 = vrot.slane %v3120, 1
        %v3122 = vadd.f32 %v3120, %v3121
        %v3124 = vsel %vm967, %v3122, 0
        %3126 = vmatprep.subr.mxu0 0.0
        %3127 = vmatpush1.msra.mxu0 %v955
        %3128 = vmatprep.subr.mxu0 0.0
        %3129 = vmatpush1.msra.mxu0 %v956
        %3130 = vmatprep.subr.mxu0 0.0
        %3131 = vmatpush1.msra.mxu0 %v957
        %3132 = vmatprep.subr.mxu0 0.0
        %3133 = vmatpush1.msra.mxu0 %v958
        %3134 = vmatprep.subr.mxu0 0.0
        %3135 = vmatpush1.msra.mxu0 %v959
        %3136 = vmatprep.subr.mxu0 0.0
        %3137 = vmatpush1.msra.mxu0 %v960
        %3138 = vmatprep.subr.mxu0 0.0
        %3139 = vmatpush1.msra.mxu0 %v961
        %3140 = vmatprep.subr.mxu0 0.0
        %3141 = vmatpush1.msra.mxu0 %v962
        %3142 = vmatprep.subr.mxu0 0.0
        %3143 = vmatpush1.msra.mxu0 %v963
        %3144 = vmatprep.subr.mxu0 0.0
        %3145 = vmatpush1.msra.mxu0 %v964
        %3146 = vmatprep.subr.mxu0 0.0
        %3147 = vmatpush1.msra.mxu0 %v965
        %3148 = vmatprep.subr.mxu0 0.0
        %3149 = vmatpush1.msra.mxu0 %v966
        %3150 = vmatprep.subr.mxu0 0.0
        %3151 = vmatpush1.msra.mxu0 0.0
        %3152 = vmatprep.subr.mxu0 0.0
        %3153 = vmatpush1.msra.mxu0 0.0
        %3154 = vmatprep.subr.mxu0 0.0
        %3155 = vmatpush1.msra.mxu0 0.0
        %3156 = vmatprep.subr.mxu0 0.0
        %3157 = vmatpush1.msra.mxu0 0.0
        %3158 = vmatprep.subr.mxu0 0.0
        %3159 = vmatpush1.msra.mxu0 0.0
        %3160 = vmatprep.subr.mxu0 0.0
        %3161 = vmatpush1.msra.mxu0 0.0
        %3162 = vmatprep.subr.mxu0 0.0
        %3163 = vmatpush1.msra.mxu0 0.0
        %3164 = vmatprep.subr.mxu0 0.0
        %3165 = vmatpush1.msra.mxu0 0.0
        %3166 = vmatprep.subr.mxu0 0.0
        %3167 = vmatpush1.msra.mxu0 0.0
        %3168 = vmatprep.subr.mxu0 0.0
        %3169 = vmatpush1.msra.mxu0 0.0
        %3170 = vmatprep.subr.mxu0 0.0
        %3171 = vmatpush1.msra.mxu0 0.0
        %3172 = vmatprep.subr.mxu0 0.0
        %3173 = vmatpush1.msra.mxu0 0.0
        %3174 = vmatprep.subr.mxu0 0.0
        %3175 = vmatpush1.msra.mxu0 0.0
        %3176 = vmatprep.subr.mxu0 0.0
        %3177 = vmatpush1.msra.mxu0 0.0
        %3178 = vmatprep.subr.mxu0 0.0
        %3179 = vmatpush1.msra.mxu0 0.0
        %3180 = vmatprep.subr.mxu0 0.0
        %3181 = vmatpush1.msra.mxu0 0.0
        %3182 = vmatprep.subr.mxu0 0.0
        %3183 = vmatpush1.msra.mxu0 0.0
        %3184 = vmatprep.subr.mxu0 0.0
        %3185 = vmatpush1.msra.mxu0 0.0
        %3186 = vmatprep.subr.mxu0 0.0
        %3187 = vmatpush1.msra.mxu0 0.0
        %3188 = vmatprep.subr.mxu0 0.0
        %3189 = vmatpush1.msra.mxu0 0.0
        %3190 = vmatprep.mubr.f32.mxu0 0.0
        %3191 = vmatmul.mubr.f32.gmra.mrb[0].mxu0 %v3124
        %v3192 = vpop.f32.mrb[0].mxu0
        %v3193 = vadd.f32 0.0, %v3192
        %v3194 = vpop.f32.mrb[0].mxu0
        %3195 = vdwg.mxu0
        %v3196 = vlaneseq
        %v3197 = vshrl.u32 %v3196, 7
        %v3198 = vsub.s32 0, %v3197
        %v3199 = vrot.slane %v3193, %v3198
        %v3200 = vadd.f32 %v3087, %v3199
        %v3201 = vtanh.pop %v3200
        %v3202 = vmul.f32 %v3201, %v1052
        %v3203 = vsel %vm924, %v3202, 0.0
        %3204 = vadd.xlane.f32.xlu0 %v3203
        %v3205 = vpop.xlane.xlu0 %3204
        %v3206 = vsel %vm1058, %v3205, -1036.1633
        %vm3207 = vcmask 62520
        %v3208 = vsel %vm3207, %v3206, -inf
        %v3209 = vrot.slane %v3208, 4
        %v3210 = vmax.f32 %v3208, %v3209
        %v3211 = vrot.slane %v3210, 2
        %v3212 = vmax.f32 %v3210, %v3211
        %v3213 = vrot.slane %v3212, 1
        %v3214 = vmax.f32 %v3212, %v3213
        %v3215 = vsub.f32 %v3206, %v3214
        %v3216 = vmul.f32 %v3215, 1.442695
        %v3217 = vpow.pop %v3216
        %v3218 = vsel %vm3207, %v3217, 0.0
        %v3219 = vrot.slane %v3218, 4
        %v3220 = vadd.f32 %v3218, %v3219
        %v3221 = vrot.slane %v3220, 2
        %v3222 = vadd.f32 %v3220, %v3221
        %v3223 = vrot.slane %v3222, 1
        %v3224 = vadd.f32 %v3222, %v3223
        %v3225 = vrcp.pop %v3224
        %v3226 = vmul.f32 %v3217, %v3225
        %v3227 = vsel %vm3207, %v3226, -inf
        %v3228 = vrot.slane %v3227, 4
        %v3229 = vmax.f32 %v3227, %v3228
        %v3230 = vrot.slane %v3229, 2
        %v3231 = vmax.f32 %v3229, %v3230
        %v3232 = vrot.slane %v3231, 1
        %v3233 = vmax.f32 %v3231, %v3232
        %vm3234 = vcmp.ge.f32.partialorder %v3226, %v3233
        %v3235 = vsel %vm3234, %v649, 6.0
        %v3236 = vsel %vm3207, %v3235, inf
        %v3237 = vrot.slane %v3236, 4
        %v3238 = vmin.f32 %v3236, %v3237
        %v3239 = vrot.slane %v3238, 2
        %v3240 = vmin.f32 %v3238, %v3239
        %v3241 = vrot.slane %v3240, 1
        %v3242 = vmin.f32 %v3240, %v3241
        %vm3243 = vcmp.eq.f32.partialorder %v649, %v3242
        %v3244 = vsel %vm3243, 1, 0
        %v3245 = vcvt.s32.f32 %v3244
        %3247 = vset.pattern.permute.xlu0 7
        %3248 = vperm.xlu0 %3247, %v3245
        %v3249 = vpop.permute.xlu0 %3248
        %v3251 = vmul.f32 %v3249, %v2964
        %v3252 = vsel %vm1105, %v3251, 0.0
        %v3253 = vrot.slane %v3252, 4
        %v3254 = vadd.f32 %v3252, %v3253
        %v3255 = vrot.slane %v3254, 2
        %v3256 = vadd.f32 %v3254, %v3255
        %v3257 = vrot.slane %v3256, 1
        %v3258 = vadd.f32 %v3256, %v3257
        %vm3259 = vcmp.ge.f32.partialorder %v3258, %v827
        %v3260 = vsel %vm3259, 1, 0
        %v3261 = vcvt.s32.f32 %v3260
        %vm3262 = vcmask 31751
        %v3263 = vsel %vm3262, %v3261, inf
        %3264 = vmin.xlane.f32.xlu0 %v3263
        %v3265 = vpop.xlane.xlu0 %3264
        %v3266 = vmul.f32 %v827, %v3265
        %v3267 = vlaneseq
        %v3268 = vshrl.u32 %v3267, 7
        %v3269 = vsub.s32 7, %v3268
        %v3270 = vrot.slane %v3266, %v3269
        %v3271 = vmul.f32 %v3249, %v3270
        %v3272 = vsub.f32 %v2964, %v3271
        %vm3273 = vcmp.gt.f32.partialorder %v3265, 0.5
        %v3274 = vsel %vm3273, %v3242, -1.0
        %3276 = vset.pattern.permute.xlu0 7
        %3277 = vperm.xlu0 %3276, %v3242
        %v3278 = vpop.permute.xlu0 %3277
        %vm3280 = vcmp.eq.f32.partialorder %v652, %v3278
        %v3281 = vsel %vm3280, 1, 0
        %v3282 = vcvt.s32.f32 %v3281
        %v3283 = vmul.f32 %v3282, %v3265
        %v3285 = vrot.slane %v3283, 7
        %v3287 = vmax.f32 %v2989, %v3285
        %vm3288 = vcmp.eq.f32.partialorder %v652, 7.0
        %3290 = vset.pattern.permute.xlu0 7
        %3291 = vperm.xlu0 %3290, %v3233
        %v3292 = vpop.permute.xlu0 %3291
        %v3294 = vsel %vm3288, %v3292, %v2996
        %v3295 = vsel %vm3288, %v3278, %v2997
        %3297 = vset.pattern.permute.xlu0 7
        %3298 = vperm.xlu0 %3297, %v3274
        %v3299 = vpop.permute.xlu0 %3298
        %v3302 = vrot.slane %v3006, 7
        %v3304 = vsel %vm3288, %v3299, %v3302
        %vm3305 = vcmask 57344
        %3306 = vst.msk [vmem:[%s594] sm:$0x1] %vm3305, %v3294
        %v3307 = vcvt.f32.s32.to.zero.pseudo %v3295
        %3308 = vst.msk [vmem:[%s600] sm:$0x1] %vm3305, %v3307
        %v3309 = vcvt.f32.s32.to.zero.pseudo %v3304
        %vm3310 = vcmask 64519
        %3311 = vst.msk [vmem:[%s639 - $0x7] sm:$0x80] %vm3310, %v3309
        %v3312 = vcvt.f32.s32.to.zero.pseudo %v3287
        %vm3313 = vcmask 40960
        %3314 = vst.msk [vmem:[%s642] sm:$0x1] %vm3313, %v3312
        %3315 = vst.msk [vmem:[%s646] sm:$0x3f] %vm1105, %v3272
        %s3316 = sand.u32 %s341, 1
        %s3317 = scalar_lea.sflag [#allocation3], %s3316
        %s3318 = sand.u32 %s341, 1
        %s3319 = scalar_lea.vmem [#allocation2], %s3318
        %s3320 = sand.u32 %s367, 1
        %s3321 = scalar_lea.sflag [#allocation5], %s3320
        %s3322 = sand.u32 %s367, 1
        %s3323 = scalar_lea.vmem [#allocation4], %s3322
        %p3324 = scmp.lt.s32.totalorder %s35, 1
        %s3325 = scalar_select %p3324, %s35, 1
        %s3326 = scalar_lea.vmem %s15, %s3325
        %p3327 = scmp.lt.s32.totalorder %s35, 1
        %s3328 = scalar_select %p3327, %s35, 1
        %s3329 = scalar_lea.vmem %s16, %s3328
        %p3330 = scmp.lt.s32.totalorder %s35, 1
        %s3331 = scalar_select %p3330, %s35, 1
        %s3332 = smul.addr %s3331, 8
        %s3333 = scalar_lea.vmem %s17, %s3332
        // Predicated region
        $region73: #{attention_net_forward.1} parent=71 // pred_check
          %p3334 = pneg %p351
        $region74: #{attention_net_forward.1} parent=71 // pred_check_branch
          %3336 = sbr.rel (%p3334) target = $region76
        $region75: #{attention_net_forward.1} parent=71 // pred_region
          %s3338 = ssub.s32 16, 16
          %3339 = vsyncadd %s3317, %s3338
          %s3340 = smul.addr %s35, 16
          %s3341 = scalar_lea.hbm %s13, %s3340
          %s3343 = sshll.u32 %s3319, 4
          %s3344 = int_to_ptr.vmem [resolvable:$true] %s3343
          %3346 = dma.vmem_to_hbm [thread:$0]  %s3344, 16, %s3341, %s3317
        $region76: #{attention_net_forward.1} parent=71 // pred_fallthru
          _
        // Predicated region
        $region77: #{attention_net_forward.1} parent=71 // pred_check
          %p3347 = pneg %p377
        $region78: #{attention_net_forward.1} parent=71 // pred_check_branch
          %3349 = sbr.rel (%p3347) target = $region80
        $region79: #{attention_net_forward.1} parent=71 // pred_region
          %s3351 = ssub.s32 16, 16
          %3352 = vsyncadd %s3321, %s3351
          %s3353 = smul.addr %s35, 16
          %s3354 = scalar_lea.hbm %s14, %s3353
          %s3356 = sshll.u32 %s3323, 4
          %s3357 = int_to_ptr.vmem [resolvable:$true] %s3356
          %3359 = dma.vmem_to_hbm [thread:$0]  %s3357, 16, %s3354, %s3321
        $region80: #{attention_net_forward.1} parent=71 // pred_fallthru
          _
        // Predicated region
        $region81: #{attention_net_forward.1} parent=71 // pred_check
          %p3360 = pneg %p403
        $region82: #{attention_net_forward.1} parent=71 // pred_check_branch
          %3362 = sbr.rel (%p3360) target = $region84
        $region83: #{attention_net_forward.1} parent=71 // pred_region
          _
        $region84: #{attention_net_forward.1} parent=71 // pred_fallthru
          _
        // Predicated region
        $region85: #{attention_net_forward.1} parent=71 // pred_check
          %p3363 = pneg %p429
        $region86: #{attention_net_forward.1} parent=71 // pred_check_branch
          %3365 = sbr.rel (%p3363) target = $region88
        $region87: #{attention_net_forward.1} parent=71 // pred_region
          _
        $region88: #{attention_net_forward.1} parent=71 // pred_fallthru
          _
        // Predicated region
        $region89: #{attention_net_forward.1} parent=71 // pred_check
          %p3366 = pneg %p455
        $region90: #{attention_net_forward.1} parent=71 // pred_check_branch
          %3368 = sbr.rel (%p3366) target = $region92
        $region91: #{attention_net_forward.1} parent=71 // pred_region
          _
        $region92: #{attention_net_forward.1} parent=71 // pred_fallthru
          _
      $region72: #{attention_net_forward.1} parent=5 // pred_fallthru
        _
      %p3369 = scmp.le.s32.totalorder 2, %s30
      // Predicated region
      $region93: #{attention_net_forward.1} parent=5 // pred_check
        %p3370 = pneg %p3369
      $region94: #{attention_net_forward.1} parent=5 // pred_check_branch
        %3372 = sbr.rel (%p3370) target = $region96
      $region95: #{attention_net_forward.1} parent=5 // pred_region
        %s3373 = ssub.s32 %s30, 2
        // Predicated region
        $region97: #{attention_net_forward.1} parent=95 // pred_check
          %p3374 = pneg %p357
        $region98: #{attention_net_forward.1} parent=95 // pred_check_branch
          %3376 = sbr.rel (%p3374) target = $region100
        $region99: #{attention_net_forward.1} parent=95 // pred_region
          %s3377 = sand.u32 %s342, 1
          %s3378 = scalar_lea.sflag [#allocation3], %s3377
          %s3379 = sand.u32 %s342, 1
          %s3380 = scalar_lea.vmem [#allocation2], %s3379
          %3381 = dma.done %s3378, 16
        $region100: #{attention_net_forward.1} parent=95 // pred_fallthru
          _
        // Predicated region
        $region101: #{attention_net_forward.1} parent=95 // pred_check
          %p3382 = pneg %p383
        $region102: #{attention_net_forward.1} parent=95 // pred_check_branch
          %3384 = sbr.rel (%p3382) target = $region104
        $region103: #{attention_net_forward.1} parent=95 // pred_region
          %s3385 = sand.u32 %s368, 1
          %s3386 = scalar_lea.sflag [#allocation5], %s3385
          %s3387 = sand.u32 %s368, 1
          %s3388 = scalar_lea.vmem [#allocation4], %s3387
          %3389 = dma.done %s3386, 16
        $region104: #{attention_net_forward.1} parent=95 // pred_fallthru
          _
        // Predicated region
        $region105: #{attention_net_forward.1} parent=95 // pred_check
          %p3390 = pneg %p409
        $region106: #{attention_net_forward.1} parent=95 // pred_check_branch
          %3392 = sbr.rel (%p3390) target = $region108
        $region107: #{attention_net_forward.1} parent=95 // pred_region
          %p3393 = scmp.lt.s32.totalorder %s36, 1
          %s3394 = scalar_select %p3393, %s36, 1
          %s3395 = scalar_lea.vmem %s15, %s3394
        $region108: #{attention_net_forward.1} parent=95 // pred_fallthru
          _
        // Predicated region
        $region109: #{attention_net_forward.1} parent=95 // pred_check
          %p3396 = pneg %p435
        $region110: #{attention_net_forward.1} parent=95 // pred_check_branch
          %3398 = sbr.rel (%p3396) target = $region112
        $region111: #{attention_net_forward.1} parent=95 // pred_region
          %p3399 = scmp.lt.s32.totalorder %s36, 1
          %s3400 = scalar_select %p3399, %s36, 1
          %s3401 = scalar_lea.vmem %s16, %s3400
        $region112: #{attention_net_forward.1} parent=95 // pred_fallthru
          _
        // Predicated region
        $region113: #{attention_net_forward.1} parent=95 // pred_check
          %p3402 = pneg %p461
        $region114: #{attention_net_forward.1} parent=95 // pred_check_branch
          %3404 = sbr.rel (%p3402) target = $region116
        $region115: #{attention_net_forward.1} parent=95 // pred_region
          %p3405 = scmp.lt.s32.totalorder %s36, 1
          %s3406 = scalar_select %p3405, %s36, 1
          %s3407 = smul.addr %s3406, 8
          %s3408 = scalar_lea.vmem %s17, %s3407
        $region116: #{attention_net_forward.1} parent=95 // pred_fallthru
          _
      $region96: #{attention_net_forward.1} parent=5 // pred_fallthru
        _
    $region6: #{attention_net_forward.1} parent=1 // loop_footer
      %s34 = sadd.s32 1, %s30
    $region7: #{attention_net_forward.1} parent=1 // loop_footer_branch
      %29 = sbr.rel target = $region3
    $region8: #{attention_net_forward.1} parent=1 // loop_exit
      _
    %3409 = vsyncpa [#allocation3], 1
    %s3410 = scalar_lea.sflag [#allocation3], 1
    %3411 = vsyncpa %s3410, 1
    %3412 = vsyncpa [#allocation5], 1
    %s3413 = scalar_lea.sflag [#allocation5], 1
    %3414 = vsyncpa %s3413, 1

</llo_original>
